<compile_context>
chip_gen: v6e
topology: v6e:2x2x1
jax: 0.10.0
libtpu: 0.0.40
codegen_flags: <defaults>
</compile_context>

<pallas_src>
import functools
import math

import jax
import jax.numpy as jnp
from jax.experimental import pallas as pl
from jax.experimental.pallas import tpu as pltpu


# ----------------------------------------------------------------------------
# In-kernel helpers
# ----------------------------------------------------------------------------
def _layernorm(x, g, b, eps=1e-5):
    # LayerNorm over last dim (PyTorch default eps=1e-5); f32 math.
    mean = jnp.mean(x, axis=-1, keepdims=True)
    var = jnp.mean((x - mean) * (x - mean), axis=-1, keepdims=True)
    return (x - mean) * jax.lax.rsqrt(var + eps) * g + b


def _mha(xq, xkv, mask, *, wq, bq, wk, bk, wv, bv, wo, bo,
         n_heads, inv_scale, attn_ref):
    """Multi-head attention for one (query-tile, batch element), all heads.

    xq: (Sq, D) queries, xkv: (Sk, D) keys/values, mask: (Sq, Sk) int8
    (nonzero == masked).  wq/wk/wv: (D, D) bf16, wo: (H, Dh, D) bf16
    (head-grouped output-projection rows), biases f32.
    Writes the (H, Sq, Sk) attention distribution into attn_ref when given.
    Returns (Sq, D) float32.
    """
    sq, d = xq.shape
    dh = d // n_heads
    xq_b = xq.astype(jnp.bfloat16)
    xkv_b = xkv.astype(jnp.bfloat16)

    # Full-width projections: MXU N = d_model (not head_dim), bf16 x bf16 -> f32.
    q = jnp.dot(xq_b, wq, preferred_element_type=jnp.float32) + bq     # (Sq, D)
    k = jnp.dot(xkv_b, wk, preferred_element_type=jnp.float32) + bk    # (Sk, D)
    v = jnp.dot(xkv_b, wv, preferred_element_type=jnp.float32) + bv    # (Sk, D)

    # Head-major (H, S, Dh) via static lane slices + stack (no lax.transpose).
    def heads(x2d):
        return jnp.stack([x2d[:, h * dh:(h + 1) * dh] for h in range(n_heads)],
                         axis=0)

    qh = heads(q * inv_scale).astype(jnp.bfloat16)   # 1/sqrt(Dh) folded into Q
    kh = heads(k).astype(jnp.bfloat16)
    vh = heads(v).astype(jnp.bfloat16)

    # Batched scores; contraction over last dims, no explicit K^T materialized.
    s = jnp.einsum('hqd,hkd->hqk', qh, kh, preferred_element_type=jnp.float32)
    s = jnp.where(mask[None, :, :] != 0, jnp.float32(-1e10), s)

    # Softmax (f32), reciprocal on the EUP.
    m = jnp.max(s, axis=-1, keepdims=True)
    e = jnp.exp(s - m)
    p = e * pl.reciprocal(jnp.sum(e, axis=-1, keepdims=True), approx=True)
    if attn_ref is not None:
        attn_ref[...] = p.astype(attn_ref.dtype)

    o = jnp.einsum('hqk,hkd->hqd', p.astype(jnp.bfloat16), vh,
                   preferred_element_type=jnp.float32)                 # (H,Sq,Dh)
    # Output projection: per-head (N = d_model) batched matmul, reduced over
    # heads; mathematically == concat(heads) @ Wo.
    oh = jnp.einsum('hqd,hde->hqe', o.astype(jnp.bfloat16), wo,
                    preferred_element_type=jnp.float32)                # (H,Sq,D)
    return jnp.sum(oh, axis=0) + bo


# ----------------------------------------------------------------------------
# Kernels
# ----------------------------------------------------------------------------
def decoder_layer_kernel(
        x_ref, enc_ref, dmask_ref, xmask_ref,
        ln_g_ref, ln_b_ref,
        wq_ref, wk_ref, wv_ref, wo_ref,
        bq_ref, bk_ref, bv_ref, bo_ref,
        w1_ref, b1_ref, w2_ref, b2_ref,
        y_ref, *attn_refs,
        n_heads, inv_scale, tq, save_attn):
    # One full DecoderLayer for one (batch element, query tile).
    g = ln_g_ref[...].astype(jnp.float32)            # (1, D) shared LN in layer
    b = ln_b_ref[...].astype(jnp.float32)
    wq = wq_ref[...]; wk = wk_ref[...]; wv = wv_ref[...]; wo = wo_ref[...]
    bq = bq_ref[...]; bk = bk_ref[...]; bv = bv_ref[...]; bo = bo_ref[...]

    s_full = x_ref.shape[0]
    x_full = x_ref[...].astype(jnp.float32)          # (S, D) full rows (for K/V)
    xn_full = _layernorm(x_full, g, b)
    if tq == s_full:                                 # no query tiling
        x_tile, xn_tile = x_full, xn_full
    else:
        row0 = pl.multiple_of(pl.program_id(1) * tq, tq)
        x_tile = x_ref[pl.ds(row0, tq), :].astype(jnp.float32)
        xn_tile = _layernorm(x_tile, g, b)

    enc = enc_ref[...]                               # (S_enc, D) bf16

    attn_dec_ref = attn_refs[0] if save_attn else None
    attn_xd_ref = attn_refs[1] if save_attn else None

    mha = functools.partial(_mha, wq=wq, bq=bq, wk=wk, bk=bk, wv=wv, bv=bv,
                            wo=wo, bo=bo, n_heads=n_heads, inv_scale=inv_scale)

    # Sub-layer 1: masked self-attention (pre-LN, residual, dropout == identity).
    x_t = x_tile + mha(xn_tile, xn_full, dmask_ref[...], attn_ref=attn_dec_ref)

    # Sub-layer 2: cross-attention; reference DecoderLayer reuses the SAME
    # MHA weights and SAME LayerNorm params for this sublayer.
    xn = _layernorm(x_t, g, b)
    x_t = x_t + mha(xn, enc, xmask_ref[...], attn_ref=attn_xd_ref)

    # Sub-layer 3: feed-forward (Linear -> ReLU -> Dropout(id) -> Linear).
    xn = _layernorm(x_t, g, b).astype(jnp.bfloat16)
    h = jnp.dot(xn, w1_ref[...], preferred_element_type=jnp.float32) + b1_ref[...]
    h = jnp.maximum(h, 0.0).astype(jnp.bfloat16)
    ff = jnp.dot(h, w2_ref[...], preferred_element_type=jnp.float32) + b2_ref[...]
    x_t = x_t + ff

    y_ref[...] = x_t.astype(y_ref.dtype)


def final_head_kernel(x_ref, g_ref, b_ref, w_ref, bias_ref, o_ref):
    # Fused final LayerNorm + fc_out tile (rows x vocab-tile).
    xn = _layernorm(x_ref[...].astype(jnp.float32),
                    g_ref[...].astype(jnp.float32),
                    b_ref[...].astype(jnp.float32))
    o_ref[...] = (jnp.dot(xn.astype(jnp.bfloat16), w_ref[...],
                          preferred_element_type=jnp.float32)
                  + bias_ref[...]).astype(o_ref.dtype)


# ----------------------------------------------------------------------------
# Tiling helpers
# ----------------------------------------------------------------------------
def _round_up(x, m):
    return ((x + m - 1) // m) * m


def _pick_q_tile(s):
    # Query-tile: multiples of 32 keep int8 mask blocks layout-legal; fall back
    # to the full sequence (always legal) for small/odd S.
    for t in (256, 128, 64, 32):
        if t <= s and s % t == 0:
            return t
    return s


def _pick_tm(m, cap=256):
    for t in (cap, 128, 64, 32, 16, 8):
        if t <= m and m % t == 0:
            return t
    return m


def _pick_tv(v, cap=512):
    for t in (cap, 256, 128):
        if v % t == 0:
            return t
    return v


_VMEM_LIMIT = 48 * 1024 * 1024    # headroom under v7x's 64 MiB physical VMEM


# ----------------------------------------------------------------------------
# Pallas wrappers
# ----------------------------------------------------------------------------
def decoder_layer(x, enc_out, dmask, xmask, lp, n_heads, save_attn):
    B, S, D = x.shape
    S_enc = enc_out.shape[1]
    H = n_heads
    inv_scale = 1.0 / math.sqrt(D // H)
    tq = _pick_q_tile(S)
    nq = S // tq

    kern = functools.partial(decoder_layer_kernel, n_heads=H,
                             inv_scale=inv_scale, tq=tq, save_attn=save_attn)

    weights = (lp["ln_g"], lp["ln_b"],
               lp["wq"], lp["wk"], lp["wv"], lp["wo"],
               lp["bq"], lp["bk"], lp["bv"], lp["bo"],
               lp["w1"], lp["b1"], lp["w2"], lp["b2"])

    def _full(arr):
        nd = arr.ndim
        return pl.BlockSpec(arr.shape, lambda bb, qq, _nd=nd: (0,) * _nd)

    in_specs = [
        pl.BlockSpec((None, S, D), lambda bb, qq: (bb, 0, 0)),        # x (full seq)
        pl.BlockSpec((None, S_enc, D), lambda bb, qq: (bb, 0, 0)),    # enc_out
        pl.BlockSpec((None, tq, S), lambda bb, qq: (bb, qq, 0)),      # dec mask int8
        pl.BlockSpec((None, tq, S_enc), lambda bb, qq: (bb, qq, 0)),  # x-dec mask
    ] + [_full(w) for w in weights]

    out_shape = [jax.ShapeDtypeStruct((B, S, D), jnp.bfloat16)]       # bf16 activ.
    out_specs = [pl.BlockSpec((None, tq, D), lambda bb, qq: (bb, qq, 0))]
    if save_attn:
        out_shape += [jax.ShapeDtypeStruct((B, H, S, S), jnp.float32),
                      jax.ShapeDtypeStruct((B, H, S, S_enc), jnp.float32)]
        out_specs += [pl.BlockSpec((None, H, tq, S), lambda bb, qq: (bb, 0, qq, 0)),
                      pl.BlockSpec((None, H, tq, S_enc), lambda bb, qq: (bb, 0, qq, 0))]

    outs = pl.pallas_call(
        kern,
        out_shape=tuple(out_shape),
        grid=(B, nq),
        in_specs=in_specs,
        out_specs=tuple(out_specs),
        compiler_params=pltpu.CompilerParams(
            dimension_semantics=("parallel", "parallel"),
            vmem_limit_bytes=_VMEM_LIMIT),
    )(x, enc_out, dmask, xmask, *weights)

    return outs if save_attn else outs[0]


def final_head(x, ln_g, ln_b, w_out, b_out, vocab_size):
    B, S, D = x.shape
    M = B * S
    V_pad = w_out.shape[1]                 # padded to a multiple of 128
    tm = _pick_tm(M)
    tv = _pick_tv(V_pad)
    out = pl.pallas_call(
        final_head_kernel,
        out_shape=jax.ShapeDtypeStruct((M, V_pad), jnp.float32),
        grid=(M // tm, V_pad // tv),
        in_specs=[
            pl.BlockSpec((tm, D), lambda i, j: (i, 0)),
            pl.BlockSpec((1, D), lambda i, j: (0, 0)),
            pl.BlockSpec((1, D), lambda i, j: (0, 0)),
            pl.BlockSpec((D, tv), lambda i, j: (0, j)),
            pl.BlockSpec((1, tv), lambda i, j: (0, j)),
        ],
        out_specs=pl.BlockSpec((tm, tv), lambda i, j: (i, j)),
        compiler_params=pltpu.CompilerParams(
            dimension_semantics=("parallel", "parallel"),
            vmem_limit_bytes=_VMEM_LIMIT),
    )(x.reshape(M, D), ln_g, ln_b, w_out, b_out)
    return out[:, :vocab_size].reshape(B, S, vocab_size)


# ----------------------------------------------------------------------------
# Model glue (embedding gather + residual orchestration)
# ----------------------------------------------------------------------------
def decoder_forward(trg, enc_out, dec_mask, enc_dec_mask, params, n_heads,
                    atten_map_save=False):
    B, S = trg.shape
    S_enc = enc_out.shape[1]
    D = params["tok_emb"].shape[1]
    emb_scale = math.sqrt(D)
    pos = jnp.arange(S)
    # TODO(synk): token/positional embedding gathers stay in plain JAX/XLA glue;
    # a data-dependent gather in Pallas would need manual DMA.  Dropout == id.
    x = emb_scale * params["tok_emb"][trg] + params["pos_emb"][pos][None, :, :]
    x = x.astype(jnp.bfloat16)                      # bf16 inter-layer activations
    enc_bf = enc_out.astype(jnp.bfloat16)

    # Masks: nonzero == masked.  Drop the broadcast head dim and ship int8
    # (4x less HBM per layer than f32 (B,1,S,S) masks).
    dmask = jnp.broadcast_to(dec_mask, (B, 1, S, S))[:, 0].astype(jnp.int8)
    xmask = jnp.broadcast_to(enc_dec_mask, (B, 1, S, S_enc))[:, 0].astype(jnp.int8)

    atten_decs, atten_enc_decs = [], []
    for lp in params["layers"]:
        if atten_map_save:
            x, a_dec, a_xd = decoder_layer(x, enc_bf, dmask, xmask, lp,
                                           n_heads, save_attn=True)
            # Reference keeps only batch element 0 per layer
            # (atten_dec[0].unsqueeze(0)).
            atten_decs.append(a_dec[0][None])
            atten_enc_decs.append(a_xd[0][None])
        else:
            x = decoder_layer(x, enc_bf, dmask, xmask, lp, n_heads,
                              save_attn=False)

    logits = final_head(x, params["ln_g"], params["ln_b"],
                        params["w_out"], params["b_out"], params["vocab"])

    if atten_map_save:
        atten_decs = jnp.concatenate(atten_decs, axis=0)
        atten_enc_decs = jnp.concatenate(atten_enc_decs, axis=0)
    return logits, atten_decs, atten_enc_decs


# ----------------------------------------------------------------------------
# Deterministic parameter construction (bf16 MXU weights, f32 norms/biases)
# ----------------------------------------------------------------------------
def init_params(key, vocab_size, max_len, d_model, n_heads, n_layers, d_ff):
    H = n_heads
    Dh = d_model // H
    keys = iter(jax.random.split(key, 8 + n_layers * 8))

    def nrm(shape, scale=0.02, dtype=jnp.bfloat16):
        return (scale * jax.random.normal(next(keys), shape)).astype(dtype)

    v_pad = _round_up(vocab_size, 128)             # lane-dense final-head stores
    w_out = jnp.zeros((d_model, v_pad), jnp.bfloat16)
    w_out = w_out.at[:, :vocab_size].set(nrm((d_model, vocab_size)))

    params = {
        "vocab": vocab_size,
        "tok_emb": nrm((vocab_size, d_model), 1.0, jnp.float32),
        "pos_emb": nrm((max_len, d_model), 1.0, jnp.float32),
        "ln_g": jnp.ones((1, d_model), jnp.float32),
        "ln_b": jnp.zeros((1, d_model), jnp.float32),
        "w_out": w_out,
        "b_out": jnp.zeros((1, v_pad), jnp.float32),
        "layers": [],
    }
    for _ in range(n_layers):
        lp = {
            "wq": nrm((d_model, d_model)), "bq": jnp.zeros((1, d_model), jnp.float32),
            "wk": nrm((d_model, d_model)), "bk": jnp.zeros((1, d_model), jnp.float32),
            "wv": nrm((d_model, d_model)), "bv": jnp.zeros((1, d_model), jnp.float32),
            # Output projection rows grouped by head: (D, D) -> (H, Dh, D).
            "wo": nrm((d_model, d_model)).reshape(H, Dh, d_model),
            "bo": jnp.zeros((1, d_model), jnp.float32),
            "w1": nrm((d_model, d_ff)), "b1": jnp.zeros((1, d_ff), jnp.float32),
            "w2": nrm((d_ff, d_model)), "b2": jnp.zeros((1, d_model), jnp.float32),
            "ln_g": jnp.ones((1, d_model), jnp.float32),
            "ln_b": jnp.zeros((1, d_model), jnp.float32),
        }
        params["layers"].append(lp)
    return params


# ----------------------------------------------------------------------------
if __name__ == "__main__":
    vocab_size, max_len = 50, 16
    d_model, n_heads, n_layers, d_ff = 32, 4, 2, 64
    B, S_dec, S_enc = 2, 8, 8
    pad_idx = 0

    key = jax.random.PRNGKey(0)
    k_param, k_trg, k_enc = jax.random.split(key, 3)

    params = init_params(k_param, vocab_size, max_len, d_model, n_heads,
                         n_layers, d_ff)

    trg = jax.random.randint(k_trg, (B, S_dec), 1, vocab_size).astype(jnp.int32)
    trg = trg.at[0, 6:].set(pad_idx)
    trg = trg.at[1, 7:].set(pad_idx)

    enc_out = jax.random.normal(k_enc, (B, S_enc, d_model), jnp.float32)
    src_pad = jnp.zeros((B, S_enc), bool).at[0, 5:].set(True).at[1, 7:].set(True)

    # dec_mask: causal + target padding, True == masked; (B, 1, S_dec, S_dec)
    idx = jnp.arange(S_dec)
    causal = idx[None, :] > idx[:, None]
    trg_pad = (trg == pad_idx)
    dec_mask = trg_pad[:, None, None, :] | causal[None, None, :, :]
    # enc_dec_mask: source padding, True == masked; (B, 1, S_dec, S_enc)
    enc_dec_mask = jnp.broadcast_to(src_pad[:, None, None, :], (B, 1, S_dec, S_enc))

    logits, _, _ = decoder_forward(trg, enc_out, dec_mask, enc_dec_mask,
                                   params, n_heads, atten_map_save=False)
    logits = jax.block_until_ready(logits)
    assert logits.shape == (B, S_dec, vocab_size)
    assert bool(jnp.all(jnp.isfinite(logits)))

    # Exercise the attention-map-saving variant once as well.
    logits2, a_dec, a_xd = decoder_forward(trg, enc_out, dec_mask, enc_dec_mask,
                                           params, n_heads, atten_map_save=True)
    logits2 = jax.block_until_ready(logits2)
    assert a_dec.shape == (n_layers, n_heads, S_dec, S_dec)
    assert a_xd.shape == (n_layers, n_heads, S_dec, S_enc)
    assert bool(jnp.all(jnp.isfinite(a_dec))) and bool(jnp.all(jnp.isfinite(a_xd)))
    assert bool(jnp.allclose(logits, logits2, atol=1e-5))
    print("KERNEL_OK")
</pallas_src>

<mosaic_0001>
module attributes {stable_mosaic.version = 11 : i64} {
  func.func @decoder_layer_kernel(%arg0: i32, %arg1: i32, %arg2: memref<1x8x32xbf16, #tpu.memory_space<vmem>>, %arg3: memref<1x8x32xbf16, #tpu.memory_space<vmem>>, %arg4: memref<1x8x8xi8, #tpu.memory_space<vmem>>, %arg5: memref<1x8x8xi8, #tpu.memory_space<vmem>>, %arg6: memref<1x32xf32, #tpu.memory_space<vmem>>, %arg7: memref<1x32xf32, #tpu.memory_space<vmem>>, %arg8: memref<32x32xbf16, #tpu.memory_space<vmem>>, %arg9: memref<32x32xbf16, #tpu.memory_space<vmem>>, %arg10: memref<32x32xbf16, #tpu.memory_space<vmem>>, %arg11: memref<4x8x32xbf16, #tpu.memory_space<vmem>>, %arg12: memref<1x32xf32, #tpu.memory_space<vmem>>, %arg13: memref<1x32xf32, #tpu.memory_space<vmem>>, %arg14: memref<1x32xf32, #tpu.memory_space<vmem>>, %arg15: memref<1x32xf32, #tpu.memory_space<vmem>>, %arg16: memref<32x64xbf16, #tpu.memory_space<vmem>>, %arg17: memref<1x64xf32, #tpu.memory_space<vmem>>, %arg18: memref<64x32xbf16, #tpu.memory_space<vmem>>, %arg19: memref<1x32xf32, #tpu.memory_space<vmem>>, %arg20: memref<1x8x32xbf16, #tpu.memory_space<vmem>>) attributes {dimension_semantics = [#tpu.dimension_semantics<parallel>, #tpu.dimension_semantics<parallel>], iteration_bounds = array<i64: 2, 1>, scalar_prefetch = 0 : i64, scratch_operands = 0 : i64, tpu.core_type = #tpu.core_type<tc>, window_params = [{transform_indices = @transform_0, window_bounds = array<i64: 1, 8, 32>}, {transform_indices = @transform_1, window_bounds = array<i64: 1, 8, 32>}, {transform_indices = @transform_2, window_bounds = array<i64: 1, 8, 8>}, {transform_indices = @transform_3, window_bounds = array<i64: 1, 8, 8>}, {pipeline_mode = #tpu.pipeline_mode<synchronous>, transform_indices = @transform_4, window_bounds = array<i64: 1, 32>}, {pipeline_mode = #tpu.pipeline_mode<synchronous>, transform_indices = @transform_5, window_bounds = array<i64: 1, 32>}, {pipeline_mode = #tpu.pipeline_mode<synchronous>, transform_indices = @transform_6, window_bounds = array<i64: 32, 32>}, {pipeline_mode = #tpu.pipeline_mode<synchronous>, transform_indices = @transform_7, window_bounds = array<i64: 32, 32>}, {pipeline_mode = #tpu.pipeline_mode<synchronous>, transform_indices = @transform_8, window_bounds = array<i64: 32, 32>}, {pipeline_mode = #tpu.pipeline_mode<synchronous>, transform_indices = @transform_9, window_bounds = array<i64: 4, 8, 32>}, {pipeline_mode = #tpu.pipeline_mode<synchronous>, transform_indices = @transform_10, window_bounds = array<i64: 1, 32>}, {pipeline_mode = #tpu.pipeline_mode<synchronous>, transform_indices = @transform_11, window_bounds = array<i64: 1, 32>}, {pipeline_mode = #tpu.pipeline_mode<synchronous>, transform_indices = @transform_12, window_bounds = array<i64: 1, 32>}, {pipeline_mode = #tpu.pipeline_mode<synchronous>, transform_indices = @transform_13, window_bounds = array<i64: 1, 32>}, {pipeline_mode = #tpu.pipeline_mode<synchronous>, transform_indices = @transform_14, window_bounds = array<i64: 32, 64>}, {pipeline_mode = #tpu.pipeline_mode<synchronous>, transform_indices = @transform_15, window_bounds = array<i64: 1, 64>}, {pipeline_mode = #tpu.pipeline_mode<synchronous>, transform_indices = @transform_16, window_bounds = array<i64: 64, 32>}, {pipeline_mode = #tpu.pipeline_mode<synchronous>, transform_indices = @transform_17, window_bounds = array<i64: 1, 32>}, {transform_indices = @transform_18, window_bounds = array<i64: 1, 8, 32>}]} {
    %c0 = arith.constant 0 : index
    %c0_0 = arith.constant 0 : index
    %0 = vector.load %arg6[%c0, %c0_0] : memref<1x32xf32, #tpu.memory_space<vmem>>, vector<1x32xf32>
    %c0_1 = arith.constant 0 : index
    %c0_2 = arith.constant 0 : index
    %1 = vector.load %arg7[%c0_1, %c0_2] : memref<1x32xf32, #tpu.memory_space<vmem>>, vector<1x32xf32>
    %c0_3 = arith.constant 0 : index
    %c0_4 = arith.constant 0 : index
    %2 = vector.load %arg8[%c0_3, %c0_4] : memref<32x32xbf16, #tpu.memory_space<vmem>>, vector<32x32xbf16>
    %c0_5 = arith.constant 0 : index
    %c0_6 = arith.constant 0 : index
    %3 = vector.load %arg9[%c0_5, %c0_6] : memref<32x32xbf16, #tpu.memory_space<vmem>>, vector<32x32xbf16>
    %c0_7 = arith.constant 0 : index
    %c0_8 = arith.constant 0 : index
    %4 = vector.load %arg10[%c0_7, %c0_8] : memref<32x32xbf16, #tpu.memory_space<vmem>>, vector<32x32xbf16>
    %c0_9 = arith.constant 0 : index
    %c0_10 = arith.constant 0 : index
    %c0_11 = arith.constant 0 : index
    %5 = vector.load %arg11[%c0_9, %c0_10, %c0_11] : memref<4x8x32xbf16, #tpu.memory_space<vmem>>, vector<4x8x32xbf16>
    %c0_12 = arith.constant 0 : index
    %c0_13 = arith.constant 0 : index
    %6 = vector.load %arg12[%c0_12, %c0_13] : memref<1x32xf32, #tpu.memory_space<vmem>>, vector<1x32xf32>
    %c0_14 = arith.constant 0 : index
    %c0_15 = arith.constant 0 : index
    %7 = vector.load %arg13[%c0_14, %c0_15] : memref<1x32xf32, #tpu.memory_space<vmem>>, vector<1x32xf32>
    %c0_16 = arith.constant 0 : index
    %c0_17 = arith.constant 0 : index
    %8 = vector.load %arg14[%c0_16, %c0_17] : memref<1x32xf32, #tpu.memory_space<vmem>>, vector<1x32xf32>
    %c0_18 = arith.constant 0 : index
    %c0_19 = arith.constant 0 : index
    %9 = vector.load %arg15[%c0_18, %c0_19] : memref<1x32xf32, #tpu.memory_space<vmem>>, vector<1x32xf32>
    %c0_20 = arith.constant 0 : index
    %c0_21 = arith.constant 0 : index
    %c0_22 = arith.constant 0 : index
    %10 = vector.load %arg2[%c0_20, %c0_21, %c0_22] : memref<1x8x32xbf16, #tpu.memory_space<vmem>>, vector<1x8x32xbf16>
    %11 = vector.shape_cast %10 : vector<1x8x32xbf16> to vector<8x32xbf16>
    %12 = arith.extf %11 : vector<8x32xbf16> to vector<8x32xf32>
    %cst = arith.constant dense<0.000000e+00> : vector<8xf32>
    %13 = vector.multi_reduction <add>, %12, %cst [1] : vector<8x32xf32> to vector<8xf32>
    %14 = vector.shape_cast %13 : vector<8xf32> to vector<8x1xf32>
    %cst_23 = arith.constant 3.200000e+01 : f32
    %15 = vector.broadcast %cst_23 : f32 to vector<8x1xf32>
    %16 = arith.divf %14, %15 : vector<8x1xf32>
    %17 = vector.broadcast %16 : vector<8x1xf32> to vector<8x32xf32>
    %18 = arith.subf %12, %17 : vector<8x32xf32>
    %19 = vector.broadcast %16 : vector<8x1xf32> to vector<8x32xf32>
    %20 = arith.subf %12, %19 : vector<8x32xf32>
    %21 = arith.mulf %18, %20 : vector<8x32xf32>
    %cst_24 = arith.constant dense<0.000000e+00> : vector<8xf32>
    %22 = vector.multi_reduction <add>, %21, %cst_24 [1] : vector<8x32xf32> to vector<8xf32>
    %23 = vector.shape_cast %22 : vector<8xf32> to vector<8x1xf32>
    %cst_25 = arith.constant 3.200000e+01 : f32
    %24 = vector.broadcast %cst_25 : f32 to vector<8x1xf32>
    %25 = arith.divf %23, %24 : vector<8x1xf32>
    %26 = vector.broadcast %16 : vector<8x1xf32> to vector<8x32xf32>
    %27 = arith.subf %12, %26 : vector<8x32xf32>
    %cst_26 = arith.constant 9.99999974E-6 : f32
    %28 = vector.broadcast %cst_26 : f32 to vector<8x1xf32>
    %29 = arith.addf %25, %28 : vector<8x1xf32>
    %30 = math.rsqrt %29 : vector<8x1xf32>
    %31 = vector.broadcast %30 : vector<8x1xf32> to vector<8x32xf32>
    %32 = arith.mulf %27, %31 : vector<8x32xf32>
    %33 = vector.broadcast %0 : vector<1x32xf32> to vector<8x32xf32>
    %34 = arith.mulf %32, %33 : vector<8x32xf32>
    %35 = vector.broadcast %1 : vector<1x32xf32> to vector<8x32xf32>
    %36 = arith.addf %34, %35 : vector<8x32xf32>
    %c0_27 = arith.constant 0 : index
    %c0_28 = arith.constant 0 : index
    %c0_29 = arith.constant 0 : index
    %37 = vector.load %arg3[%c0_27, %c0_28, %c0_29] : memref<1x8x32xbf16, #tpu.memory_space<vmem>>, vector<1x8x32xbf16>
    %38 = vector.shape_cast %37 : vector<1x8x32xbf16> to vector<8x32xbf16>
    %c0_30 = arith.constant 0 : index
    %c0_31 = arith.constant 0 : index
    %c0_32 = arith.constant 0 : index
    %39 = vector.load %arg4[%c0_30, %c0_31, %c0_32] : memref<1x8x8xi8, #tpu.memory_space<vmem>>, vector<1x8x8xi8>
    %40 = vector.shape_cast %39 : vector<1x8x8xi8> to vector<8x8xi8>
    %41 = arith.truncf %36 : vector<8x32xf32> to vector<8x32xbf16>
    %42 = arith.truncf %36 : vector<8x32xf32> to vector<8x32xbf16>
    %cst_33 = arith.constant dense<0.000000e+00> : vector<8x32xf32>
    %43 = tpu.matmul %41, %2, %cst_33 {dimension_numbers = #tpu.dot_dimension_numbers<[1], [0], [0], [1], [0, 0, 1, 1], [], []>} : vector<8x32xbf16>, vector<32x32xbf16>, vector<8x32xf32> -> vector<8x32xf32>
    %44 = vector.broadcast %6 : vector<1x32xf32> to vector<8x32xf32>
    %45 = arith.addf %43, %44 : vector<8x32xf32>
    %cst_34 = arith.constant dense<0.000000e+00> : vector<8x32xf32>
    %46 = tpu.matmul %42, %3, %cst_34 {dimension_numbers = #tpu.dot_dimension_numbers<[1], [0], [0], [1], [0, 0, 1, 1], [], []>} : vector<8x32xbf16>, vector<32x32xbf16>, vector<8x32xf32> -> vector<8x32xf32>
    %47 = vector.broadcast %7 : vector<1x32xf32> to vector<8x32xf32>
    %48 = arith.addf %46, %47 : vector<8x32xf32>
    %cst_35 = arith.constant dense<0.000000e+00> : vector<8x32xf32>
    %49 = tpu.matmul %42, %4, %cst_35 {dimension_numbers = #tpu.dot_dimension_numbers<[1], [0], [0], [1], [0, 0, 1, 1], [], []>} : vector<8x32xbf16>, vector<32x32xbf16>, vector<8x32xf32> -> vector<8x32xf32>
    %50 = vector.broadcast %8 : vector<1x32xf32> to vector<8x32xf32>
    %51 = arith.addf %49, %50 : vector<8x32xf32>
    %cst_36 = arith.constant 0.353553385 : f32
    %52 = vector.broadcast %cst_36 : f32 to vector<8x32xf32>
    %53 = arith.mulf %45, %52 : vector<8x32xf32>
    %54 = vector.extract_strided_slice %53 {offsets = [0, 0], sizes = [8, 8], strides = [1, 1]} : vector<8x32xf32> to vector<8x8xf32>
    %55 = vector.extract_strided_slice %53 {offsets = [0, 8], sizes = [8, 8], strides = [1, 1]} : vector<8x32xf32> to vector<8x8xf32>
    %56 = vector.extract_strided_slice %53 {offsets = [0, 16], sizes = [8, 8], strides = [1, 1]} : vector<8x32xf32> to vector<8x8xf32>
    %57 = vector.extract_strided_slice %53 {offsets = [0, 24], sizes = [8, 8], strides = [1, 1]} : vector<8x32xf32> to vector<8x8xf32>
    %58 = vector.shape_cast %54 : vector<8x8xf32> to vector<1x8x8xf32>
    %59 = vector.shape_cast %55 : vector<8x8xf32> to vector<1x8x8xf32>
    %60 = vector.shape_cast %56 : vector<8x8xf32> to vector<1x8x8xf32>
    %61 = vector.shape_cast %57 : vector<8x8xf32> to vector<1x8x8xf32>
    %62 = tpu.concatenate %58, %59, %60, %61 in 0 : vector<1x8x8xf32>, vector<1x8x8xf32>, vector<1x8x8xf32>, vector<1x8x8xf32> -> vector<4x8x8xf32>
    %63 = arith.truncf %62 : vector<4x8x8xf32> to vector<4x8x8xbf16>
    %64 = vector.extract_strided_slice %48 {offsets = [0, 0], sizes = [8, 8], strides = [1, 1]} : vector<8x32xf32> to vector<8x8xf32>
    %65 = vector.extract_strided_slice %48 {offsets = [0, 8], sizes = [8, 8], strides = [1, 1]} : vector<8x32xf32> to vector<8x8xf32>
    %66 = vector.extract_strided_slice %48 {offsets = [0, 16], sizes = [8, 8], strides = [1, 1]} : vector<8x32xf32> to vector<8x8xf32>
    %67 = vector.extract_strided_slice %48 {offsets = [0, 24], sizes = [8, 8], strides = [1, 1]} : vector<8x32xf32> to vector<8x8xf32>
    %68 = vector.shape_cast %64 : vector<8x8xf32> to vector<1x8x8xf32>
    %69 = vector.shape_cast %65 : vector<8x8xf32> to vector<1x8x8xf32>
    %70 = vector.shape_cast %66 : vector<8x8xf32> to vector<1x8x8xf32>
    %71 = vector.shape_cast %67 : vector<8x8xf32> to vector<1x8x8xf32>
    %72 = tpu.concatenate %68, %69, %70, %71 in 0 : vector<1x8x8xf32>, vector<1x8x8xf32>, vector<1x8x8xf32>, vector<1x8x8xf32> -> vector<4x8x8xf32>
    %73 = arith.truncf %72 : vector<4x8x8xf32> to vector<4x8x8xbf16>
    %74 = vector.extract_strided_slice %51 {offsets = [0, 0], sizes = [8, 8], strides = [1, 1]} : vector<8x32xf32> to vector<8x8xf32>
    %75 = vector.extract_strided_slice %51 {offsets = [0, 8], sizes = [8, 8], strides = [1, 1]} : vector<8x32xf32> to vector<8x8xf32>
    %76 = vector.extract_strided_slice %51 {offsets = [0, 16], sizes = [8, 8], strides = [1, 1]} : vector<8x32xf32> to vector<8x8xf32>
    %77 = vector.extract_strided_slice %51 {offsets = [0, 24], sizes = [8, 8], strides = [1, 1]} : vector<8x32xf32> to vector<8x8xf32>
    %78 = vector.shape_cast %74 : vector<8x8xf32> to vector<1x8x8xf32>
    %79 = vector.shape_cast %75 : vector<8x8xf32> to vector<1x8x8xf32>
    %80 = vector.shape_cast %76 : vector<8x8xf32> to vector<1x8x8xf32>
    %81 = vector.shape_cast %77 : vector<8x8xf32> to vector<1x8x8xf32>
    %82 = tpu.concatenate %78, %79, %80, %81 in 0 : vector<1x8x8xf32>, vector<1x8x8xf32>, vector<1x8x8xf32>, vector<1x8x8xf32> -> vector<4x8x8xf32>
    %83 = arith.truncf %82 : vector<4x8x8xf32> to vector<4x8x8xbf16>
    "tpu.trace_start"() <{level = 10 : i32, message = "hqd,hkd->hqk"}> : () -> ()
    %cst_37 = arith.constant dense<0.000000e+00> : vector<4x8x8xf32>
    %84 = tpu.matmul %63, %73, %cst_37 {dimension_numbers = #tpu.dot_dimension_numbers<[2], [2], [1], [1], [0, 0, 0, 1, 1, 1], [0], [0]>} : vector<4x8x8xbf16>, vector<4x8x8xbf16>, vector<4x8x8xf32> -> vector<4x8x8xf32>
    "tpu.trace_stop"() : () -> ()
    %85 = vector.shape_cast %40 : vector<8x8xi8> to vector<1x8x8xi8>
    %c0_i8 = arith.constant 0 : i8
    %86 = vector.broadcast %c0_i8 : i8 to vector<1x8x8xi8>
    %87 = arith.cmpi ne, %85, %86 : vector<1x8x8xi8>
    %cst_38 = arith.constant -1.000000e+10 : f32
    %88 = vector.shape_cast %87 : vector<1x8x8xi1> to vector<1x8x8xi1>
    %89 = vector.broadcast %88 : vector<1x8x8xi1> to vector<4x8x8xi1>
    %90 = vector.broadcast %cst_38 : f32 to vector<4x8x8xf32>
    %91 = arith.select %89, %90, %84 : vector<4x8x8xi1>, vector<4x8x8xf32>
    %cst_39 = arith.constant dense<0xFF800000> : vector<4x8xf32>
    %92 = vector.multi_reduction <maximumf>, %91, %cst_39 [2] : vector<4x8x8xf32> to vector<4x8xf32>
    %93 = vector.shape_cast %92 : vector<4x8xf32> to vector<4x8x1xf32>
    %94 = vector.broadcast %93 : vector<4x8x1xf32> to vector<4x8x8xf32>
    %95 = arith.subf %91, %94 : vector<4x8x8xf32>
    %96 = math.exp %95 : vector<4x8x8xf32>
    %cst_40 = arith.constant dense<0.000000e+00> : vector<4x8xf32>
    %97 = vector.multi_reduction <add>, %96, %cst_40 [2] : vector<4x8x8xf32> to vector<4x8xf32>
    %98 = vector.shape_cast %97 : vector<4x8xf32> to vector<4x8x1xf32>
    %99 = tpu.reciprocal %98 {approx = true} : vector<4x8x1xf32> -> vector<4x8x1xf32>
    %100 = vector.broadcast %99 : vector<4x8x1xf32> to vector<4x8x8xf32>
    %101 = arith.mulf %96, %100 : vector<4x8x8xf32>
    %102 = arith.truncf %101 : vector<4x8x8xf32> to vector<4x8x8xbf16>
    "tpu.trace_start"() <{level = 10 : i32, message = "hqk,hkd->hqd"}> : () -> ()
    %cst_41 = arith.constant dense<0.000000e+00> : vector<4x8x8xf32>
    %103 = tpu.matmul %102, %83, %cst_41 {dimension_numbers = #tpu.dot_dimension_numbers<[2], [1], [1], [2], [0, 0, 0, 1, 1, 2], [0], [0]>} : vector<4x8x8xbf16>, vector<4x8x8xbf16>, vector<4x8x8xf32> -> vector<4x8x8xf32>
    "tpu.trace_stop"() : () -> ()
    %104 = arith.truncf %103 : vector<4x8x8xf32> to vector<4x8x8xbf16>
    "tpu.trace_start"() <{level = 10 : i32, message = "hqd,hde->hqe"}> : () -> ()
    %cst_42 = arith.constant dense<0.000000e+00> : vector<4x8x32xf32>
    %105 = tpu.matmul %104, %5, %cst_42 {dimension_numbers = #tpu.dot_dimension_numbers<[2], [1], [1], [2], [0, 0, 0, 1, 1, 2], [0], [0]>} : vector<4x8x8xbf16>, vector<4x8x32xbf16>, vector<4x8x32xf32> -> vector<4x8x32xf32>
    "tpu.trace_stop"() : () -> ()
    %cst_43 = arith.constant dense<0.000000e+00> : vector<8x32xf32>
    %106 = vector.multi_reduction <add>, %105, %cst_43 [0] : vector<4x8x32xf32> to vector<8x32xf32>
    %107 = vector.broadcast %9 : vector<1x32xf32> to vector<8x32xf32>
    %108 = arith.addf %106, %107 : vector<8x32xf32>
    %109 = arith.addf %12, %108 : vector<8x32xf32>
    %cst_44 = arith.constant dense<0.000000e+00> : vector<8xf32>
    %110 = vector.multi_reduction <add>, %109, %cst_44 [1] : vector<8x32xf32> to vector<8xf32>
    %111 = vector.shape_cast %110 : vector<8xf32> to vector<8x1xf32>
    %cst_45 = arith.constant 3.200000e+01 : f32
    %112 = vector.broadcast %cst_45 : f32 to vector<8x1xf32>
    %113 = arith.divf %111, %112 : vector<8x1xf32>
    %114 = vector.broadcast %113 : vector<8x1xf32> to vector<8x32xf32>
    %115 = arith.subf %109, %114 : vector<8x32xf32>
    %116 = vector.broadcast %113 : vector<8x1xf32> to vector<8x32xf32>
    %117 = arith.subf %109, %116 : vector<8x32xf32>
    %118 = arith.mulf %115, %117 : vector<8x32xf32>
    %cst_46 = arith.constant dense<0.000000e+00> : vector<8xf32>
    %119 = vector.multi_reduction <add>, %118, %cst_46 [1] : vector<8x32xf32> to vector<8xf32>
    %120 = vector.shape_cast %119 : vector<8xf32> to vector<8x1xf32>
    %cst_47 = arith.constant 3.200000e+01 : f32
    %121 = vector.broadcast %cst_47 : f32 to vector<8x1xf32>
    %122 = arith.divf %120, %121 : vector<8x1xf32>
    %123 = vector.broadcast %113 : vector<8x1xf32> to vector<8x32xf32>
    %124 = arith.subf %109, %123 : vector<8x32xf32>
    %cst_48 = arith.constant 9.99999974E-6 : f32
    %125 = vector.broadcast %cst_48 : f32 to vector<8x1xf32>
    %126 = arith.addf %122, %125 : vector<8x1xf32>
    %127 = math.rsqrt %126 : vector<8x1xf32>
    %128 = vector.broadcast %127 : vector<8x1xf32> to vector<8x32xf32>
    %129 = arith.mulf %124, %128 : vector<8x32xf32>
    %130 = vector.broadcast %0 : vector<1x32xf32> to vector<8x32xf32>
    %131 = arith.mulf %129, %130 : vector<8x32xf32>
    %132 = vector.broadcast %1 : vector<1x32xf32> to vector<8x32xf32>
    %133 = arith.addf %131, %132 : vector<8x32xf32>
    %c0_49 = arith.constant 0 : index
    %c0_50 = arith.constant 0 : index
    %c0_51 = arith.constant 0 : index
    %134 = vector.load %arg5[%c0_49, %c0_50, %c0_51] : memref<1x8x8xi8, #tpu.memory_space<vmem>>, vector<1x8x8xi8>
    %135 = vector.shape_cast %134 : vector<1x8x8xi8> to vector<8x8xi8>
    %136 = arith.truncf %133 : vector<8x32xf32> to vector<8x32xbf16>
    %cst_52 = arith.constant dense<0.000000e+00> : vector<8x32xf32>
    %137 = tpu.matmul %136, %2, %cst_52 {dimension_numbers = #tpu.dot_dimension_numbers<[1], [0], [0], [1], [0, 0, 1, 1], [], []>} : vector<8x32xbf16>, vector<32x32xbf16>, vector<8x32xf32> -> vector<8x32xf32>
    %138 = vector.broadcast %6 : vector<1x32xf32> to vector<8x32xf32>
    %139 = arith.addf %137, %138 : vector<8x32xf32>
    %cst_53 = arith.constant dense<0.000000e+00> : vector<8x32xf32>
    %140 = tpu.matmul %38, %3, %cst_53 {dimension_numbers = #tpu.dot_dimension_numbers<[1], [0], [0], [1], [0, 0, 1, 1], [], []>} : vector<8x32xbf16>, vector<32x32xbf16>, vector<8x32xf32> -> vector<8x32xf32>
    %141 = vector.broadcast %7 : vector<1x32xf32> to vector<8x32xf32>
    %142 = arith.addf %140, %141 : vector<8x32xf32>
    %cst_54 = arith.constant dense<0.000000e+00> : vector<8x32xf32>
    %143 = tpu.matmul %38, %4, %cst_54 {dimension_numbers = #tpu.dot_dimension_numbers<[1], [0], [0], [1], [0, 0, 1, 1], [], []>} : vector<8x32xbf16>, vector<32x32xbf16>, vector<8x32xf32> -> vector<8x32xf32>
    %144 = vector.broadcast %8 : vector<1x32xf32> to vector<8x32xf32>
    %145 = arith.addf %143, %144 : vector<8x32xf32>
    %cst_55 = arith.constant 0.353553385 : f32
    %146 = vector.broadcast %cst_55 : f32 to vector<8x32xf32>
    %147 = arith.mulf %139, %146 : vector<8x32xf32>
    %148 = vector.extract_strided_slice %147 {offsets = [0, 0], sizes = [8, 8], strides = [1, 1]} : vector<8x32xf32> to vector<8x8xf32>
    %149 = vector.extract_strided_slice %147 {offsets = [0, 8], sizes = [8, 8], strides = [1, 1]} : vector<8x32xf32> to vector<8x8xf32>
    %150 = vector.extract_strided_slice %147 {offsets = [0, 16], sizes = [8, 8], strides = [1, 1]} : vector<8x32xf32> to vector<8x8xf32>
    %151 = vector.extract_strided_slice %147 {offsets = [0, 24], sizes = [8, 8], strides = [1, 1]} : vector<8x32xf32> to vector<8x8xf32>
    %152 = vector.shape_cast %148 : vector<8x8xf32> to vector<1x8x8xf32>
    %153 = vector.shape_cast %149 : vector<8x8xf32> to vector<1x8x8xf32>
    %154 = vector.shape_cast %150 : vector<8x8xf32> to vector<1x8x8xf32>
    %155 = vector.shape_cast %151 : vector<8x8xf32> to vector<1x8x8xf32>
    %156 = tpu.concatenate %152, %153, %154, %155 in 0 : vector<1x8x8xf32>, vector<1x8x8xf32>, vector<1x8x8xf32>, vector<1x8x8xf32> -> vector<4x8x8xf32>
    %157 = arith.truncf %156 : vector<4x8x8xf32> to vector<4x8x8xbf16>
    %158 = vector.extract_strided_slice %142 {offsets = [0, 0], sizes = [8, 8], strides = [1, 1]} : vector<8x32xf32> to vector<8x8xf32>
    %159 = vector.extract_strided_slice %142 {offsets = [0, 8], sizes = [8, 8], strides = [1, 1]} : vector<8x32xf32> to vector<8x8xf32>
    %160 = vector.extract_strided_slice %142 {offsets = [0, 16], sizes = [8, 8], strides = [1, 1]} : vector<8x32xf32> to vector<8x8xf32>
    %161 = vector.extract_strided_slice %142 {offsets = [0, 24], sizes = [8, 8], strides = [1, 1]} : vector<8x32xf32> to vector<8x8xf32>
    %162 = vector.shape_cast %158 : vector<8x8xf32> to vector<1x8x8xf32>
    %163 = vector.shape_cast %159 : vector<8x8xf32> to vector<1x8x8xf32>
    %164 = vector.shape_cast %160 : vector<8x8xf32> to vector<1x8x8xf32>
    %165 = vector.shape_cast %161 : vector<8x8xf32> to vector<1x8x8xf32>
    %166 = tpu.concatenate %162, %163, %164, %165 in 0 : vector<1x8x8xf32>, vector<1x8x8xf32>, vector<1x8x8xf32>, vector<1x8x8xf32> -> vector<4x8x8xf32>
    %167 = arith.truncf %166 : vector<4x8x8xf32> to vector<4x8x8xbf16>
    %168 = vector.extract_strided_slice %145 {offsets = [0, 0], sizes = [8, 8], strides = [1, 1]} : vector<8x32xf32> to vector<8x8xf32>
    %169 = vector.extract_strided_slice %145 {offsets = [0, 8], sizes = [8, 8], strides = [1, 1]} : vector<8x32xf32> to vector<8x8xf32>
    %170 = vector.extract_strided_slice %145 {offsets = [0, 16], sizes = [8, 8], strides = [1, 1]} : vector<8x32xf32> to vector<8x8xf32>
    %171 = vector.extract_strided_slice %145 {offsets = [0, 24], sizes = [8, 8], strides = [1, 1]} : vector<8x32xf32> to vector<8x8xf32>
    %172 = vector.shape_cast %168 : vector<8x8xf32> to vector<1x8x8xf32>
    %173 = vector.shape_cast %169 : vector<8x8xf32> to vector<1x8x8xf32>
    %174 = vector.shape_cast %170 : vector<8x8xf32> to vector<1x8x8xf32>
    %175 = vector.shape_cast %171 : vector<8x8xf32> to vector<1x8x8xf32>
    %176 = tpu.concatenate %172, %173, %174, %175 in 0 : vector<1x8x8xf32>, vector<1x8x8xf32>, vector<1x8x8xf32>, vector<1x8x8xf32> -> vector<4x8x8xf32>
    %177 = arith.truncf %176 : vector<4x8x8xf32> to vector<4x8x8xbf16>
    "tpu.trace_start"() <{level = 10 : i32, message = "hqd,hkd->hqk"}> : () -> ()
    %cst_56 = arith.constant dense<0.000000e+00> : vector<4x8x8xf32>
    %178 = tpu.matmul %157, %167, %cst_56 {dimension_numbers = #tpu.dot_dimension_numbers<[2], [2], [1], [1], [0, 0, 0, 1, 1, 1], [0], [0]>} : vector<4x8x8xbf16>, vector<4x8x8xbf16>, vector<4x8x8xf32> -> vector<4x8x8xf32>
    "tpu.trace_stop"() : () -> ()
    %179 = vector.shape_cast %135 : vector<8x8xi8> to vector<1x8x8xi8>
    %c0_i8_57 = arith.constant 0 : i8
    %180 = vector.broadcast %c0_i8_57 : i8 to vector<1x8x8xi8>
    %181 = arith.cmpi ne, %179, %180 : vector<1x8x8xi8>
    %cst_58 = arith.constant -1.000000e+10 : f32
    %182 = vector.shape_cast %181 : vector<1x8x8xi1> to vector<1x8x8xi1>
    %183 = vector.broadcast %182 : vector<1x8x8xi1> to vector<4x8x8xi1>
    %184 = vector.broadcast %cst_58 : f32 to vector<4x8x8xf32>
    %185 = arith.select %183, %184, %178 : vector<4x8x8xi1>, vector<4x8x8xf32>
    %cst_59 = arith.constant dense<0xFF800000> : vector<4x8xf32>
    %186 = vector.multi_reduction <maximumf>, %185, %cst_59 [2] : vector<4x8x8xf32> to vector<4x8xf32>
    %187 = vector.shape_cast %186 : vector<4x8xf32> to vector<4x8x1xf32>
    %188 = vector.broadcast %187 : vector<4x8x1xf32> to vector<4x8x8xf32>
    %189 = arith.subf %185, %188 : vector<4x8x8xf32>
    %190 = math.exp %189 : vector<4x8x8xf32>
    %cst_60 = arith.constant dense<0.000000e+00> : vector<4x8xf32>
    %191 = vector.multi_reduction <add>, %190, %cst_60 [2] : vector<4x8x8xf32> to vector<4x8xf32>
    %192 = vector.shape_cast %191 : vector<4x8xf32> to vector<4x8x1xf32>
    %193 = tpu.reciprocal %192 {approx = true} : vector<4x8x1xf32> -> vector<4x8x1xf32>
    %194 = vector.broadcast %193 : vector<4x8x1xf32> to vector<4x8x8xf32>
    %195 = arith.mulf %190, %194 : vector<4x8x8xf32>
    %196 = arith.truncf %195 : vector<4x8x8xf32> to vector<4x8x8xbf16>
    "tpu.trace_start"() <{level = 10 : i32, message = "hqk,hkd->hqd"}> : () -> ()
    %cst_61 = arith.constant dense<0.000000e+00> : vector<4x8x8xf32>
    %197 = tpu.matmul %196, %177, %cst_61 {dimension_numbers = #tpu.dot_dimension_numbers<[2], [1], [1], [2], [0, 0, 0, 1, 1, 2], [0], [0]>} : vector<4x8x8xbf16>, vector<4x8x8xbf16>, vector<4x8x8xf32> -> vector<4x8x8xf32>
    "tpu.trace_stop"() : () -> ()
    %198 = arith.truncf %197 : vector<4x8x8xf32> to vector<4x8x8xbf16>
    "tpu.trace_start"() <{level = 10 : i32, message = "hqd,hde->hqe"}> : () -> ()
    %cst_62 = arith.constant dense<0.000000e+00> : vector<4x8x32xf32>
    %199 = tpu.matmul %198, %5, %cst_62 {dimension_numbers = #tpu.dot_dimension_numbers<[2], [1], [1], [2], [0, 0, 0, 1, 1, 2], [0], [0]>} : vector<4x8x8xbf16>, vector<4x8x32xbf16>, vector<4x8x32xf32> -> vector<4x8x32xf32>
    "tpu.trace_stop"() : () -> ()
    %cst_63 = arith.constant dense<0.000000e+00> : vector<8x32xf32>
    %200 = vector.multi_reduction <add>, %199, %cst_63 [0] : vector<4x8x32xf32> to vector<8x32xf32>
    %201 = vector.broadcast %9 : vector<1x32xf32> to vector<8x32xf32>
    %202 = arith.addf %200, %201 : vector<8x32xf32>
    %203 = arith.addf %109, %202 : vector<8x32xf32>
    %cst_64 = arith.constant dense<0.000000e+00> : vector<8xf32>
    %204 = vector.multi_reduction <add>, %203, %cst_64 [1] : vector<8x32xf32> to vector<8xf32>
    %205 = vector.shape_cast %204 : vector<8xf32> to vector<8x1xf32>
    %cst_65 = arith.constant 3.200000e+01 : f32
    %206 = vector.broadcast %cst_65 : f32 to vector<8x1xf32>
    %207 = arith.divf %205, %206 : vector<8x1xf32>
    %208 = vector.broadcast %207 : vector<8x1xf32> to vector<8x32xf32>
    %209 = arith.subf %203, %208 : vector<8x32xf32>
    %210 = vector.broadcast %207 : vector<8x1xf32> to vector<8x32xf32>
    %211 = arith.subf %203, %210 : vector<8x32xf32>
    %212 = arith.mulf %209, %211 : vector<8x32xf32>
    %cst_66 = arith.constant dense<0.000000e+00> : vector<8xf32>
    %213 = vector.multi_reduction <add>, %212, %cst_66 [1] : vector<8x32xf32> to vector<8xf32>
    %214 = vector.shape_cast %213 : vector<8xf32> to vector<8x1xf32>
    %cst_67 = arith.constant 3.200000e+01 : f32
    %215 = vector.broadcast %cst_67 : f32 to vector<8x1xf32>
    %216 = arith.divf %214, %215 : vector<8x1xf32>
    %217 = vector.broadcast %207 : vector<8x1xf32> to vector<8x32xf32>
    %218 = arith.subf %203, %217 : vector<8x32xf32>
    %cst_68 = arith.constant 9.99999974E-6 : f32
    %219 = vector.broadcast %cst_68 : f32 to vector<8x1xf32>
    %220 = arith.addf %216, %219 : vector<8x1xf32>
    %221 = math.rsqrt %220 : vector<8x1xf32>
    %222 = vector.broadcast %221 : vector<8x1xf32> to vector<8x32xf32>
    %223 = arith.mulf %218, %222 : vector<8x32xf32>
    %224 = vector.broadcast %0 : vector<1x32xf32> to vector<8x32xf32>
    %225 = arith.mulf %223, %224 : vector<8x32xf32>
    %226 = vector.broadcast %1 : vector<1x32xf32> to vector<8x32xf32>
    %227 = arith.addf %225, %226 : vector<8x32xf32>
    %228 = arith.truncf %227 : vector<8x32xf32> to vector<8x32xbf16>
    %c0_69 = arith.constant 0 : index
    %c0_70 = arith.constant 0 : index
    %229 = vector.load %arg16[%c0_69, %c0_70] : memref<32x64xbf16, #tpu.memory_space<vmem>>, vector<32x64xbf16>
    %cst_71 = arith.constant dense<0.000000e+00> : vector<8x64xf32>
    %230 = tpu.matmul %228, %229, %cst_71 {dimension_numbers = #tpu.dot_dimension_numbers<[1], [0], [0], [1], [0, 0, 1, 1], [], []>} : vector<8x32xbf16>, vector<32x64xbf16>, vector<8x64xf32> -> vector<8x64xf32>
    %c0_72 = arith.constant 0 : index
    %c0_73 = arith.constant 0 : index
    %231 = vector.load %arg17[%c0_72, %c0_73] : memref<1x64xf32, #tpu.memory_space<vmem>>, vector<1x64xf32>
    %232 = vector.broadcast %231 : vector<1x64xf32> to vector<8x64xf32>
    %233 = arith.addf %230, %232 : vector<8x64xf32>
    %cst_74 = arith.constant 0.000000e+00 : f32
    %234 = vector.broadcast %cst_74 : f32 to vector<8x64xf32>
    %235 = arith.maximumf %233, %234 : vector<8x64xf32>
    %236 = arith.truncf %235 : vector<8x64xf32> to vector<8x64xbf16>
    %c0_75 = arith.constant 0 : index
    %c0_76 = arith.constant 0 : index
    %237 = vector.load %arg18[%c0_75, %c0_76] : memref<64x32xbf16, #tpu.memory_space<vmem>>, vector<64x32xbf16>
    %cst_77 = arith.constant dense<0.000000e+00> : vector<8x32xf32>
    %238 = tpu.matmul %236, %237, %cst_77 {dimension_numbers = #tpu.dot_dimension_numbers<[1], [0], [0], [1], [0, 0, 1, 1], [], []>} : vector<8x64xbf16>, vector<64x32xbf16>, vector<8x32xf32> -> vector<8x32xf32>
    %c0_78 = arith.constant 0 : index
    %c0_79 = arith.constant 0 : index
    %239 = vector.load %arg19[%c0_78, %c0_79] : memref<1x32xf32, #tpu.memory_space<vmem>>, vector<1x32xf32>
    %240 = vector.broadcast %239 : vector<1x32xf32> to vector<8x32xf32>
    %241 = arith.addf %238, %240 : vector<8x32xf32>
    %242 = arith.addf %203, %241 : vector<8x32xf32>
    %243 = arith.truncf %242 : vector<8x32xf32> to vector<8x32xbf16>
    %c0_80 = arith.constant 0 : index
    %c0_81 = arith.constant 0 : index
    %c0_82 = arith.constant 0 : index
    %244 = vector.load %arg20[%c0_80, %c0_81, %c0_82] : memref<1x8x32xbf16, #tpu.memory_space<vmem>>, vector<1x8x32xbf16>
    %245 = vector.shape_cast %244 : vector<1x8x32xbf16> to vector<8x32xbf16>
    %246 = vector.shape_cast %243 : vector<8x32xbf16> to vector<1x8x32xbf16>
    tpu.vector_store %arg20[%c0_80, %c0_81, %c0_82], %246 {strides = array<i32>} : memref<1x8x32xbf16, #tpu.memory_space<vmem>>, vector<1x8x32xbf16>,
    return
  }
  func.func @transform_0(%arg0: i32, %arg1: i32) -> (i32, i32, i32) {
    %c0_i32 = arith.constant 0 : i32
    %c0_i32_0 = arith.constant 0 : i32
    %c0_i32_1 = arith.constant 0 : i32
    return %arg0, %c0_i32, %c0_i32_0 : i32, i32, i32
  }
  func.func @transform_1(%arg0: i32, %arg1: i32) -> (i32, i32, i32) {
    %c0_i32 = arith.constant 0 : i32
    %c0_i32_0 = arith.constant 0 : i32
    %c0_i32_1 = arith.constant 0 : i32
    return %arg0, %c0_i32, %c0_i32_0 : i32, i32, i32
  }
  func.func @transform_2(%arg0: i32, %arg1: i32) -> (i32, i32, i32) {
    %c0_i32 = arith.constant 0 : i32
    %c0_i32_0 = arith.constant 0 : i32
    return %arg0, %arg1, %c0_i32 : i32, i32, i32
  }
  func.func @transform_3(%arg0: i32, %arg1: i32) -> (i32, i32, i32) {
    %c0_i32 = arith.constant 0 : i32
    %c0_i32_0 = arith.constant 0 : i32
    return %arg0, %arg1, %c0_i32 : i32, i32, i32
  }
  func.func @transform_4(%arg0: i32, %arg1: i32) -> (i32, i32) {
    %c0_i32 = arith.constant 0 : i32
    %c0_i32_0 = arith.constant 0 : i32
    %c0_i32_1 = arith.constant 0 : i32
    return %c0_i32, %c0_i32_0 : i32, i32
  }
  func.func @transform_5(%arg0: i32, %arg1: i32) -> (i32, i32) {
    %c0_i32 = arith.constant 0 : i32
    %c0_i32_0 = arith.constant 0 : i32
    %c0_i32_1 = arith.constant 0 : i32
    return %c0_i32, %c0_i32_0 : i32, i32
  }
  func.func @transform_6(%arg0: i32, %arg1: i32) -> (i32, i32) {
    %c0_i32 = arith.constant 0 : i32
    %c0_i32_0 = arith.constant 0 : i32
    %c0_i32_1 = arith.constant 0 : i32
    return %c0_i32, %c0_i32_0 : i32, i32
  }
  func.func @transform_7(%arg0: i32, %arg1: i32) -> (i32, i32) {
    %c0_i32 = arith.constant 0 : i32
    %c0_i32_0 = arith.constant 0 : i32
    %c0_i32_1 = arith.constant 0 : i32
    return %c0_i32, %c0_i32_0 : i32, i32
  }
  func.func @transform_8(%arg0: i32, %arg1: i32) -> (i32, i32) {
    %c0_i32 = arith.constant 0 : i32
    %c0_i32_0 = arith.constant 0 : i32
    %c0_i32_1 = arith.constant 0 : i32
    return %c0_i32, %c0_i32_0 : i32, i32
  }
  func.func @transform_9(%arg0: i32, %arg1: i32) -> (i32, i32, i32) {
    %c0_i32 = arith.constant 0 : i32
    %c0_i32_0 = arith.constant 0 : i32
    %c0_i32_1 = arith.constant 0 : i32
    %c0_i32_2 = arith.constant 0 : i32
    return %c0_i32, %c0_i32_0, %c0_i32_1 : i32, i32, i32
  }
  func.func @transform_10(%arg0: i32, %arg1: i32) -> (i32, i32) {
    %c0_i32 = arith.constant 0 : i32
    %c0_i32_0 = arith.constant 0 : i32
    %c0_i32_1 = arith.constant 0 : i32
    return %c0_i32, %c0_i32_0 : i32, i32
  }
  func.func @transform_11(%arg0: i32, %arg1: i32) -> (i32, i32) {
    %c0_i32 = arith.constant 0 : i32
    %c0_i32_0 = arith.constant 0 : i32
    %c0_i32_1 = arith.constant 0 : i32
    return %c0_i32, %c0_i32_0 : i32, i32
  }
  func.func @transform_12(%arg0: i32, %arg1: i32) -> (i32, i32) {
    %c0_i32 = arith.constant 0 : i32
    %c0_i32_0 = arith.constant 0 : i32
    %c0_i32_1 = arith.constant 0 : i32
    return %c0_i32, %c0_i32_0 : i32, i32
  }
  func.func @transform_13(%arg0: i32, %arg1: i32) -> (i32, i32) {
    %c0_i32 = arith.constant 0 : i32
    %c0_i32_0 = arith.constant 0 : i32
    %c0_i32_1 = arith.constant 0 : i32
    return %c0_i32, %c0_i32_0 : i32, i32
  }
  func.func @transform_14(%arg0: i32, %arg1: i32) -> (i32, i32) {
    %c0_i32 = arith.constant 0 : i32
    %c0_i32_0 = arith.constant 0 : i32
    %c0_i32_1 = arith.constant 0 : i32
    return %c0_i32, %c0_i32_0 : i32, i32
  }
  func.func @transform_15(%arg0: i32, %arg1: i32) -> (i32, i32) {
    %c0_i32 = arith.constant 0 : i32
    %c0_i32_0 = arith.constant 0 : i32
    %c0_i32_1 = arith.constant 0 : i32
    return %c0_i32, %c0_i32_0 : i32, i32
  }
  func.func @transform_16(%arg0: i32, %arg1: i32) -> (i32, i32) {
    %c0_i32 = arith.constant 0 : i32
    %c0_i32_0 = arith.constant 0 : i32
    %c0_i32_1 = arith.constant 0 : i32
    return %c0_i32, %c0_i32_0 : i32, i32
  }
  func.func @transform_17(%arg0: i32, %arg1: i32) -> (i32, i32) {
    %c0_i32 = arith.constant 0 : i32
    %c0_i32_0 = arith.constant 0 : i32
    %c0_i32_1 = arith.constant 0 : i32
    return %c0_i32, %c0_i32_0 : i32, i32
  }
  func.func @transform_18(%arg0: i32, %arg1: i32) -> (i32, i32, i32) {
    %c0_i32 = arith.constant 0 : i32
    %c0_i32_0 = arith.constant 0 : i32
    return %arg0, %arg1, %c0_i32 : i32, i32, i32
  }
}

</mosaic_0001>

<llo_original>
// kernel: tpu_custom_call.1
$region0: #{tpu_custom_call.1}
  #allocation0 [shape = 'u32[]', space=smem, size = 0x4, offset = 0x4, fixed_abs, tag = 'smem constant byte address 0x4 - core index']
  #allocation1 [shape = 'u32[144,128]{1,0:T(1,128)}', space=vmem, size = 0x12000, scoped, tag = 'internal scratch']
  %s0 = inlined_call_operand.hbm [shape: bf16[2,8,32], index: 0, kind: input, shape index: {}]
  %s1 = inlined_call_operand.hbm [shape: bf16[2,8,32], index: 1, kind: input, shape index: {}]
  %s2 = inlined_call_operand.hbm [shape: s8[2,8,8], index: 2, kind: input, shape index: {}]
  %s3 = inlined_call_operand.vmem [shape: s8[2,8,8], index: 3, kind: input, shape index: {}]
  %s4 = inlined_call_operand.vmem [shape: f32[1,32], index: 4, kind: input, shape index: {}]
  %s5 = inlined_call_operand.vmem [shape: f32[1,32], index: 5, kind: input, shape index: {}]
  %s6 = inlined_call_operand.vmem [shape: bf16[32,32], index: 6, kind: input, shape index: {}]
  %s7 = inlined_call_operand.vmem [shape: bf16[32,32], index: 7, kind: input, shape index: {}]
  %s8 = inlined_call_operand.vmem [shape: bf16[32,32], index: 8, kind: input, shape index: {}]
  %s9 = inlined_call_operand.hbm [shape: bf16[4,8,32], index: 9, kind: input, shape index: {}]
  %s10 = inlined_call_operand.vmem [shape: f32[1,32], index: 10, kind: input, shape index: {}]
  %s11 = inlined_call_operand.vmem [shape: f32[1,32], index: 11, kind: input, shape index: {}]
  %s12 = inlined_call_operand.vmem [shape: f32[1,32], index: 12, kind: input, shape index: {}]
  %s13 = inlined_call_operand.vmem [shape: f32[1,32], index: 13, kind: input, shape index: {}]
  %s14 = inlined_call_operand.hbm [shape: bf16[32,64], index: 14, kind: input, shape index: {}]
  %s15 = inlined_call_operand.vmem [shape: f32[1,64], index: 15, kind: input, shape index: {}]
  %s16 = inlined_call_operand.vmem [shape: bf16[64,32], index: 16, kind: input, shape index: {}]
  %s17 = inlined_call_operand.vmem [shape: f32[1,32], index: 17, kind: input, shape index: {}]
  %s18 = inlined_call_operand.hbm [shape: bf16[2,8,32], index: 18, kind: output, shape index: {}]
  %s19 = sld [smem:[#allocation0]]
  $region125: #{tpu_custom_call.1} parent=0
    _
  %s21 = ssub.s32 1, %s19
  %s22 = scalar_select 0, %s21, %s19
  $region1: #{tpu_custom_call.1} parent=0
    #allocation2 [shape = 'u8[4096]{0}', space=vmem, size = 0x1000, scoped, tag = 'input window, operand 0']
    #allocation3 [shape = 's32[2]{0}', space=sflag, size = 0x8, scoped, tag = 'scoped memory for tpu_custom_call.1']
    #allocation4 [shape = 's32[2]{0}', space=sflag, size = 0x8, scoped, tag = 'scoped memory for tpu_custom_call.1']
    #allocation5 [shape = 'u8[4096]{0}', space=vmem, size = 0x1000, scoped, tag = 'input window, operand 1']
    #allocation6 [shape = 's32[2]{0}', space=sflag, size = 0x8, scoped, tag = 'scoped memory for tpu_custom_call.1']
    #allocation7 [shape = 'u8[2048]{0}', space=vmem, size = 0x800, scoped, tag = 'input window, operand 2']
    #allocation8 [shape = 'u8[8192]{0}', space=vmem, size = 0x2000, scoped, tag = 'input window, operand 9, single buffered']
    #allocation9 [shape = 's32[1]{0}', space=sflag, size = 0x4, scoped, tag = 'scoped memory for tpu_custom_call.1']
    #allocation10 [shape = 'u8[8192]{0}', space=vmem, size = 0x2000, scoped, tag = 'input window, operand 14, single buffered']
    #allocation11 [shape = 'u8[4096]{0}', space=vmem, size = 0x1000, scoped, tag = 'output window, operand 0']
    %23 = vsyncpa [#allocation3], 0
    %s24 = scalar_lea.sflag [#allocation3], 1
    %25 = vsyncpa %s24, 0
    %26 = vsyncpa [#allocation6], 0
    %s27 = scalar_lea.sflag [#allocation6], 1
    %28 = vsyncpa %s27, 0
    %29 = vsyncpa [#allocation9], 0
    %30 = vsyncpa [#allocation4], 0
    %s31 = scalar_lea.sflag [#allocation4], 1
    %32 = vsyncpa %s31, 0
    loop: start=0, step=1, limit=4
    $region2: #{tpu_custom_call.1} parent=1 // loop_pre_header
      _
    $region3: #{tpu_custom_call.1} parent=1 // loop_header
      %s34 = sphi 0, %s38
      %p35 = scmp.ge.s32.totalorder %s34, 4
      %s41 = sphi 0, %s53
      %s42 = sphi 0, %s49
      %s43 = sphi 0, %s41
      %s44 = sphi 0, %s42
      %s45 = sphi 0, %s43
      %s46 = sphi 0, %s44
      %s56 = sphi 0, %s58
      %s59 = sphi 0, %s56
      %s60 = sphi 0, %s59
      %s76 = sphi 0, %s60
      %s82 = sphi 0, %s84
      %s85 = sphi 0, %s82
      %s86 = sphi 0, %s85
      %s102 = sphi 0, %s86
      %s110 = sphi 0, %s112
      %s113 = sphi 0, %s110
      %s114 = sphi 0, %s113
      %s130 = sphi 0, %s114
      %s138 = sphi 0, %s140
      %s141 = sphi 0, %s138
      %s142 = sphi 0, %s141
      %s158 = sphi 0, %s142
      %s162 = sphi 0, %s162
      %s164 = sphi 0, %s162
      %s165 = sphi 0, %s164
      %s179 = sphi 0, %s165
      %s183 = sphi 0, %s183
      %s185 = sphi 0, %s183
      %s186 = sphi 0, %s185
      %s200 = sphi 0, %s186
      %s204 = sphi 0, %s204
      %s206 = sphi 0, %s204
      %s207 = sphi 0, %s206
      %s221 = sphi 0, %s207
      %s225 = sphi 0, %s225
      %s227 = sphi 0, %s225
      %s228 = sphi 0, %s227
      %s242 = sphi 0, %s228
      %s246 = sphi 0, %s246
      %s248 = sphi 0, %s246
      %s249 = sphi 0, %s248
      %s263 = sphi 0, %s249
      %s267 = sphi 0, %s267
      %s269 = sphi 0, %s267
      %s270 = sphi 0, %s269
      %s284 = sphi 0, %s270
      %s288 = sphi 0, %s288
      %s290 = sphi 0, %s288
      %s291 = sphi 0, %s290
      %s305 = sphi 0, %s291
      %s309 = sphi 0, %s309
      %s311 = sphi 0, %s309
      %s312 = sphi 0, %s311
      %s326 = sphi 0, %s312
      %s330 = sphi 0, %s330
      %s332 = sphi 0, %s330
      %s333 = sphi 0, %s332
      %s347 = sphi 0, %s333
      %s351 = sphi 0, %s351
      %s353 = sphi 0, %s351
      %s354 = sphi 0, %s353
      %s368 = sphi 0, %s354
      %s372 = sphi 0, %s372
      %s374 = sphi 0, %s372
      %s375 = sphi 0, %s374
      %s389 = sphi 0, %s375
      %s393 = sphi 0, %s393
      %s395 = sphi 0, %s393
      %s396 = sphi 0, %s395
      %s410 = sphi 0, %s396
      %s414 = sphi 0, %s414
      %s416 = sphi 0, %s414
      %s417 = sphi 0, %s416
      %s431 = sphi 0, %s417
      %s435 = sphi 0, %s435
      %s437 = sphi 0, %s435
      %s438 = sphi 0, %s437
      %s452 = sphi 0, %s438
      %s460 = sphi 0, %s462
      %s463 = sphi 0, %s460
      %s464 = sphi 0, %s463
      %s480 = sphi 0, %s464
    $region4: #{tpu_custom_call.1} parent=1 // loop_header_branch
      %37 = sbr.rel (%p35) target = $region8
    $region5: #{tpu_custom_call.1} parent=1 // loop_body
      %s39 = ssub.s32 %s34, 1
      %s40 = ssub.s32 %s34, 2
      %s47 = sadd.s32 1, %s42
      %p48 = scmp.ge.s32.totalorder %s47, 1
      %s49 = scalar_select %p48, 0, %s47
      %s50 = sadd.s32 1, %s41
      %s51 = scalar_select %p48, %s50, %s41
      %p52 = scmp.ge.s32.totalorder %s51, 2
      %s53 = scalar_select %p52, 0, %s51
      %s54 = ssub.s32 %s41, %s53
      %p55 = scmp.eq.s32.totalorder %s54, 0
      %s57 = sadd.s32 %s56, 1
      %s58 = scalar_select %p55, %s56, %s57
      %p61 = pneg %p55
      %p62 = scmp.eq.s32.totalorder %s34, 1
      %p63 = por %p61, %p62
      %p64 = scmp.ne.s32.totalorder %s56, %s59
      %p65 = scmp.eq.s32.totalorder %s34, 0
      %p66 = por %p64, %p65
      %p67 = scmp.ne.s32.totalorder %s56, %s59
      %p68 = scmp.eq.s32.totalorder %s39, 1
      %p69 = por %p67, %p68
      %p70 = scmp.ne.s32.totalorder %s59, %s60
      %p71 = scmp.eq.s32.totalorder %s39, 0
      %p72 = por %p70, %p71
      %p73 = scmp.ne.s32.totalorder %s59, %s60
      %p74 = scmp.eq.s32.totalorder %s40, 1
      %p75 = por %p73, %p74
      %p77 = scmp.ne.s32.totalorder %s60, %s76
      %p78 = scmp.eq.s32.totalorder %s40, 0
      %p79 = por %p77, %p78
      %s80 = ssub.s32 %s41, %s53
      %p81 = scmp.eq.s32.totalorder %s80, 0
      %s83 = sadd.s32 %s82, 1
      %s84 = scalar_select %p81, %s82, %s83
      %p87 = pneg %p81
      %p88 = scmp.eq.s32.totalorder %s34, 1
      %p89 = por %p87, %p88
      %p90 = scmp.ne.s32.totalorder %s82, %s85
      %p91 = scmp.eq.s32.totalorder %s34, 0
      %p92 = por %p90, %p91
      %p93 = scmp.ne.s32.totalorder %s82, %s85
      %p94 = scmp.eq.s32.totalorder %s39, 1
      %p95 = por %p93, %p94
      %p96 = scmp.ne.s32.totalorder %s85, %s86
      %p97 = scmp.eq.s32.totalorder %s39, 0
      %p98 = por %p96, %p97
      %p99 = scmp.ne.s32.totalorder %s85, %s86
      %p100 = scmp.eq.s32.totalorder %s40, 1
      %p101 = por %p99, %p100
      %p103 = scmp.ne.s32.totalorder %s86, %s102
      %p104 = scmp.eq.s32.totalorder %s40, 0
      %p105 = por %p103, %p104
      %s106 = ssub.s32 %s41, %s53
      %s107 = ssub.s32 %s42, %s49
      %s108 = sor.u32 %s106, %s107
      %p109 = scmp.eq.s32.totalorder %s108, 0
      %s111 = sadd.s32 %s110, 1
      %s112 = scalar_select %p109, %s110, %s111
      %p115 = pneg %p109
      %p116 = scmp.eq.s32.totalorder %s34, 1
      %p117 = por %p115, %p116
      %p118 = scmp.ne.s32.totalorder %s110, %s113
      %p119 = scmp.eq.s32.totalorder %s34, 0
      %p120 = por %p118, %p119
      %p121 = scmp.ne.s32.totalorder %s110, %s113
      %p122 = scmp.eq.s32.totalorder %s39, 1
      %p123 = por %p121, %p122
      %p124 = scmp.ne.s32.totalorder %s113, %s114
      %p125 = scmp.eq.s32.totalorder %s39, 0
      %p126 = por %p124, %p125
      %p127 = scmp.ne.s32.totalorder %s113, %s114
      %p128 = scmp.eq.s32.totalorder %s40, 1
      %p129 = por %p127, %p128
      %p131 = scmp.ne.s32.totalorder %s114, %s130
      %p132 = scmp.eq.s32.totalorder %s40, 0
      %p133 = por %p131, %p132
      %s134 = ssub.s32 %s41, %s53
      %s135 = ssub.s32 %s42, %s49
      %s136 = sor.u32 %s134, %s135
      %p137 = scmp.eq.s32.totalorder %s136, 0
      %s139 = sadd.s32 %s138, 1
      %s140 = scalar_select %p137, %s138, %s139
      %p143 = pneg %p137
      %p144 = scmp.eq.s32.totalorder %s34, 1
      %p145 = por %p143, %p144
      %p146 = scmp.ne.s32.totalorder %s138, %s141
      %p147 = scmp.eq.s32.totalorder %s34, 0
      %p148 = por %p146, %p147
      %p149 = scmp.ne.s32.totalorder %s138, %s141
      %p150 = scmp.eq.s32.totalorder %s39, 1
      %p151 = por %p149, %p150
      %p152 = scmp.ne.s32.totalorder %s141, %s142
      %p153 = scmp.eq.s32.totalorder %s39, 0
      %p154 = por %p152, %p153
      %p155 = scmp.ne.s32.totalorder %s141, %s142
      %p156 = scmp.eq.s32.totalorder %s40, 1
      %p157 = por %p155, %p156
      %p159 = scmp.ne.s32.totalorder %s142, %s158
      %p160 = scmp.eq.s32.totalorder %s40, 0
      %p161 = por %p159, %p160
      %s163 = sadd.s32 %s162, 1
      %p166 = scmp.eq.s32.totalorder %s34, 1
      %p167 = scmp.ne.s32.totalorder %s162, %s164
      %p168 = scmp.eq.s32.totalorder %s34, 0
      %p169 = por %p167, %p168
      %p170 = scmp.ne.s32.totalorder %s162, %s164
      %p171 = scmp.eq.s32.totalorder %s39, 1
      %p172 = por %p170, %p171
      %p173 = scmp.ne.s32.totalorder %s164, %s165
      %p174 = scmp.eq.s32.totalorder %s39, 0
      %p175 = por %p173, %p174
      %p176 = scmp.ne.s32.totalorder %s164, %s165
      %p177 = scmp.eq.s32.totalorder %s40, 1
      %p178 = por %p176, %p177
      %p180 = scmp.ne.s32.totalorder %s165, %s179
      %p181 = scmp.eq.s32.totalorder %s40, 0
      %p182 = por %p180, %p181
      %s184 = sadd.s32 %s183, 1
      %p187 = scmp.eq.s32.totalorder %s34, 1
      %p188 = scmp.ne.s32.totalorder %s183, %s185
      %p189 = scmp.eq.s32.totalorder %s34, 0
      %p190 = por %p188, %p189
      %p191 = scmp.ne.s32.totalorder %s183, %s185
      %p192 = scmp.eq.s32.totalorder %s39, 1
      %p193 = por %p191, %p192
      %p194 = scmp.ne.s32.totalorder %s185, %s186
      %p195 = scmp.eq.s32.totalorder %s39, 0
      %p196 = por %p194, %p195
      %p197 = scmp.ne.s32.totalorder %s185, %s186
      %p198 = scmp.eq.s32.totalorder %s40, 1
      %p199 = por %p197, %p198
      %p201 = scmp.ne.s32.totalorder %s186, %s200
      %p202 = scmp.eq.s32.totalorder %s40, 0
      %p203 = por %p201, %p202
      %s205 = sadd.s32 %s204, 1
      %p208 = scmp.eq.s32.totalorder %s34, 1
      %p209 = scmp.ne.s32.totalorder %s204, %s206
      %p210 = scmp.eq.s32.totalorder %s34, 0
      %p211 = por %p209, %p210
      %p212 = scmp.ne.s32.totalorder %s204, %s206
      %p213 = scmp.eq.s32.totalorder %s39, 1
      %p214 = por %p212, %p213
      %p215 = scmp.ne.s32.totalorder %s206, %s207
      %p216 = scmp.eq.s32.totalorder %s39, 0
      %p217 = por %p215, %p216
      %p218 = scmp.ne.s32.totalorder %s206, %s207
      %p219 = scmp.eq.s32.totalorder %s40, 1
      %p220 = por %p218, %p219
      %p222 = scmp.ne.s32.totalorder %s207, %s221
      %p223 = scmp.eq.s32.totalorder %s40, 0
      %p224 = por %p222, %p223
      %s226 = sadd.s32 %s225, 1
      %p229 = scmp.eq.s32.totalorder %s34, 1
      %p230 = scmp.ne.s32.totalorder %s225, %s227
      %p231 = scmp.eq.s32.totalorder %s34, 0
      %p232 = por %p230, %p231
      %p233 = scmp.ne.s32.totalorder %s225, %s227
      %p234 = scmp.eq.s32.totalorder %s39, 1
      %p235 = por %p233, %p234
      %p236 = scmp.ne.s32.totalorder %s227, %s228
      %p237 = scmp.eq.s32.totalorder %s39, 0
      %p238 = por %p236, %p237
      %p239 = scmp.ne.s32.totalorder %s227, %s228
      %p240 = scmp.eq.s32.totalorder %s40, 1
      %p241 = por %p239, %p240
      %p243 = scmp.ne.s32.totalorder %s228, %s242
      %p244 = scmp.eq.s32.totalorder %s40, 0
      %p245 = por %p243, %p244
      %s247 = sadd.s32 %s246, 1
      %p250 = scmp.eq.s32.totalorder %s34, 1
      %p251 = scmp.ne.s32.totalorder %s246, %s248
      %p252 = scmp.eq.s32.totalorder %s34, 0
      %p253 = por %p251, %p252
      %p254 = scmp.ne.s32.totalorder %s246, %s248
      %p255 = scmp.eq.s32.totalorder %s39, 1
      %p256 = por %p254, %p255
      %p257 = scmp.ne.s32.totalorder %s248, %s249
      %p258 = scmp.eq.s32.totalorder %s39, 0
      %p259 = por %p257, %p258
      %p260 = scmp.ne.s32.totalorder %s248, %s249
      %p261 = scmp.eq.s32.totalorder %s40, 1
      %p262 = por %p260, %p261
      %p264 = scmp.ne.s32.totalorder %s249, %s263
      %p265 = scmp.eq.s32.totalorder %s40, 0
      %p266 = por %p264, %p265
      %s268 = sadd.s32 %s267, 1
      %p271 = scmp.eq.s32.totalorder %s34, 1
      %p272 = scmp.ne.s32.totalorder %s267, %s269
      %p273 = scmp.eq.s32.totalorder %s34, 0
      %p274 = por %p272, %p273
      %p275 = scmp.ne.s32.totalorder %s267, %s269
      %p276 = scmp.eq.s32.totalorder %s39, 1
      %p277 = por %p275, %p276
      %p278 = scmp.ne.s32.totalorder %s269, %s270
      %p279 = scmp.eq.s32.totalorder %s39, 0
      %p280 = por %p278, %p279
      %p281 = scmp.ne.s32.totalorder %s269, %s270
      %p282 = scmp.eq.s32.totalorder %s40, 1
      %p283 = por %p281, %p282
      %p285 = scmp.ne.s32.totalorder %s270, %s284
      %p286 = scmp.eq.s32.totalorder %s40, 0
      %p287 = por %p285, %p286
      %s289 = sadd.s32 %s288, 1
      %p292 = scmp.eq.s32.totalorder %s34, 1
      %p293 = scmp.ne.s32.totalorder %s288, %s290
      %p294 = scmp.eq.s32.totalorder %s34, 0
      %p295 = por %p293, %p294
      %p296 = scmp.ne.s32.totalorder %s288, %s290
      %p297 = scmp.eq.s32.totalorder %s39, 1
      %p298 = por %p296, %p297
      %p299 = scmp.ne.s32.totalorder %s290, %s291
      %p300 = scmp.eq.s32.totalorder %s39, 0
      %p301 = por %p299, %p300
      %p302 = scmp.ne.s32.totalorder %s290, %s291
      %p303 = scmp.eq.s32.totalorder %s40, 1
      %p304 = por %p302, %p303
      %p306 = scmp.ne.s32.totalorder %s291, %s305
      %p307 = scmp.eq.s32.totalorder %s40, 0
      %p308 = por %p306, %p307
      %s310 = sadd.s32 %s309, 1
      %p313 = scmp.eq.s32.totalorder %s34, 1
      %p314 = scmp.ne.s32.totalorder %s309, %s311
      %p315 = scmp.eq.s32.totalorder %s34, 0
      %p316 = por %p314, %p315
      %p317 = scmp.ne.s32.totalorder %s309, %s311
      %p318 = scmp.eq.s32.totalorder %s39, 1
      %p319 = por %p317, %p318
      %p320 = scmp.ne.s32.totalorder %s311, %s312
      %p321 = scmp.eq.s32.totalorder %s39, 0
      %p322 = por %p320, %p321
      %p323 = scmp.ne.s32.totalorder %s311, %s312
      %p324 = scmp.eq.s32.totalorder %s40, 1
      %p325 = por %p323, %p324
      %p327 = scmp.ne.s32.totalorder %s312, %s326
      %p328 = scmp.eq.s32.totalorder %s40, 0
      %p329 = por %p327, %p328
      %s331 = sadd.s32 %s330, 1
      %p334 = scmp.eq.s32.totalorder %s34, 1
      %p335 = scmp.ne.s32.totalorder %s330, %s332
      %p336 = scmp.eq.s32.totalorder %s34, 0
      %p337 = por %p335, %p336
      %p338 = scmp.ne.s32.totalorder %s330, %s332
      %p339 = scmp.eq.s32.totalorder %s39, 1
      %p340 = por %p338, %p339
      %p341 = scmp.ne.s32.totalorder %s332, %s333
      %p342 = scmp.eq.s32.totalorder %s39, 0
      %p343 = por %p341, %p342
      %p344 = scmp.ne.s32.totalorder %s332, %s333
      %p345 = scmp.eq.s32.totalorder %s40, 1
      %p346 = por %p344, %p345
      %p348 = scmp.ne.s32.totalorder %s333, %s347
      %p349 = scmp.eq.s32.totalorder %s40, 0
      %p350 = por %p348, %p349
      %s352 = sadd.s32 %s351, 1
      %p355 = scmp.eq.s32.totalorder %s34, 1
      %p356 = scmp.ne.s32.totalorder %s351, %s353
      %p357 = scmp.eq.s32.totalorder %s34, 0
      %p358 = por %p356, %p357
      %p359 = scmp.ne.s32.totalorder %s351, %s353
      %p360 = scmp.eq.s32.totalorder %s39, 1
      %p361 = por %p359, %p360
      %p362 = scmp.ne.s32.totalorder %s353, %s354
      %p363 = scmp.eq.s32.totalorder %s39, 0
      %p364 = por %p362, %p363
      %p365 = scmp.ne.s32.totalorder %s353, %s354
      %p366 = scmp.eq.s32.totalorder %s40, 1
      %p367 = por %p365, %p366
      %p369 = scmp.ne.s32.totalorder %s354, %s368
      %p370 = scmp.eq.s32.totalorder %s40, 0
      %p371 = por %p369, %p370
      %s373 = sadd.s32 %s372, 1
      %p376 = scmp.eq.s32.totalorder %s34, 1
      %p377 = scmp.ne.s32.totalorder %s372, %s374
      %p378 = scmp.eq.s32.totalorder %s34, 0
      %p379 = por %p377, %p378
      %p380 = scmp.ne.s32.totalorder %s372, %s374
      %p381 = scmp.eq.s32.totalorder %s39, 1
      %p382 = por %p380, %p381
      %p383 = scmp.ne.s32.totalorder %s374, %s375
      %p384 = scmp.eq.s32.totalorder %s39, 0
      %p385 = por %p383, %p384
      %p386 = scmp.ne.s32.totalorder %s374, %s375
      %p387 = scmp.eq.s32.totalorder %s40, 1
      %p388 = por %p386, %p387
      %p390 = scmp.ne.s32.totalorder %s375, %s389
      %p391 = scmp.eq.s32.totalorder %s40, 0
      %p392 = por %p390, %p391
      %s394 = sadd.s32 %s393, 1
      %p397 = scmp.eq.s32.totalorder %s34, 1
      %p398 = scmp.ne.s32.totalorder %s393, %s395
      %p399 = scmp.eq.s32.totalorder %s34, 0
      %p400 = por %p398, %p399
      %p401 = scmp.ne.s32.totalorder %s393, %s395
      %p402 = scmp.eq.s32.totalorder %s39, 1
      %p403 = por %p401, %p402
      %p404 = scmp.ne.s32.totalorder %s395, %s396
      %p405 = scmp.eq.s32.totalorder %s39, 0
      %p406 = por %p404, %p405
      %p407 = scmp.ne.s32.totalorder %s395, %s396
      %p408 = scmp.eq.s32.totalorder %s40, 1
      %p409 = por %p407, %p408
      %p411 = scmp.ne.s32.totalorder %s396, %s410
      %p412 = scmp.eq.s32.totalorder %s40, 0
      %p413 = por %p411, %p412
      %s415 = sadd.s32 %s414, 1
      %p418 = scmp.eq.s32.totalorder %s34, 1
      %p419 = scmp.ne.s32.totalorder %s414, %s416
      %p420 = scmp.eq.s32.totalorder %s34, 0
      %p421 = por %p419, %p420
      %p422 = scmp.ne.s32.totalorder %s414, %s416
      %p423 = scmp.eq.s32.totalorder %s39, 1
      %p424 = por %p422, %p423
      %p425 = scmp.ne.s32.totalorder %s416, %s417
      %p426 = scmp.eq.s32.totalorder %s39, 0
      %p427 = por %p425, %p426
      %p428 = scmp.ne.s32.totalorder %s416, %s417
      %p429 = scmp.eq.s32.totalorder %s40, 1
      %p430 = por %p428, %p429
      %p432 = scmp.ne.s32.totalorder %s417, %s431
      %p433 = scmp.eq.s32.totalorder %s40, 0
      %p434 = por %p432, %p433
      %s436 = sadd.s32 %s435, 1
      %p439 = scmp.eq.s32.totalorder %s34, 1
      %p440 = scmp.ne.s32.totalorder %s435, %s437
      %p441 = scmp.eq.s32.totalorder %s34, 0
      %p442 = por %p440, %p441
      %p443 = scmp.ne.s32.totalorder %s435, %s437
      %p444 = scmp.eq.s32.totalorder %s39, 1
      %p445 = por %p443, %p444
      %p446 = scmp.ne.s32.totalorder %s437, %s438
      %p447 = scmp.eq.s32.totalorder %s39, 0
      %p448 = por %p446, %p447
      %p449 = scmp.ne.s32.totalorder %s437, %s438
      %p450 = scmp.eq.s32.totalorder %s40, 1
      %p451 = por %p449, %p450
      %p453 = scmp.ne.s32.totalorder %s438, %s452
      %p454 = scmp.eq.s32.totalorder %s40, 0
      %p455 = por %p453, %p454
      %s456 = ssub.s32 %s41, %s53
      %s457 = ssub.s32 %s42, %s49
      %s458 = sor.u32 %s456, %s457
      %p459 = scmp.eq.s32.totalorder %s458, 0
      %s461 = sadd.s32 %s460, 1
      %s462 = scalar_select %p459, %s460, %s461
      %p465 = pneg %p459
      %p466 = scmp.eq.s32.totalorder %s34, 1
      %p467 = por %p465, %p466
      %p468 = scmp.ne.s32.totalorder %s460, %s463
      %p469 = scmp.eq.s32.totalorder %s34, 0
      %p470 = por %p468, %p469
      %p471 = scmp.ne.s32.totalorder %s460, %s463
      %p472 = scmp.eq.s32.totalorder %s39, 1
      %p473 = por %p471, %p472
      %p474 = scmp.ne.s32.totalorder %s463, %s464
      %p475 = scmp.eq.s32.totalorder %s39, 0
      %p476 = por %p474, %p475
      %p477 = scmp.ne.s32.totalorder %s463, %s464
      %p478 = scmp.eq.s32.totalorder %s40, 1
      %p479 = por %p477, %p478
      %p481 = scmp.ne.s32.totalorder %s464, %s480
      %p482 = scmp.eq.s32.totalorder %s40, 0
      %p483 = por %p481, %p482
      %p484 = scmp.le.s32.totalorder 1, %s34
      %p485 = scmp.lt.s32.totalorder %s34, 3
      %p486 = pnand %p484, %p485
      %p487 = pneg %p486
      // Predicated region
      $region9: #{tpu_custom_call.1} parent=5 // pred_check
        _
      $region10: #{tpu_custom_call.1} parent=5 // pred_check_branch
        %489 = sbr.rel (%p486) target = $region12
      $region11: #{tpu_custom_call.1} parent=5 // pred_region
        %s490 = ssub.s32 %s34, 1
        // Predicated region
        $region13: #{tpu_custom_call.1} parent=11 // pred_check
          %p491 = pneg %p175
        $region14: #{tpu_custom_call.1} parent=11 // pred_check_branch
          %493 = sbr.rel (%p491) target = $region16
        $region15: #{tpu_custom_call.1} parent=11 // pred_region
          _
        $region16: #{tpu_custom_call.1} parent=11 // pred_fallthru
          _
        // Predicated region
        $region17: #{tpu_custom_call.1} parent=11 // pred_check
          %p494 = pneg %p196
        $region18: #{tpu_custom_call.1} parent=11 // pred_check_branch
          %496 = sbr.rel (%p494) target = $region20
        $region19: #{tpu_custom_call.1} parent=11 // pred_region
          _
        $region20: #{tpu_custom_call.1} parent=11 // pred_fallthru
          _
        // Predicated region
        $region21: #{tpu_custom_call.1} parent=11 // pred_check
          %p497 = pneg %p217
        $region22: #{tpu_custom_call.1} parent=11 // pred_check_branch
          %499 = sbr.rel (%p497) target = $region24
        $region23: #{tpu_custom_call.1} parent=11 // pred_region
          _
        $region24: #{tpu_custom_call.1} parent=11 // pred_fallthru
          _
        // Predicated region
        $region25: #{tpu_custom_call.1} parent=11 // pred_check
          %p500 = pneg %p238
        $region26: #{tpu_custom_call.1} parent=11 // pred_check_branch
          %502 = sbr.rel (%p500) target = $region28
        $region27: #{tpu_custom_call.1} parent=11 // pred_region
          _
        $region28: #{tpu_custom_call.1} parent=11 // pred_fallthru
          _
        // Predicated region
        $region29: #{tpu_custom_call.1} parent=11 // pred_check
          %p503 = pneg %p259
        $region30: #{tpu_custom_call.1} parent=11 // pred_check_branch
          %505 = sbr.rel (%p503) target = $region32
        $region31: #{tpu_custom_call.1} parent=11 // pred_region
          _
        $region32: #{tpu_custom_call.1} parent=11 // pred_fallthru
          _
        // Predicated region
        $region33: #{tpu_custom_call.1} parent=11 // pred_check
          %p506 = pneg %p280
        $region34: #{tpu_custom_call.1} parent=11 // pred_check_branch
          %508 = sbr.rel (%p506) target = $region36
        $region35: #{tpu_custom_call.1} parent=11 // pred_region
          %s510 = ssub.s32 256, 256
          %511 = vsyncadd [#allocation9], %s510
          %s512 = sshll.u32 [#allocation8], 4
          %s513 = int_to_ptr.vmem [resolvable:$true] %s512
          %518 = dma.hbm_to_vmem [thread:$0]  %s9, 256, %s513, [#allocation9], 64, 64, 4
        $region36: #{tpu_custom_call.1} parent=11 // pred_fallthru
          _
        // Predicated region
        $region37: #{tpu_custom_call.1} parent=11 // pred_check
          %p519 = pneg %p301
        $region38: #{tpu_custom_call.1} parent=11 // pred_check_branch
          %521 = sbr.rel (%p519) target = $region40
        $region39: #{tpu_custom_call.1} parent=11 // pred_region
          _
        $region40: #{tpu_custom_call.1} parent=11 // pred_fallthru
          _
        // Predicated region
        $region41: #{tpu_custom_call.1} parent=11 // pred_check
          %p522 = pneg %p322
        $region42: #{tpu_custom_call.1} parent=11 // pred_check_branch
          %524 = sbr.rel (%p522) target = $region44
        $region43: #{tpu_custom_call.1} parent=11 // pred_region
          _
        $region44: #{tpu_custom_call.1} parent=11 // pred_fallthru
          _
        // Predicated region
        $region45: #{tpu_custom_call.1} parent=11 // pred_check
          %p525 = pneg %p343
        $region46: #{tpu_custom_call.1} parent=11 // pred_check_branch
          %527 = sbr.rel (%p525) target = $region48
        $region47: #{tpu_custom_call.1} parent=11 // pred_region
          _
        $region48: #{tpu_custom_call.1} parent=11 // pred_fallthru
          _
        // Predicated region
        $region49: #{tpu_custom_call.1} parent=11 // pred_check
          %p528 = pneg %p364
        $region50: #{tpu_custom_call.1} parent=11 // pred_check_branch
          %530 = sbr.rel (%p528) target = $region52
        $region51: #{tpu_custom_call.1} parent=11 // pred_region
          _
        $region52: #{tpu_custom_call.1} parent=11 // pred_fallthru
          _
        // Predicated region
        $region53: #{tpu_custom_call.1} parent=11 // pred_check
          %p531 = pneg %p385
        $region54: #{tpu_custom_call.1} parent=11 // pred_check_branch
          %533 = sbr.rel (%p531) target = $region56
        $region55: #{tpu_custom_call.1} parent=11 // pred_region
          %s535 = ssub.s32 256, 256
          %536 = vsyncadd [#allocation9], %s535
          %s537 = sshll.u32 [#allocation10], 4
          %s538 = int_to_ptr.vmem [resolvable:$true] %s537
          %543 = dma.hbm_to_vmem [thread:$0]  %s14, 256, %s538, [#allocation9], 64, 64, 4
        $region56: #{tpu_custom_call.1} parent=11 // pred_fallthru
          _
        // Predicated region
        $region57: #{tpu_custom_call.1} parent=11 // pred_check
          %p544 = pneg %p406
        $region58: #{tpu_custom_call.1} parent=11 // pred_check_branch
          %546 = sbr.rel (%p544) target = $region60
        $region59: #{tpu_custom_call.1} parent=11 // pred_region
          _
        $region60: #{tpu_custom_call.1} parent=11 // pred_fallthru
          _
        // Predicated region
        $region61: #{tpu_custom_call.1} parent=11 // pred_check
          %p547 = pneg %p427
        $region62: #{tpu_custom_call.1} parent=11 // pred_check_branch
          %549 = sbr.rel (%p547) target = $region64
        $region63: #{tpu_custom_call.1} parent=11 // pred_region
          _
        $region64: #{tpu_custom_call.1} parent=11 // pred_fallthru
          _
        // Predicated region
        $region65: #{tpu_custom_call.1} parent=11 // pred_check
          %p550 = pneg %p448
        $region66: #{tpu_custom_call.1} parent=11 // pred_check_branch
          %552 = sbr.rel (%p550) target = $region68
        $region67: #{tpu_custom_call.1} parent=11 // pred_region
          _
        $region68: #{tpu_custom_call.1} parent=11 // pred_fallthru
          _
      $region12: #{tpu_custom_call.1} parent=5 // pred_fallthru
        _
      %p553 = scmp.lt.s32.totalorder %s34, 2
      // Predicated region
      $region69: #{tpu_custom_call.1} parent=5 // pred_check
        %p554 = pneg %p553
      $region70: #{tpu_custom_call.1} parent=5 // pred_check_branch
        %556 = sbr.rel (%p554) target = $region72
      $region71: #{tpu_custom_call.1} parent=5 // pred_region
        // Predicated region
        $region73: #{tpu_custom_call.1} parent=71 // pred_check
          %p557 = pneg %p66
        $region74: #{tpu_custom_call.1} parent=71 // pred_check_branch
          %559 = sbr.rel (%p557) target = $region76
        $region75: #{tpu_custom_call.1} parent=71 // pred_region
          %s560 = sand.u32 %s56, 1
          %s561 = scalar_lea.sflag [#allocation3], %s560
          %s562 = sand.u32 %s56, 1
          %s563 = smul.addr %s562, 4
          %s564 = scalar_lea.vmem [#allocation2], %s563
          %s566 = ssub.s32 64, 64
          %567 = vsyncadd %s561, %s566
          %s568 = smul.addr %s41, 64
          %s569 = scalar_lea.hbm %s0, %s568
          %s571 = sshll.u32 %s564, 4
          %s572 = int_to_ptr.vmem [resolvable:$true] %s571
          %574 = dma.hbm_to_vmem [thread:$0]  %s569, 64, %s572, %s561
        $region76: #{tpu_custom_call.1} parent=71 // pred_fallthru
          _
        // Predicated region
        $region77: #{tpu_custom_call.1} parent=71 // pred_check
          %p575 = pneg %p92
        $region78: #{tpu_custom_call.1} parent=71 // pred_check_branch
          %577 = sbr.rel (%p575) target = $region80
        $region79: #{tpu_custom_call.1} parent=71 // pred_region
          %s578 = sand.u32 %s34, 1
          %s579 = scalar_lea.sflag [#allocation6], %s578
          %s580 = sand.u32 %s82, 1
          %s581 = smul.addr %s580, 4
          %s582 = scalar_lea.vmem [#allocation5], %s581
          %s584 = ssub.s32 64, 64
          %585 = vsyncadd %s579, %s584
          %s586 = smul.addr %s41, 64
          %s587 = scalar_lea.hbm %s1, %s586
          %s589 = sshll.u32 %s582, 4
          %s590 = int_to_ptr.vmem [resolvable:$true] %s589
          %592 = dma.hbm_to_vmem [thread:$0]  %s587, 64, %s590, %s579
        $region80: #{tpu_custom_call.1} parent=71 // pred_fallthru
          _
        // Predicated region
        $region81: #{tpu_custom_call.1} parent=71 // pred_check
          %p593 = pneg %p120
        $region82: #{tpu_custom_call.1} parent=71 // pred_check_branch
          %595 = sbr.rel (%p593) target = $region84
        $region83: #{tpu_custom_call.1} parent=71 // pred_region
          %s596 = sand.u32 %s34, 1
          %s597 = scalar_lea.sflag [#allocation6], %s596
          %s598 = sand.u32 %s110, 1
          %s599 = smul.addr %s598, 2
          %s600 = scalar_lea.vmem [#allocation7], %s599
          %s602 = ssub.s32 32, 32
          %603 = vsyncadd %s597, %s602
          %s604 = sadd.s32 %s42, %s41
          %s605 = smul.addr %s604, 32
          %s606 = scalar_lea.hbm %s2, %s605
          %s608 = sshll.u32 %s600, 4
          %s609 = int_to_ptr.vmem [resolvable:$true] %s608
          %611 = dma.hbm_to_vmem [thread:$0]  %s606, 32, %s609, %s597
        $region84: #{tpu_custom_call.1} parent=71 // pred_fallthru
          _
        // Predicated region
        $region85: #{tpu_custom_call.1} parent=71 // pred_check
          %p612 = pneg %p148
        $region86: #{tpu_custom_call.1} parent=71 // pred_check_branch
          %614 = sbr.rel (%p612) target = $region88
        $region87: #{tpu_custom_call.1} parent=71 // pred_region
          %p615 = scmp.lt.s32.totalorder %s41, 1
          %s616 = scalar_select %p615, %s41, 1
          %p617 = scmp.lt.s32.totalorder %s42, 0
          %s618 = scalar_select %p617, %s42, 0
          %s619 = sadd.s32 %s618, %s616
          %s620 = smul.addr %s619, 2
          %s621 = scalar_lea.vmem %s3, %s620
        $region88: #{tpu_custom_call.1} parent=71 // pred_fallthru
          _
      $region72: #{tpu_custom_call.1} parent=5 // pred_fallthru
        _
      %p622 = scmp.le.s32.totalorder 1, %s34
      %p623 = scmp.lt.s32.totalorder %s34, 3
      %p624 = pnand %p622, %p623
      %p625 = pneg %p624
      // Predicated region
      $region89: #{tpu_custom_call.1} parent=5 // pred_check
        _
      $region90: #{tpu_custom_call.1} parent=5 // pred_check_branch
        %627 = sbr.rel (%p624) target = $region92
      $region91: #{tpu_custom_call.1} parent=5 // pred_region
        %s628 = ssub.s32 %s34, 1
        %s629 = sand.u32 %s59, 1
        %s630 = scalar_lea.sflag [#allocation3], %s629
        %s631 = sand.u32 %s59, 1
        %s632 = smul.addr %s631, 4
        %s633 = scalar_lea.vmem [#allocation2], %s632
        // Predicated region
        $region93: #{tpu_custom_call.1} parent=91 // pred_check
          %p634 = pneg %p72
        $region94: #{tpu_custom_call.1} parent=91 // pred_check_branch
          %636 = sbr.rel (%p634) target = $region96
        $region95: #{tpu_custom_call.1} parent=91 // pred_region
          %637 = dma.done %s630, 64
        $region96: #{tpu_custom_call.1} parent=91 // pred_fallthru
          _
        %s638 = sand.u32 %s39, 1
        %s639 = scalar_lea.sflag [#allocation6], %s638
        %s640 = sand.u32 %s85, 1
        %s641 = smul.addr %s640, 4
        %s642 = scalar_lea.vmem [#allocation5], %s641
        // Predicated region
        $region97: #{tpu_custom_call.1} parent=91 // pred_check
          %p643 = pneg %p98
        $region98: #{tpu_custom_call.1} parent=91 // pred_check_branch
          %645 = sbr.rel (%p643) target = $region100
        $region99: #{tpu_custom_call.1} parent=91 // pred_region
          %646 = dma.done %s639, 64
        $region100: #{tpu_custom_call.1} parent=91 // pred_fallthru
          _
        %s647 = sand.u32 %s39, 1
        %s648 = scalar_lea.sflag [#allocation6], %s647
        %s649 = sand.u32 %s113, 1
        %s650 = smul.addr %s649, 2
        %s651 = scalar_lea.vmem [#allocation7], %s650
        // Predicated region
        $region101: #{tpu_custom_call.1} parent=91 // pred_check
          %p652 = pneg %p126
        $region102: #{tpu_custom_call.1} parent=91 // pred_check_branch
          %654 = sbr.rel (%p652) target = $region104
        $region103: #{tpu_custom_call.1} parent=91 // pred_region
          %655 = dma.done %s648, 32
        $region104: #{tpu_custom_call.1} parent=91 // pred_fallthru
          _
        // Predicated region
        $region105: #{tpu_custom_call.1} parent=91 // pred_check
          %p656 = pneg %p280
        $region106: #{tpu_custom_call.1} parent=91 // pred_check_branch
          %658 = sbr.rel (%p656) target = $region108
        $region107: #{tpu_custom_call.1} parent=91 // pred_region
          %659 = dma.done [#allocation9], 256
        $region108: #{tpu_custom_call.1} parent=91 // pred_fallthru
          _
        // Predicated region
        $region109: #{tpu_custom_call.1} parent=91 // pred_check
          %p660 = pneg %p385
        $region110: #{tpu_custom_call.1} parent=91 // pred_check_branch
          %662 = sbr.rel (%p660) target = $region112
        $region111: #{tpu_custom_call.1} parent=91 // pred_region
          %663 = dma.done [#allocation9], 256
        $region112: #{tpu_custom_call.1} parent=91 // pred_fallthru
          _
        %s664 = sand.u32 %s59, 1
        %s665 = scalar_lea.sflag [#allocation3], %s664
        %s666 = sand.u32 %s59, 1
        %s667 = smul.addr %s666, 4
        %s668 = scalar_lea.vmem [#allocation2], %s667
        %p669 = pneg %p72
        %p670 = pneg %p69
        %s671 = sand.u32 %s39, 1
        %s672 = scalar_lea.sflag [#allocation6], %s671
        %s673 = sand.u32 %s85, 1
        %s674 = smul.addr %s673, 4
        %s675 = scalar_lea.vmem [#allocation5], %s674
        %p676 = pneg %p98
        %p677 = pneg %p95
        %s678 = sand.u32 %s39, 1
        %s679 = scalar_lea.sflag [#allocation6], %s678
        %s680 = sand.u32 %s113, 1
        %s681 = smul.addr %s680, 2
        %s682 = scalar_lea.vmem [#allocation7], %s681
        %p683 = pneg %p126
        %p684 = pneg %p123
        %p685 = scmp.lt.s32.totalorder %s43, 1
        %s686 = scalar_select %p685, %s43, 1
        %p687 = scmp.lt.s32.totalorder %s44, 0
        %s688 = scalar_select %p687, %s44, 0
        %s689 = sadd.s32 %s688, %s686
        %s690 = smul.addr %s689, 2
        %s691 = scalar_lea.vmem %s3, %s690
        %p692 = pneg %p154
        %p693 = pneg %p151
        %p694 = pneg %p175
        %p695 = pneg %p172
        %p696 = pneg %p196
        %p697 = pneg %p193
        %p698 = pneg %p217
        %p699 = pneg %p214
        %p700 = pneg %p238
        %p701 = pneg %p235
        %p702 = pneg %p259
        %p703 = pneg %p256
        %p704 = pneg %p280
        %p705 = pneg %p277
        %p706 = pneg %p301
        %p707 = pneg %p298
        %p708 = pneg %p322
        %p709 = pneg %p319
        %p710 = pneg %p343
        %p711 = pneg %p340
        %p712 = pneg %p364
        %p713 = pneg %p361
        %p714 = pneg %p385
        %p715 = pneg %p382
        %p716 = pneg %p406
        %p717 = pneg %p403
        %p718 = pneg %p427
        %p719 = pneg %p424
        %p720 = pneg %p448
        %p721 = pneg %p445
        %p722 = pneg %p476
        %p723 = pneg %p473
        %s724 = sand.u32 %s463, 1
        %s725 = scalar_lea.sflag [#allocation4], %s724
        %s726 = sand.u32 %s463, 1
        %s727 = smul.addr %s726, 4
        %s728 = scalar_lea.vmem [#allocation11], %s727
        %p729 = scmp.lt.s32.totalorder %s43, 1
        %s730 = scalar_select %p729, %s43, 1
        %p731 = scmp.lt.s32.totalorder %s44, 0
        %s732 = scalar_select %p731, %s44, 0
        %s733 = sadd.s32 %s732, %s730
        %s734 = smul.addr %s733, 2
        %s735 = scalar_lea.vmem %s3, %s734
        %v739 = vld [vmem:[%s4] sm:$0x1]
        %v740 = vld [vmem:[%s5] sm:$0x1]
        %v741 = vld [vmem:[%s6] sm:$0xf]
        %v742 = vld [vmem:[%s6 + $0x4] sm:$0xf]
        %v743 = vld [vmem:[%s6 + $0x8] sm:$0xf]
        %v744 = vld [vmem:[%s6 + $0xc] sm:$0xf]
        %v745 = vld [vmem:[%s7] sm:$0xf]
        %v746 = vld [vmem:[%s7 + $0x4] sm:$0xf]
        %v747 = vld [vmem:[%s7 + $0x8] sm:$0xf]
        %v748 = vld [vmem:[%s7 + $0xc] sm:$0xf]
        %v749 = vld [vmem:[%s8] sm:$0xf]
        %v750 = vld [vmem:[%s8 + $0x4] sm:$0xf]
        %v751 = vld [vmem:[%s8 + $0x8] sm:$0xf]
        %v752 = vld [vmem:[%s8 + $0xc] sm:$0xf]
        %v753 = vld [vmem:[#allocation8] sm:$0xf]
        %v754 = vld [vmem:[#allocation8 + $0x4] sm:$0xf]
        %v755 = vld [vmem:[#allocation8 + $0x8] sm:$0xf]
        %v756 = vld [vmem:[#allocation8 + $0xc] sm:$0xf]
        %v757 = vld [vmem:[%s10] sm:$0x1]
        %v758 = vld [vmem:[%s11] sm:$0x1]
        %v759 = vld [vmem:[%s12] sm:$0x1]
        %v760 = vld [vmem:[%s13] sm:$0x1]
        %v761 = vld [vmem:[%s633] sm:$0xf]
        %v762 = vunpack.c.l.bf16 %v761
        %vm763 = vcmask 261120
        %v764 = vsel %vm763, %v762, 0.0
        %765 = vadd.xlane.f32.xlu0 %v764
        %v766 = vpop.xlane.xlu0 %765
        %v767 = vrcp.pop 32.0
        %v768 = vmul.f32 %v766, %v767
        %v769 = vsub.f32 %v762, %v768
        %v770 = vmul.f32 %v769, %v769
        %v771 = vsel %vm763, %v770, 0.0
        %772 = vadd.xlane.f32.xlu0 %v771
        %v773 = vpop.xlane.xlu0 %772
        %v774 = vmul.f32 %v773, %v767
        %v775 = vadd.f32 %v774, 1e-05
        %v776 = vrsqrt.pop %v775
        %v777 = vmul.f32 %v769, %v776
        %v779 = vlaneseq
        %v780 = vshrl.u32 %v779, 7
        %v781 = vsub.s32 0, %v780
        %v782 = vrot.slane %v739, %v781
        %v784 = vmul.f32 %v777, %v782
        %v786 = vlaneseq
        %v787 = vshrl.u32 %v786, 7
        %v788 = vsub.s32 0, %v787
        %v789 = vrot.slane %v740, %v788
        %v791 = vadd.f32 %v784, %v789
        %v792 = vld [vmem:[%s642] sm:$0xf]
        %v793 = vld [vmem:[%s651] sm:$0x3]
        %v794 = vpack.c.bf16 %v791, %v791
        %v796 = vlaneseq
        %v797 = vshrl.u32 %v796, 7
        %v798 = vsub.s32 0, %v797
        %v799 = vrot.slane %v757, %v798
        %v805 = vunpack.c.l.b16 %v741
        %v806 = vunpack.c.l.b16 %v742
        %v807 = vunpack.c.l.b16 %v743
        %v808 = vunpack.c.l.b16 %v744
        %v809 = vpack.c.b16 %v806, %v805
        %v810 = vpack.c.b16 %v808, %v807
        %v814 = vsel %vm763, %v794, 0
        %816 = vmatprep.subr.bf16.mxu0 0
        %817 = vmatpush1.bf16.msra.mxu0 0
        %818 = vmatprep.subr.bf16.mxu0 0
        %819 = vmatpush1.bf16.msra.mxu0 0
        %820 = vmatprep.subr.bf16.mxu0 0
        %821 = vmatpush1.bf16.msra.mxu0 0
        %822 = vmatprep.subr.bf16.mxu0 0
        %823 = vmatpush1.bf16.msra.mxu0 0
        %824 = vmatprep.subr.bf16.mxu0 0
        %825 = vmatpush1.bf16.msra.mxu0 0
        %826 = vmatprep.subr.bf16.mxu0 0
        %827 = vmatpush1.bf16.msra.mxu0 0
        %828 = vmatprep.subr.bf16.mxu0 0
        %829 = vmatpush1.bf16.msra.mxu0 %v810
        %830 = vmatprep.subr.bf16.mxu0 0
        %831 = vmatpush1.bf16.msra.mxu0 %v809
        %832 = vmatprep.subr.bf16.mxu0 0
        %833 = vmatpush2.bf16.msra.mxu0 0
        %834 = vmatprep.subr.bf16.mxu0 0
        %835 = vmatpush2.bf16.msra.mxu0 0
        %836 = vmatprep.subr.bf16.mxu0 0
        %837 = vmatpush2.bf16.msra.mxu0 0
        %838 = vmatprep.subr.bf16.mxu0 0
        %839 = vmatpush2.bf16.msra.mxu0 0
        %840 = vmatprep.subr.bf16.mxu0 0
        %841 = vmatpush2.bf16.msra.mxu0 0
        %842 = vmatprep.subr.bf16.mxu0 0
        %843 = vmatpush2.bf16.msra.mxu0 0
        %844 = vmatprep.subr.bf16.mxu0 0
        %845 = vmatpush2.bf16.msra.mxu0 0
        %846 = vmatprep.subr.bf16.mxu0 0
        %847 = vmatpush2.bf16.msra.mxu0 0
        %848 = vmatprep.mubr.bf16.mxu0 0
        %849 = vmatmul.mubr.bf16.gmra.mxu0 %v814
        %v850 = vpop.f32.mrf.mxu0
        %v851 = vadd.f32 %v799, %v850
        %v852 = vpop.f32.mrf.mxu0
        %v853 = vpop.f32.mrf.mxu0
        %v854 = vpop.f32.mrf.mxu0
        %855 = vdwg.mxu0
        %v857 = vlaneseq
        %v858 = vshrl.u32 %v857, 7
        %v859 = vsub.s32 0, %v858
        %v860 = vrot.slane %v758, %v859
        %v866 = vunpack.c.l.b16 %v745
        %v867 = vunpack.c.l.b16 %v746
        %v868 = vunpack.c.l.b16 %v747
        %v869 = vunpack.c.l.b16 %v748
        %v870 = vpack.c.b16 %v867, %v866
        %v871 = vpack.c.b16 %v869, %v868
        %874 = vmatprep.subr.bf16.mxu0 0
        %875 = vmatpush1.bf16.msra.mxu0 0
        %876 = vmatprep.subr.bf16.mxu0 0
        %877 = vmatpush1.bf16.msra.mxu0 0
        %878 = vmatprep.subr.bf16.mxu0 0
        %879 = vmatpush1.bf16.msra.mxu0 0
        %880 = vmatprep.subr.bf16.mxu0 0
        %881 = vmatpush1.bf16.msra.mxu0 0
        %882 = vmatprep.subr.bf16.mxu0 0
        %883 = vmatpush1.bf16.msra.mxu0 0
        %884 = vmatprep.subr.bf16.mxu0 0
        %885 = vmatpush1.bf16.msra.mxu0 0
        %886 = vmatprep.subr.bf16.mxu0 0
        %887 = vmatpush1.bf16.msra.mxu0 %v871
        %888 = vmatprep.subr.bf16.mxu0 0
        %889 = vmatpush1.bf16.msra.mxu0 %v870
        %890 = vmatprep.subr.bf16.mxu0 0
        %891 = vmatpush2.bf16.msra.mxu0 0
        %892 = vmatprep.subr.bf16.mxu0 0
        %893 = vmatpush2.bf16.msra.mxu0 0
        %894 = vmatprep.subr.bf16.mxu0 0
        %895 = vmatpush2.bf16.msra.mxu0 0
        %896 = vmatprep.subr.bf16.mxu0 0
        %897 = vmatpush2.bf16.msra.mxu0 0
        %898 = vmatprep.subr.bf16.mxu0 0
        %899 = vmatpush2.bf16.msra.mxu0 0
        %900 = vmatprep.subr.bf16.mxu0 0
        %901 = vmatpush2.bf16.msra.mxu0 0
        %902 = vmatprep.subr.bf16.mxu0 0
        %903 = vmatpush2.bf16.msra.mxu0 0
        %904 = vmatprep.subr.bf16.mxu0 0
        %905 = vmatpush2.bf16.msra.mxu0 0
        %906 = vmatprep.mubr.bf16.mxu0 0
        %907 = vmatmul.mubr.bf16.gmra.mxu0 %v814
        %v908 = vpop.f32.mrf.mxu0
        %v909 = vadd.f32 %v860, %v908
        %v910 = vpop.f32.mrf.mxu0
        %v911 = vpop.f32.mrf.mxu0
        %v912 = vpop.f32.mrf.mxu0
        %913 = vdwg.mxu0
        %v915 = vlaneseq
        %v916 = vshrl.u32 %v915, 7
        %v917 = vsub.s32 0, %v916
        %v918 = vrot.slane %v759, %v917
        %v924 = vunpack.c.l.b16 %v749
        %v925 = vunpack.c.l.b16 %v750
        %v926 = vunpack.c.l.b16 %v751
        %v927 = vunpack.c.l.b16 %v752
        %v928 = vpack.c.b16 %v925, %v924
        %v929 = vpack.c.b16 %v927, %v926
        %932 = vmatprep.subr.bf16.mxu0 0
        %933 = vmatpush1.bf16.msra.mxu0 0
        %934 = vmatprep.subr.bf16.mxu0 0
        %935 = vmatpush1.bf16.msra.mxu0 0
        %936 = vmatprep.subr.bf16.mxu0 0
        %937 = vmatpush1.bf16.msra.mxu0 0
        %938 = vmatprep.subr.bf16.mxu0 0
        %939 = vmatpush1.bf16.msra.mxu0 0
        %940 = vmatprep.subr.bf16.mxu0 0
        %941 = vmatpush1.bf16.msra.mxu0 0
        %942 = vmatprep.subr.bf16.mxu0 0
        %943 = vmatpush1.bf16.msra.mxu0 0
        %944 = vmatprep.subr.bf16.mxu0 0
        %945 = vmatpush1.bf16.msra.mxu0 %v929
        %946 = vmatprep.subr.bf16.mxu0 0
        %947 = vmatpush1.bf16.msra.mxu0 %v928
        %948 = vmatprep.subr.bf16.mxu0 0
        %949 = vmatpush2.bf16.msra.mxu0 0
        %950 = vmatprep.subr.bf16.mxu0 0
        %951 = vmatpush2.bf16.msra.mxu0 0
        %952 = vmatprep.subr.bf16.mxu0 0
        %953 = vmatpush2.bf16.msra.mxu0 0
        %954 = vmatprep.subr.bf16.mxu0 0
        %955 = vmatpush2.bf16.msra.mxu0 0
        %956 = vmatprep.subr.bf16.mxu0 0
        %957 = vmatpush2.bf16.msra.mxu0 0
        %958 = vmatprep.subr.bf16.mxu0 0
        %959 = vmatpush2.bf16.msra.mxu0 0
        %960 = vmatprep.subr.bf16.mxu0 0
        %961 = vmatpush2.bf16.msra.mxu0 0
        %962 = vmatprep.subr.bf16.mxu0 0
        %963 = vmatpush2.bf16.msra.mxu0 0
        %964 = vmatprep.mubr.bf16.mxu0 0
        %965 = vmatmul.mubr.bf16.gmra.mxu0 %v814
        %v966 = vpop.f32.mrf.mxu0
        %v967 = vadd.f32 %v918, %v966
        %v968 = vpop.f32.mrf.mxu0
        %v969 = vpop.f32.mrf.mxu0
        %v970 = vpop.f32.mrf.mxu0
        %971 = vdwg.mxu0
        %v972 = vmul.f32 %v851, 0.35355338
        %974 = vrot.lane.b32.xlu0 %v972, 120
        %v975 = vpop.permute.xlu0 %974
        %977 = vrot.lane.b32.xlu0 %v972, 112
        %v978 = vpop.permute.xlu0 %977
        %980 = vrot.lane.b32.xlu0 %v972, 104
        %v981 = vpop.permute.xlu0 %980
        %v983 = vpack.c.bf16 %v972, %v972
        %v984 = vpack.c.bf16 %v975, %v975
        %v985 = vpack.c.bf16 %v978, %v978
        %v986 = vpack.c.bf16 %v981, %v981
        %988 = vrot.lane.b32.xlu0 %v909, 120
        %v989 = vpop.permute.xlu0 %988
        %991 = vrot.lane.b32.xlu0 %v909, 112
        %v992 = vpop.permute.xlu0 %991
        %994 = vrot.lane.b32.xlu0 %v909, 104
        %v995 = vpop.permute.xlu0 %994
        %v997 = vpack.c.bf16 %v909, %v909
        %v998 = vpack.c.bf16 %v989, %v989
        %v999 = vpack.c.bf16 %v992, %v992
        %v1000 = vpack.c.bf16 %v995, %v995
        %1002 = vrot.lane.b32.xlu0 %v967, 120
        %v1003 = vpop.permute.xlu0 %1002
        %1005 = vrot.lane.b32.xlu0 %v967, 112
        %v1006 = vpop.permute.xlu0 %1005
        %1008 = vrot.lane.b32.xlu0 %v967, 104
        %v1009 = vpop.permute.xlu0 %1008
        %v1011 = vpack.c.bf16 %v967, %v967
        %v1012 = vpack.c.bf16 %v1003, %v1003
        %v1013 = vpack.c.bf16 %v1006, %v1006
        %v1014 = vpack.c.bf16 %v1009, %v1009
        %vm1015 = vcmask 64512
        %v1017 = vsel %vm1015, %v983, 0
        %v1020 = vsel %vm1015, %v997, 0
        %1022 = vmatprep.subr.bf16.mxu0 0
        %1023 = vmatpush1.bf16.xpose.msra.mxu0 0
        %1024 = vmatprep.subr.bf16.mxu0 0
        %1025 = vmatpush1.bf16.xpose.msra.mxu0 0
        %1026 = vmatprep.subr.bf16.mxu0 0
        %1027 = vmatpush1.bf16.xpose.msra.mxu0 0
        %1028 = vmatprep.subr.bf16.mxu0 0
        %1029 = vmatpush1.bf16.xpose.msra.mxu0 0
        %1030 = vmatprep.subr.bf16.mxu0 0
        %1031 = vmatpush1.bf16.xpose.msra.mxu0 0
        %1032 = vmatprep.subr.bf16.mxu0 0
        %1033 = vmatpush1.bf16.xpose.msra.mxu0 0
        %1034 = vmatprep.subr.bf16.mxu0 0
        %1035 = vmatpush1.bf16.xpose.msra.mxu0 0
        %1036 = vmatprep.subr.bf16.mxu0 0
        %1037 = vmatpush1.bf16.xpose.msra.mxu0 %v1020
        %1038 = vmatprep.subr.bf16.mxu0 0
        %1039 = vmatpush2.bf16.xpose.msra.mxu0 0
        %1040 = vmatprep.subr.bf16.mxu0 0
        %1041 = vmatpush2.bf16.xpose.msra.mxu0 0
        %1042 = vmatprep.subr.bf16.mxu0 0
        %1043 = vmatpush2.bf16.xpose.msra.mxu0 0
        %1044 = vmatprep.subr.bf16.mxu0 0
        %1045 = vmatpush2.bf16.xpose.msra.mxu0 0
        %1046 = vmatprep.subr.bf16.mxu0 0
        %1047 = vmatpush2.bf16.xpose.msra.mxu0 0
        %1048 = vmatprep.subr.bf16.mxu0 0
        %1049 = vmatpush2.bf16.xpose.msra.mxu0 0
        %1050 = vmatprep.subr.bf16.mxu0 0
        %1051 = vmatpush2.bf16.xpose.msra.mxu0 0
        %1052 = vmatprep.subr.bf16.mxu0 0
        %1053 = vmatpush2.bf16.xpose.msra.mxu0 0
        %1054 = vmatprep.mubr.bf16.mxu0 0
        %1055 = vmatmul.mubr.bf16.gmra.mxu0 %v1017
        %v1056 = vpop.f32.mrf.mxu0
        %v1057 = vadd.f32 0.0, %v1056
        %v1058 = vpop.f32.mrf.mxu0
        %v1059 = vpop.f32.mrf.mxu0
        %v1060 = vpop.f32.mrf.mxu0
        %1061 = vdwg.mxu0
        %v1063 = vsel %vm1015, %v984, 0
        %v1066 = vsel %vm1015, %v998, 0
        %1068 = vmatprep.subr.bf16.mxu0 0
        %1069 = vmatpush1.bf16.xpose.msra.mxu0 0
        %1070 = vmatprep.subr.bf16.mxu0 0
        %1071 = vmatpush1.bf16.xpose.msra.mxu0 0
        %1072 = vmatprep.subr.bf16.mxu0 0
        %1073 = vmatpush1.bf16.xpose.msra.mxu0 0
        %1074 = vmatprep.subr.bf16.mxu0 0
        %1075 = vmatpush1.bf16.xpose.msra.mxu0 0
        %1076 = vmatprep.subr.bf16.mxu0 0
        %1077 = vmatpush1.bf16.xpose.msra.mxu0 0
        %1078 = vmatprep.subr.bf16.mxu0 0
        %1079 = vmatpush1.bf16.xpose.msra.mxu0 0
        %1080 = vmatprep.subr.bf16.mxu0 0
        %1081 = vmatpush1.bf16.xpose.msra.mxu0 0
        %1082 = vmatprep.subr.bf16.mxu0 0
        %1083 = vmatpush1.bf16.xpose.msra.mxu0 %v1066
        %1084 = vmatprep.subr.bf16.mxu0 0
        %1085 = vmatpush2.bf16.xpose.msra.mxu0 0
        %1086 = vmatprep.subr.bf16.mxu0 0
        %1087 = vmatpush2.bf16.xpose.msra.mxu0 0
        %1088 = vmatprep.subr.bf16.mxu0 0
        %1089 = vmatpush2.bf16.xpose.msra.mxu0 0
        %1090 = vmatprep.subr.bf16.mxu0 0
        %1091 = vmatpush2.bf16.xpose.msra.mxu0 0
        %1092 = vmatprep.subr.bf16.mxu0 0
        %1093 = vmatpush2.bf16.xpose.msra.mxu0 0
        %1094 = vmatprep.subr.bf16.mxu0 0
        %1095 = vmatpush2.bf16.xpose.msra.mxu0 0
        %1096 = vmatprep.subr.bf16.mxu0 0
        %1097 = vmatpush2.bf16.xpose.msra.mxu0 0
        %1098 = vmatprep.subr.bf16.mxu0 0
        %1099 = vmatpush2.bf16.xpose.msra.mxu0 0
        %1100 = vmatprep.mubr.bf16.mxu0 0
        %1101 = vmatmul.mubr.bf16.gmra.mxu0 %v1063
        %v1102 = vpop.f32.mrf.mxu0
        %v1103 = vadd.f32 0.0, %v1102
        %v1104 = vpop.f32.mrf.mxu0
        %v1105 = vpop.f32.mrf.mxu0
        %v1106 = vpop.f32.mrf.mxu0
        %1107 = vdwg.mxu0
        %v1109 = vsel %vm1015, %v985, 0
        %v1112 = vsel %vm1015, %v999, 0
        %1114 = vmatprep.subr.bf16.mxu0 0
        %1115 = vmatpush1.bf16.xpose.msra.mxu0 0
        %1116 = vmatprep.subr.bf16.mxu0 0
        %1117 = vmatpush1.bf16.xpose.msra.mxu0 0
        %1118 = vmatprep.subr.bf16.mxu0 0
        %1119 = vmatpush1.bf16.xpose.msra.mxu0 0
        %1120 = vmatprep.subr.bf16.mxu0 0
        %1121 = vmatpush1.bf16.xpose.msra.mxu0 0
        %1122 = vmatprep.subr.bf16.mxu0 0
        %1123 = vmatpush1.bf16.xpose.msra.mxu0 0
        %1124 = vmatprep.subr.bf16.mxu0 0
        %1125 = vmatpush1.bf16.xpose.msra.mxu0 0
        %1126 = vmatprep.subr.bf16.mxu0 0
        %1127 = vmatpush1.bf16.xpose.msra.mxu0 0
        %1128 = vmatprep.subr.bf16.mxu0 0
        %1129 = vmatpush1.bf16.xpose.msra.mxu0 %v1112
        %1130 = vmatprep.subr.bf16.mxu0 0
        %1131 = vmatpush2.bf16.xpose.msra.mxu0 0
        %1132 = vmatprep.subr.bf16.mxu0 0
        %1133 = vmatpush2.bf16.xpose.msra.mxu0 0
        %1134 = vmatprep.subr.bf16.mxu0 0
        %1135 = vmatpush2.bf16.xpose.msra.mxu0 0
        %1136 = vmatprep.subr.bf16.mxu0 0
        %1137 = vmatpush2.bf16.xpose.msra.mxu0 0
        %1138 = vmatprep.subr.bf16.mxu0 0
        %1139 = vmatpush2.bf16.xpose.msra.mxu0 0
        %1140 = vmatprep.subr.bf16.mxu0 0
        %1141 = vmatpush2.bf16.xpose.msra.mxu0 0
        %1142 = vmatprep.subr.bf16.mxu0 0
        %1143 = vmatpush2.bf16.xpose.msra.mxu0 0
        %1144 = vmatprep.subr.bf16.mxu0 0
        %1145 = vmatpush2.bf16.xpose.msra.mxu0 0
        %1146 = vmatprep.mubr.bf16.mxu0 0
        %1147 = vmatmul.mubr.bf16.gmra.mxu0 %v1109
        %v1148 = vpop.f32.mrf.mxu0
        %v1149 = vadd.f32 0.0, %v1148
        %v1150 = vpop.f32.mrf.mxu0
        %v1151 = vpop.f32.mrf.mxu0
        %v1152 = vpop.f32.mrf.mxu0
        %1153 = vdwg.mxu0
        %v1155 = vsel %vm1015, %v986, 0
        %v1158 = vsel %vm1015, %v1000, 0
        %1160 = vmatprep.subr.bf16.mxu0 0
        %1161 = vmatpush1.bf16.xpose.msra.mxu0 0
        %1162 = vmatprep.subr.bf16.mxu0 0
        %1163 = vmatpush1.bf16.xpose.msra.mxu0 0
        %1164 = vmatprep.subr.bf16.mxu0 0
        %1165 = vmatpush1.bf16.xpose.msra.mxu0 0
        %1166 = vmatprep.subr.bf16.mxu0 0
        %1167 = vmatpush1.bf16.xpose.msra.mxu0 0
        %1168 = vmatprep.subr.bf16.mxu0 0
        %1169 = vmatpush1.bf16.xpose.msra.mxu0 0
        %1170 = vmatprep.subr.bf16.mxu0 0
        %1171 = vmatpush1.bf16.xpose.msra.mxu0 0
        %1172 = vmatprep.subr.bf16.mxu0 0
        %1173 = vmatpush1.bf16.xpose.msra.mxu0 0
        %1174 = vmatprep.subr.bf16.mxu0 0
        %1175 = vmatpush1.bf16.xpose.msra.mxu0 %v1158
        %1176 = vmatprep.subr.bf16.mxu0 0
        %1177 = vmatpush2.bf16.xpose.msra.mxu0 0
        %1178 = vmatprep.subr.bf16.mxu0 0
        %1179 = vmatpush2.bf16.xpose.msra.mxu0 0
        %1180 = vmatprep.subr.bf16.mxu0 0
        %1181 = vmatpush2.bf16.xpose.msra.mxu0 0
        %1182 = vmatprep.subr.bf16.mxu0 0
        %1183 = vmatpush2.bf16.xpose.msra.mxu0 0
        %1184 = vmatprep.subr.bf16.mxu0 0
        %1185 = vmatpush2.bf16.xpose.msra.mxu0 0
        %1186 = vmatprep.subr.bf16.mxu0 0
        %1187 = vmatpush2.bf16.xpose.msra.mxu0 0
        %1188 = vmatprep.subr.bf16.mxu0 0
        %1189 = vmatpush2.bf16.xpose.msra.mxu0 0
        %1190 = vmatprep.subr.bf16.mxu0 0
        %1191 = vmatpush2.bf16.xpose.msra.mxu0 0
        %1192 = vmatprep.mubr.bf16.mxu0 0
        %1193 = vmatmul.mubr.bf16.gmra.mxu0 %v1155
        %v1194 = vpop.f32.mrf.mxu0
        %v1195 = vadd.f32 0.0, %v1194
        %v1196 = vpop.f32.mrf.mxu0
        %v1197 = vpop.f32.mrf.mxu0
        %v1198 = vpop.f32.mrf.mxu0
        %1199 = vdwg.mxu0
        %vm1200 = vnez %v793
        %v1201 = vsel %vm1200, 16843009, 0
        %v1202 = vunpack.c.0.s8 %v1201
        %vm1203 = vcmp.ne.s32.totalorder %v1202, 0
        %v1204 = vsel %vm1203, 1, 0
        %vm1205 = vcmp.eq.s32.totalorder %v1204, 1
        %v1206 = vsel %vm1205, -1e+10, %v1057
        %v1207 = vsel %vm1205, -1e+10, %v1103
        %v1208 = vsel %vm1205, -1e+10, %v1149
        %v1209 = vsel %vm1205, -1e+10, %v1195
        %v1210 = vsel %vm1015, %v1206, -inf
        %1211 = vmax.xlane.f32.xlu0 %v1210
        %v1212 = vpop.xlane.xlu0 %1211
        %v1213 = vsel %vm1015, %v1207, -inf
        %1214 = vmax.xlane.f32.xlu0 %v1213
        %v1215 = vpop.xlane.xlu0 %1214
        %v1216 = vsel %vm1015, %v1208, -inf
        %1217 = vmax.xlane.f32.xlu0 %v1216
        %v1218 = vpop.xlane.xlu0 %1217
        %v1219 = vsel %vm1015, %v1209, -inf
        %1220 = vmax.xlane.f32.xlu0 %v1219
        %v1221 = vpop.xlane.xlu0 %1220
        %v1222 = vsub.f32 %v1206, %v1212
        %v1223 = vsub.f32 %v1207, %v1215
        %v1224 = vsub.f32 %v1208, %v1218
        %v1225 = vsub.f32 %v1209, %v1221
        %v1226 = vmul.f32 %v1222, 1.442695
        %v1227 = vpow.pop %v1226
        %v1228 = vmul.f32 %v1223, 1.442695
        %v1229 = vpow.pop %v1228
        %v1230 = vmul.f32 %v1224, 1.442695
        %v1231 = vpow.pop %v1230
        %v1232 = vmul.f32 %v1225, 1.442695
        %v1233 = vpow.pop %v1232
        %v1234 = vsel %vm1015, %v1227, 0.0
        %1235 = vadd.xlane.f32.xlu0 %v1234
        %v1236 = vpop.xlane.xlu0 %1235
        %v1237 = vsel %vm1015, %v1229, 0.0
        %1238 = vadd.xlane.f32.xlu0 %v1237
        %v1239 = vpop.xlane.xlu0 %1238
        %v1240 = vsel %vm1015, %v1231, 0.0
        %1241 = vadd.xlane.f32.xlu0 %v1240
        %v1242 = vpop.xlane.xlu0 %1241
        %v1243 = vsel %vm1015, %v1233, 0.0
        %1244 = vadd.xlane.f32.xlu0 %v1243
        %v1245 = vpop.xlane.xlu0 %1244
        %v1246 = vrcp.pop %v1236
        %v1247 = vrcp.pop %v1239
        %v1248 = vrcp.pop %v1242
        %v1249 = vrcp.pop %v1245
        %v1250 = vmul.f32 %v1227, %v1246
        %v1251 = vmul.f32 %v1229, %v1247
        %v1252 = vmul.f32 %v1231, %v1248
        %v1253 = vmul.f32 %v1233, %v1249
        %v1254 = vpack.c.bf16 %v1250, %v1250
        %v1255 = vpack.c.bf16 %v1251, %v1251
        %v1256 = vpack.c.bf16 %v1252, %v1252
        %v1257 = vpack.c.bf16 %v1253, %v1253
        %v1259 = vsel %vm1015, %v1254, 0
        %vm1261 = vcmask 1043456
        %v1263 = vsel %vm1261, %v1011, 0
        %1265 = vmatprep.subr.bf16.mxu0 0
        %1266 = vmatpush1.bf16.msra.mxu0 0
        %1267 = vmatprep.subr.bf16.mxu0 0
        %1268 = vmatpush1.bf16.msra.mxu0 0
        %1269 = vmatprep.subr.bf16.mxu0 0
        %1270 = vmatpush1.bf16.msra.mxu0 0
        %1271 = vmatprep.subr.bf16.mxu0 0
        %1272 = vmatpush1.bf16.msra.mxu0 0
        %1273 = vmatprep.subr.bf16.mxu0 0
        %1274 = vmatpush1.bf16.msra.mxu0 0
        %1275 = vmatprep.subr.bf16.mxu0 0
        %1276 = vmatpush1.bf16.msra.mxu0 0
        %1277 = vmatprep.subr.bf16.mxu0 0
        %1278 = vmatpush1.bf16.msra.mxu0 0
        %1279 = vmatprep.subr.bf16.mxu0 0
        %1280 = vmatpush1.bf16.msra.mxu0 %v1263
        %1281 = vmatprep.subr.bf16.mxu0 0
        %1282 = vmatpush2.bf16.msra.mxu0 0
        %1283 = vmatprep.subr.bf16.mxu0 0
        %1284 = vmatpush2.bf16.msra.mxu0 0
        %1285 = vmatprep.subr.bf16.mxu0 0
        %1286 = vmatpush2.bf16.msra.mxu0 0
        %1287 = vmatprep.subr.bf16.mxu0 0
        %1288 = vmatpush2.bf16.msra.mxu0 0
        %1289 = vmatprep.subr.bf16.mxu0 0
        %1290 = vmatpush2.bf16.msra.mxu0 0
        %1291 = vmatprep.subr.bf16.mxu0 0
        %1292 = vmatpush2.bf16.msra.mxu0 0
        %1293 = vmatprep.subr.bf16.mxu0 0
        %1294 = vmatpush2.bf16.msra.mxu0 0
        %1295 = vmatprep.subr.bf16.mxu0 0
        %1296 = vmatpush2.bf16.msra.mxu0 0
        %1297 = vmatprep.mubr.bf16.mxu0 0
        %1298 = vmatmul.mubr.bf16.gmra.mxu0 %v1259
        %v1299 = vpop.f32.mrf.mxu0
        %v1300 = vadd.f32 0.0, %v1299
        %v1301 = vpop.f32.mrf.mxu0
        %v1302 = vpop.f32.mrf.mxu0
        %v1303 = vpop.f32.mrf.mxu0
        %1304 = vdwg.mxu0
        %v1306 = vsel %vm1015, %v1255, 0
        %v1309 = vsel %vm1261, %v1012, 0
        %1311 = vmatprep.subr.bf16.mxu0 0
        %1312 = vmatpush1.bf16.msra.mxu0 0
        %1313 = vmatprep.subr.bf16.mxu0 0
        %1314 = vmatpush1.bf16.msra.mxu0 0
        %1315 = vmatprep.subr.bf16.mxu0 0
        %1316 = vmatpush1.bf16.msra.mxu0 0
        %1317 = vmatprep.subr.bf16.mxu0 0
        %1318 = vmatpush1.bf16.msra.mxu0 0
        %1319 = vmatprep.subr.bf16.mxu0 0
        %1320 = vmatpush1.bf16.msra.mxu0 0
        %1321 = vmatprep.subr.bf16.mxu0 0
        %1322 = vmatpush1.bf16.msra.mxu0 0
        %1323 = vmatprep.subr.bf16.mxu0 0
        %1324 = vmatpush1.bf16.msra.mxu0 0
        %1325 = vmatprep.subr.bf16.mxu0 0
        %1326 = vmatpush1.bf16.msra.mxu0 %v1309
        %1327 = vmatprep.subr.bf16.mxu0 0
        %1328 = vmatpush2.bf16.msra.mxu0 0
        %1329 = vmatprep.subr.bf16.mxu0 0
        %1330 = vmatpush2.bf16.msra.mxu0 0
        %1331 = vmatprep.subr.bf16.mxu0 0
        %1332 = vmatpush2.bf16.msra.mxu0 0
        %1333 = vmatprep.subr.bf16.mxu0 0
        %1334 = vmatpush2.bf16.msra.mxu0 0
        %1335 = vmatprep.subr.bf16.mxu0 0
        %1336 = vmatpush2.bf16.msra.mxu0 0
        %1337 = vmatprep.subr.bf16.mxu0 0
        %1338 = vmatpush2.bf16.msra.mxu0 0
        %1339 = vmatprep.subr.bf16.mxu0 0
        %1340 = vmatpush2.bf16.msra.mxu0 0
        %1341 = vmatprep.subr.bf16.mxu0 0
        %1342 = vmatpush2.bf16.msra.mxu0 0
        %1343 = vmatprep.mubr.bf16.mxu0 0
        %1344 = vmatmul.mubr.bf16.gmra.mxu0 %v1306
        %v1345 = vpop.f32.mrf.mxu0
        %v1346 = vadd.f32 0.0, %v1345
        %v1347 = vpop.f32.mrf.mxu0
        %v1348 = vpop.f32.mrf.mxu0
        %v1349 = vpop.f32.mrf.mxu0
        %1350 = vdwg.mxu0
        %v1352 = vsel %vm1015, %v1256, 0
        %v1355 = vsel %vm1261, %v1013, 0
        %1357 = vmatprep.subr.bf16.mxu0 0
        %1358 = vmatpush1.bf16.msra.mxu0 0
        %1359 = vmatprep.subr.bf16.mxu0 0
        %1360 = vmatpush1.bf16.msra.mxu0 0
        %1361 = vmatprep.subr.bf16.mxu0 0
        %1362 = vmatpush1.bf16.msra.mxu0 0
        %1363 = vmatprep.subr.bf16.mxu0 0
        %1364 = vmatpush1.bf16.msra.mxu0 0
        %1365 = vmatprep.subr.bf16.mxu0 0
        %1366 = vmatpush1.bf16.msra.mxu0 0
        %1367 = vmatprep.subr.bf16.mxu0 0
        %1368 = vmatpush1.bf16.msra.mxu0 0
        %1369 = vmatprep.subr.bf16.mxu0 0
        %1370 = vmatpush1.bf16.msra.mxu0 0
        %1371 = vmatprep.subr.bf16.mxu0 0
        %1372 = vmatpush1.bf16.msra.mxu0 %v1355
        %1373 = vmatprep.subr.bf16.mxu0 0
        %1374 = vmatpush2.bf16.msra.mxu0 0
        %1375 = vmatprep.subr.bf16.mxu0 0
        %1376 = vmatpush2.bf16.msra.mxu0 0
        %1377 = vmatprep.subr.bf16.mxu0 0
        %1378 = vmatpush2.bf16.msra.mxu0 0
        %1379 = vmatprep.subr.bf16.mxu0 0
        %1380 = vmatpush2.bf16.msra.mxu0 0
        %1381 = vmatprep.subr.bf16.mxu0 0
        %1382 = vmatpush2.bf16.msra.mxu0 0
        %1383 = vmatprep.subr.bf16.mxu0 0
        %1384 = vmatpush2.bf16.msra.mxu0 0
        %1385 = vmatprep.subr.bf16.mxu0 0
        %1386 = vmatpush2.bf16.msra.mxu0 0
        %1387 = vmatprep.subr.bf16.mxu0 0
        %1388 = vmatpush2.bf16.msra.mxu0 0
        %1389 = vmatprep.mubr.bf16.mxu0 0
        %1390 = vmatmul.mubr.bf16.gmra.mxu0 %v1352
        %v1391 = vpop.f32.mrf.mxu0
        %v1392 = vadd.f32 0.0, %v1391
        %v1393 = vpop.f32.mrf.mxu0
        %v1394 = vpop.f32.mrf.mxu0
        %v1395 = vpop.f32.mrf.mxu0
        %1396 = vdwg.mxu0
        %v1398 = vsel %vm1015, %v1257, 0
        %v1401 = vsel %vm1261, %v1014, 0
        %1403 = vmatprep.subr.bf16.mxu0 0
        %1404 = vmatpush1.bf16.msra.mxu0 0
        %1405 = vmatprep.subr.bf16.mxu0 0
        %1406 = vmatpush1.bf16.msra.mxu0 0
        %1407 = vmatprep.subr.bf16.mxu0 0
        %1408 = vmatpush1.bf16.msra.mxu0 0
        %1409 = vmatprep.subr.bf16.mxu0 0
        %1410 = vmatpush1.bf16.msra.mxu0 0
        %1411 = vmatprep.subr.bf16.mxu0 0
        %1412 = vmatpush1.bf16.msra.mxu0 0
        %1413 = vmatprep.subr.bf16.mxu0 0
        %1414 = vmatpush1.bf16.msra.mxu0 0
        %1415 = vmatprep.subr.bf16.mxu0 0
        %1416 = vmatpush1.bf16.msra.mxu0 0
        %1417 = vmatprep.subr.bf16.mxu0 0
        %1418 = vmatpush1.bf16.msra.mxu0 %v1401
        %1419 = vmatprep.subr.bf16.mxu0 0
        %1420 = vmatpush2.bf16.msra.mxu0 0
        %1421 = vmatprep.subr.bf16.mxu0 0
        %1422 = vmatpush2.bf16.msra.mxu0 0
        %1423 = vmatprep.subr.bf16.mxu0 0
        %1424 = vmatpush2.bf16.msra.mxu0 0
        %1425 = vmatprep.subr.bf16.mxu0 0
        %1426 = vmatpush2.bf16.msra.mxu0 0
        %1427 = vmatprep.subr.bf16.mxu0 0
        %1428 = vmatpush2.bf16.msra.mxu0 0
        %1429 = vmatprep.subr.bf16.mxu0 0
        %1430 = vmatpush2.bf16.msra.mxu0 0
        %1431 = vmatprep.subr.bf16.mxu0 0
        %1432 = vmatpush2.bf16.msra.mxu0 0
        %1433 = vmatprep.subr.bf16.mxu0 0
        %1434 = vmatpush2.bf16.msra.mxu0 0
        %1435 = vmatprep.mubr.bf16.mxu0 0
        %1436 = vmatmul.mubr.bf16.gmra.mxu0 %v1398
        %v1437 = vpop.f32.mrf.mxu0
        %v1438 = vadd.f32 0.0, %v1437
        %v1439 = vpop.f32.mrf.mxu0
        %v1440 = vpop.f32.mrf.mxu0
        %v1441 = vpop.f32.mrf.mxu0
        %1442 = vdwg.mxu0
        %v1443 = vpack.c.bf16 %v1300, %v1300
        %v1444 = vpack.c.bf16 %v1346, %v1346
        %v1445 = vpack.c.bf16 %v1392, %v1392
        %v1446 = vpack.c.bf16 %v1438, %v1438
        %v1448 = vsel %vm1015, %v1443, 0
        %v1451 = vsel %vm1261, %v753, 0
        %1453 = vmatprep.subr.bf16.mxu0 0
        %1454 = vmatpush1.bf16.msra.mxu0 0
        %1455 = vmatprep.subr.bf16.mxu0 0
        %1456 = vmatpush1.bf16.msra.mxu0 0
        %1457 = vmatprep.subr.bf16.mxu0 0
        %1458 = vmatpush1.bf16.msra.mxu0 0
        %1459 = vmatprep.subr.bf16.mxu0 0
        %1460 = vmatpush1.bf16.msra.mxu0 0
        %1461 = vmatprep.subr.bf16.mxu0 0
        %1462 = vmatpush1.bf16.msra.mxu0 0
        %1463 = vmatprep.subr.bf16.mxu0 0
        %1464 = vmatpush1.bf16.msra.mxu0 0
        %1465 = vmatprep.subr.bf16.mxu0 0
        %1466 = vmatpush1.bf16.msra.mxu0 0
        %1467 = vmatprep.subr.bf16.mxu0 0
        %1468 = vmatpush1.bf16.msra.mxu0 %v1451
        %1469 = vmatprep.subr.bf16.mxu0 0
        %1470 = vmatpush2.bf16.msra.mxu0 0
        %1471 = vmatprep.subr.bf16.mxu0 0
        %1472 = vmatpush2.bf16.msra.mxu0 0
        %1473 = vmatprep.subr.bf16.mxu0 0
        %1474 = vmatpush2.bf16.msra.mxu0 0
        %1475 = vmatprep.subr.bf16.mxu0 0
        %1476 = vmatpush2.bf16.msra.mxu0 0
        %1477 = vmatprep.subr.bf16.mxu0 0
        %1478 = vmatpush2.bf16.msra.mxu0 0
        %1479 = vmatprep.subr.bf16.mxu0 0
        %1480 = vmatpush2.bf16.msra.mxu0 0
        %1481 = vmatprep.subr.bf16.mxu0 0
        %1482 = vmatpush2.bf16.msra.mxu0 0
        %1483 = vmatprep.subr.bf16.mxu0 0
        %1484 = vmatpush2.bf16.msra.mxu0 0
        %1485 = vmatprep.mubr.bf16.mxu0 0
        %1486 = vmatmul.mubr.bf16.gmra.mxu0 %v1448
        %v1487 = vpop.f32.mrf.mxu0
        %v1488 = vadd.f32 0.0, %v1487
        %v1489 = vpop.f32.mrf.mxu0
        %v1490 = vpop.f32.mrf.mxu0
        %v1491 = vpop.f32.mrf.mxu0
        %1492 = vdwg.mxu0
        %v1494 = vsel %vm1015, %v1444, 0
        %v1497 = vsel %vm1261, %v754, 0
        %1499 = vmatprep.subr.bf16.mxu0 0
        %1500 = vmatpush1.bf16.msra.mxu0 0
        %1501 = vmatprep.subr.bf16.mxu0 0
        %1502 = vmatpush1.bf16.msra.mxu0 0
        %1503 = vmatprep.subr.bf16.mxu0 0
        %1504 = vmatpush1.bf16.msra.mxu0 0
        %1505 = vmatprep.subr.bf16.mxu0 0
        %1506 = vmatpush1.bf16.msra.mxu0 0
        %1507 = vmatprep.subr.bf16.mxu0 0
        %1508 = vmatpush1.bf16.msra.mxu0 0
        %1509 = vmatprep.subr.bf16.mxu0 0
        %1510 = vmatpush1.bf16.msra.mxu0 0
        %1511 = vmatprep.subr.bf16.mxu0 0
        %1512 = vmatpush1.bf16.msra.mxu0 0
        %1513 = vmatprep.subr.bf16.mxu0 0
        %1514 = vmatpush1.bf16.msra.mxu0 %v1497
        %1515 = vmatprep.subr.bf16.mxu0 0
        %1516 = vmatpush2.bf16.msra.mxu0 0
        %1517 = vmatprep.subr.bf16.mxu0 0
        %1518 = vmatpush2.bf16.msra.mxu0 0
        %1519 = vmatprep.subr.bf16.mxu0 0
        %1520 = vmatpush2.bf16.msra.mxu0 0
        %1521 = vmatprep.subr.bf16.mxu0 0
        %1522 = vmatpush2.bf16.msra.mxu0 0
        %1523 = vmatprep.subr.bf16.mxu0 0
        %1524 = vmatpush2.bf16.msra.mxu0 0
        %1525 = vmatprep.subr.bf16.mxu0 0
        %1526 = vmatpush2.bf16.msra.mxu0 0
        %1527 = vmatprep.subr.bf16.mxu0 0
        %1528 = vmatpush2.bf16.msra.mxu0 0
        %1529 = vmatprep.subr.bf16.mxu0 0
        %1530 = vmatpush2.bf16.msra.mxu0 0
        %1531 = vmatprep.mubr.bf16.mxu0 0
        %1532 = vmatmul.mubr.bf16.gmra.mxu0 %v1494
        %v1533 = vpop.f32.mrf.mxu0
        %v1534 = vadd.f32 0.0, %v1533
        %v1535 = vpop.f32.mrf.mxu0
        %v1536 = vpop.f32.mrf.mxu0
        %v1537 = vpop.f32.mrf.mxu0
        %1538 = vdwg.mxu0
        %v1540 = vsel %vm1015, %v1445, 0
        %v1543 = vsel %vm1261, %v755, 0
        %1545 = vmatprep.subr.bf16.mxu0 0
        %1546 = vmatpush1.bf16.msra.mxu0 0
        %1547 = vmatprep.subr.bf16.mxu0 0
        %1548 = vmatpush1.bf16.msra.mxu0 0
        %1549 = vmatprep.subr.bf16.mxu0 0
        %1550 = vmatpush1.bf16.msra.mxu0 0
        %1551 = vmatprep.subr.bf16.mxu0 0
        %1552 = vmatpush1.bf16.msra.mxu0 0
        %1553 = vmatprep.subr.bf16.mxu0 0
        %1554 = vmatpush1.bf16.msra.mxu0 0
        %1555 = vmatprep.subr.bf16.mxu0 0
        %1556 = vmatpush1.bf16.msra.mxu0 0
        %1557 = vmatprep.subr.bf16.mxu0 0
        %1558 = vmatpush1.bf16.msra.mxu0 0
        %1559 = vmatprep.subr.bf16.mxu0 0
        %1560 = vmatpush1.bf16.msra.mxu0 %v1543
        %1561 = vmatprep.subr.bf16.mxu0 0
        %1562 = vmatpush2.bf16.msra.mxu0 0
        %1563 = vmatprep.subr.bf16.mxu0 0
        %1564 = vmatpush2.bf16.msra.mxu0 0
        %1565 = vmatprep.subr.bf16.mxu0 0
        %1566 = vmatpush2.bf16.msra.mxu0 0
        %1567 = vmatprep.subr.bf16.mxu0 0
        %1568 = vmatpush2.bf16.msra.mxu0 0
        %1569 = vmatprep.subr.bf16.mxu0 0
        %1570 = vmatpush2.bf16.msra.mxu0 0
        %1571 = vmatprep.subr.bf16.mxu0 0
        %1572 = vmatpush2.bf16.msra.mxu0 0
        %1573 = vmatprep.subr.bf16.mxu0 0
        %1574 = vmatpush2.bf16.msra.mxu0 0
        %1575 = vmatprep.subr.bf16.mxu0 0
        %1576 = vmatpush2.bf16.msra.mxu0 0
        %1577 = vmatprep.mubr.bf16.mxu0 0
        %1578 = vmatmul.mubr.bf16.gmra.mxu0 %v1540
        %v1579 = vpop.f32.mrf.mxu0
        %v1580 = vadd.f32 0.0, %v1579
        %v1581 = vpop.f32.mrf.mxu0
        %v1582 = vpop.f32.mrf.mxu0
        %v1583 = vpop.f32.mrf.mxu0
        %1584 = vdwg.mxu0
        %v1586 = vsel %vm1015, %v1446, 0
        %v1589 = vsel %vm1261, %v756, 0
        %1591 = vmatprep.subr.bf16.mxu0 0
        %1592 = vmatpush1.bf16.msra.mxu0 0
        %1593 = vmatprep.subr.bf16.mxu0 0
        %1594 = vmatpush1.bf16.msra.mxu0 0
        %1595 = vmatprep.subr.bf16.mxu0 0
        %1596 = vmatpush1.bf16.msra.mxu0 0
        %1597 = vmatprep.subr.bf16.mxu0 0
        %1598 = vmatpush1.bf16.msra.mxu0 0
        %1599 = vmatprep.subr.bf16.mxu0 0
        %1600 = vmatpush1.bf16.msra.mxu0 0
        %1601 = vmatprep.subr.bf16.mxu0 0
        %1602 = vmatpush1.bf16.msra.mxu0 0
        %1603 = vmatprep.subr.bf16.mxu0 0
        %1604 = vmatpush1.bf16.msra.mxu0 0
        %1605 = vmatprep.subr.bf16.mxu0 0
        %1606 = vmatpush1.bf16.msra.mxu0 %v1589
        %1607 = vmatprep.subr.bf16.mxu0 0
        %1608 = vmatpush2.bf16.msra.mxu0 0
        %1609 = vmatprep.subr.bf16.mxu0 0
        %1610 = vmatpush2.bf16.msra.mxu0 0
        %1611 = vmatprep.subr.bf16.mxu0 0
        %1612 = vmatpush2.bf16.msra.mxu0 0
        %1613 = vmatprep.subr.bf16.mxu0 0
        %1614 = vmatpush2.bf16.msra.mxu0 0
        %1615 = vmatprep.subr.bf16.mxu0 0
        %1616 = vmatpush2.bf16.msra.mxu0 0
        %1617 = vmatprep.subr.bf16.mxu0 0
        %1618 = vmatpush2.bf16.msra.mxu0 0
        %1619 = vmatprep.subr.bf16.mxu0 0
        %1620 = vmatpush2.bf16.msra.mxu0 0
        %1621 = vmatprep.subr.bf16.mxu0 0
        %1622 = vmatpush2.bf16.msra.mxu0 0
        %1623 = vmatprep.mubr.bf16.mxu0 0
        %1624 = vmatmul.mubr.bf16.gmra.mxu0 %v1586
        %v1625 = vpop.f32.mrf.mxu0
        %v1626 = vadd.f32 0.0, %v1625
        %v1627 = vpop.f32.mrf.mxu0
        %v1628 = vpop.f32.mrf.mxu0
        %v1629 = vpop.f32.mrf.mxu0
        %1630 = vdwg.mxu0
        %v1631 = vsel %vm763, %v1488, 0.0
        %v1632 = vsel %vm763, %v1534, 0.0
        %v1633 = vadd.f32 %v1631, %v1632
        %v1634 = vsel %vm763, %v1580, 0.0
        %v1635 = vadd.f32 %v1633, %v1634
        %v1636 = vsel %vm763, %v1626, 0.0
        %v1637 = vadd.f32 %v1635, %v1636
        %v1639 = vlaneseq
        %v1640 = vshrl.u32 %v1639, 7
        %v1641 = vsub.s32 0, %v1640
        %v1642 = vrot.slane %v760, %v1641
        %v1644 = vadd.f32 %v1637, %v1642
        %v1645 = vadd.f32 %v762, %v1644
        %v1646 = vsel %vm763, %v1645, 0.0
        %1647 = vadd.xlane.f32.xlu0 %v1646
        %v1648 = vpop.xlane.xlu0 %1647
        %v1649 = vmul.f32 %v1648, %v767
        %v1650 = vsub.f32 %v1645, %v1649
        %v1651 = vmul.f32 %v1650, %v1650
        %v1652 = vsel %vm763, %v1651, 0.0
        %1653 = vadd.xlane.f32.xlu0 %v1652
        %v1654 = vpop.xlane.xlu0 %1653
        %v1655 = vmul.f32 %v1654, %v767
        %v1656 = vadd.f32 %v1655, 1e-05
        %v1657 = vrsqrt.pop %v1656
        %v1658 = vmul.f32 %v1650, %v1657
        %v1659 = vmul.f32 %v1658, %v782
        %v1660 = vadd.f32 %v1659, %v789
        %v1661 = vld [vmem:[%s735] sm:$0x3]
        %v1662 = vpack.c.bf16 %v1660, %v1660
        %v1664 = vsel %vm763, %v1662, 0
        %1666 = vmatprep.subr.bf16.mxu0 0
        %1667 = vmatpush1.bf16.msra.mxu0 0
        %1668 = vmatprep.subr.bf16.mxu0 0
        %1669 = vmatpush1.bf16.msra.mxu0 0
        %1670 = vmatprep.subr.bf16.mxu0 0
        %1671 = vmatpush1.bf16.msra.mxu0 0
        %1672 = vmatprep.subr.bf16.mxu0 0
        %1673 = vmatpush1.bf16.msra.mxu0 0
        %1674 = vmatprep.subr.bf16.mxu0 0
        %1675 = vmatpush1.bf16.msra.mxu0 0
        %1676 = vmatprep.subr.bf16.mxu0 0
        %1677 = vmatpush1.bf16.msra.mxu0 0
        %1678 = vmatprep.subr.bf16.mxu0 0
        %1679 = vmatpush1.bf16.msra.mxu0 %v810
        %1680 = vmatprep.subr.bf16.mxu0 0
        %1681 = vmatpush1.bf16.msra.mxu0 %v809
        %1682 = vmatprep.subr.bf16.mxu0 0
        %1683 = vmatpush2.bf16.msra.mxu0 0
        %1684 = vmatprep.subr.bf16.mxu0 0
        %1685 = vmatpush2.bf16.msra.mxu0 0
        %1686 = vmatprep.subr.bf16.mxu0 0
        %1687 = vmatpush2.bf16.msra.mxu0 0
        %1688 = vmatprep.subr.bf16.mxu0 0
        %1689 = vmatpush2.bf16.msra.mxu0 0
        %1690 = vmatprep.subr.bf16.mxu0 0
        %1691 = vmatpush2.bf16.msra.mxu0 0
        %1692 = vmatprep.subr.bf16.mxu0 0
        %1693 = vmatpush2.bf16.msra.mxu0 0
        %1694 = vmatprep.subr.bf16.mxu0 0
        %1695 = vmatpush2.bf16.msra.mxu0 0
        %1696 = vmatprep.subr.bf16.mxu0 0
        %1697 = vmatpush2.bf16.msra.mxu0 0
        %1698 = vmatprep.mubr.bf16.mxu0 0
        %1699 = vmatmul.mubr.bf16.gmra.mxu0 %v1664
        %v1700 = vpop.f32.mrf.mxu0
        %v1701 = vadd.f32 %v799, %v1700
        %v1702 = vpop.f32.mrf.mxu0
        %v1703 = vpop.f32.mrf.mxu0
        %v1704 = vpop.f32.mrf.mxu0
        %1705 = vdwg.mxu0
        %v1707 = vsel %vm763, %v792, 0
        %1709 = vmatprep.subr.bf16.mxu0 0
        %1710 = vmatpush1.bf16.msra.mxu0 0
        %1711 = vmatprep.subr.bf16.mxu0 0
        %1712 = vmatpush1.bf16.msra.mxu0 0
        %1713 = vmatprep.subr.bf16.mxu0 0
        %1714 = vmatpush1.bf16.msra.mxu0 0
        %1715 = vmatprep.subr.bf16.mxu0 0
        %1716 = vmatpush1.bf16.msra.mxu0 0
        %1717 = vmatprep.subr.bf16.mxu0 0
        %1718 = vmatpush1.bf16.msra.mxu0 0
        %1719 = vmatprep.subr.bf16.mxu0 0
        %1720 = vmatpush1.bf16.msra.mxu0 0
        %1721 = vmatprep.subr.bf16.mxu0 0
        %1722 = vmatpush1.bf16.msra.mxu0 %v871
        %1723 = vmatprep.subr.bf16.mxu0 0
        %1724 = vmatpush1.bf16.msra.mxu0 %v870
        %1725 = vmatprep.subr.bf16.mxu0 0
        %1726 = vmatpush2.bf16.msra.mxu0 0
        %1727 = vmatprep.subr.bf16.mxu0 0
        %1728 = vmatpush2.bf16.msra.mxu0 0
        %1729 = vmatprep.subr.bf16.mxu0 0
        %1730 = vmatpush2.bf16.msra.mxu0 0
        %1731 = vmatprep.subr.bf16.mxu0 0
        %1732 = vmatpush2.bf16.msra.mxu0 0
        %1733 = vmatprep.subr.bf16.mxu0 0
        %1734 = vmatpush2.bf16.msra.mxu0 0
        %1735 = vmatprep.subr.bf16.mxu0 0
        %1736 = vmatpush2.bf16.msra.mxu0 0
        %1737 = vmatprep.subr.bf16.mxu0 0
        %1738 = vmatpush2.bf16.msra.mxu0 0
        %1739 = vmatprep.subr.bf16.mxu0 0
        %1740 = vmatpush2.bf16.msra.mxu0 0
        %1741 = vmatprep.mubr.bf16.mxu0 0
        %1742 = vmatmul.mubr.bf16.gmra.mxu0 %v1707
        %v1743 = vpop.f32.mrf.mxu0
        %v1744 = vadd.f32 %v860, %v1743
        %v1745 = vpop.f32.mrf.mxu0
        %v1746 = vpop.f32.mrf.mxu0
        %v1747 = vpop.f32.mrf.mxu0
        %1748 = vdwg.mxu0
        %1749 = vmatprep.subr.bf16.mxu0 0
        %1750 = vmatpush1.bf16.msra.mxu0 0
        %1751 = vmatprep.subr.bf16.mxu0 0
        %1752 = vmatpush1.bf16.msra.mxu0 0
        %1753 = vmatprep.subr.bf16.mxu0 0
        %1754 = vmatpush1.bf16.msra.mxu0 0
        %1755 = vmatprep.subr.bf16.mxu0 0
        %1756 = vmatpush1.bf16.msra.mxu0 0
        %1757 = vmatprep.subr.bf16.mxu0 0
        %1758 = vmatpush1.bf16.msra.mxu0 0
        %1759 = vmatprep.subr.bf16.mxu0 0
        %1760 = vmatpush1.bf16.msra.mxu0 0
        %1761 = vmatprep.subr.bf16.mxu0 0
        %1762 = vmatpush1.bf16.msra.mxu0 %v929
        %1763 = vmatprep.subr.bf16.mxu0 0
        %1764 = vmatpush1.bf16.msra.mxu0 %v928
        %1765 = vmatprep.subr.bf16.mxu0 0
        %1766 = vmatpush2.bf16.msra.mxu0 0
        %1767 = vmatprep.subr.bf16.mxu0 0
        %1768 = vmatpush2.bf16.msra.mxu0 0
        %1769 = vmatprep.subr.bf16.mxu0 0
        %1770 = vmatpush2.bf16.msra.mxu0 0
        %1771 = vmatprep.subr.bf16.mxu0 0
        %1772 = vmatpush2.bf16.msra.mxu0 0
        %1773 = vmatprep.subr.bf16.mxu0 0
        %1774 = vmatpush2.bf16.msra.mxu0 0
        %1775 = vmatprep.subr.bf16.mxu0 0
        %1776 = vmatpush2.bf16.msra.mxu0 0
        %1777 = vmatprep.subr.bf16.mxu0 0
        %1778 = vmatpush2.bf16.msra.mxu0 0
        %1779 = vmatprep.subr.bf16.mxu0 0
        %1780 = vmatpush2.bf16.msra.mxu0 0
        %1781 = vmatprep.mubr.bf16.mxu0 0
        %1782 = vmatmul.mubr.bf16.gmra.mxu0 %v1707
        %v1783 = vpop.f32.mrf.mxu0
        %v1784 = vadd.f32 %v918, %v1783
        %v1785 = vpop.f32.mrf.mxu0
        %v1786 = vpop.f32.mrf.mxu0
        %v1787 = vpop.f32.mrf.mxu0
        %1788 = vdwg.mxu0
        %v1789 = vmul.f32 %v1701, 0.35355338
        %1791 = vrot.lane.b32.xlu0 %v1789, 120
        %v1792 = vpop.permute.xlu0 %1791
        %1794 = vrot.lane.b32.xlu0 %v1789, 112
        %v1795 = vpop.permute.xlu0 %1794
        %1797 = vrot.lane.b32.xlu0 %v1789, 104
        %v1798 = vpop.permute.xlu0 %1797
        %v1800 = vpack.c.bf16 %v1789, %v1789
        %v1801 = vpack.c.bf16 %v1792, %v1792
        %v1802 = vpack.c.bf16 %v1795, %v1795
        %v1803 = vpack.c.bf16 %v1798, %v1798
        %1805 = vrot.lane.b32.xlu0 %v1744, 120
        %v1806 = vpop.permute.xlu0 %1805
        %1808 = vrot.lane.b32.xlu0 %v1744, 112
        %v1809 = vpop.permute.xlu0 %1808
        %1811 = vrot.lane.b32.xlu0 %v1744, 104
        %v1812 = vpop.permute.xlu0 %1811
        %v1814 = vpack.c.bf16 %v1744, %v1744
        %v1815 = vpack.c.bf16 %v1806, %v1806
        %v1816 = vpack.c.bf16 %v1809, %v1809
        %v1817 = vpack.c.bf16 %v1812, %v1812
        %1819 = vrot.lane.b32.xlu0 %v1784, 120
        %v1820 = vpop.permute.xlu0 %1819
        %1822 = vrot.lane.b32.xlu0 %v1784, 112
        %v1823 = vpop.permute.xlu0 %1822
        %1825 = vrot.lane.b32.xlu0 %v1784, 104
        %v1826 = vpop.permute.xlu0 %1825
        %v1828 = vpack.c.bf16 %v1784, %v1784
        %v1829 = vpack.c.bf16 %v1820, %v1820
        %v1830 = vpack.c.bf16 %v1823, %v1823
        %v1831 = vpack.c.bf16 %v1826, %v1826
        %v1833 = vsel %vm1015, %v1800, 0
        %v1836 = vsel %vm1015, %v1814, 0
        %1838 = vmatprep.subr.bf16.mxu0 0
        %1839 = vmatpush1.bf16.xpose.msra.mxu0 0
        %1840 = vmatprep.subr.bf16.mxu0 0
        %1841 = vmatpush1.bf16.xpose.msra.mxu0 0
        %1842 = vmatprep.subr.bf16.mxu0 0
        %1843 = vmatpush1.bf16.xpose.msra.mxu0 0
        %1844 = vmatprep.subr.bf16.mxu0 0
        %1845 = vmatpush1.bf16.xpose.msra.mxu0 0
        %1846 = vmatprep.subr.bf16.mxu0 0
        %1847 = vmatpush1.bf16.xpose.msra.mxu0 0
        %1848 = vmatprep.subr.bf16.mxu0 0
        %1849 = vmatpush1.bf16.xpose.msra.mxu0 0
        %1850 = vmatprep.subr.bf16.mxu0 0
        %1851 = vmatpush1.bf16.xpose.msra.mxu0 0
        %1852 = vmatprep.subr.bf16.mxu0 0
        %1853 = vmatpush1.bf16.xpose.msra.mxu0 %v1836
        %1854 = vmatprep.subr.bf16.mxu0 0
        %1855 = vmatpush2.bf16.xpose.msra.mxu0 0
        %1856 = vmatprep.subr.bf16.mxu0 0
        %1857 = vmatpush2.bf16.xpose.msra.mxu0 0
        %1858 = vmatprep.subr.bf16.mxu0 0
        %1859 = vmatpush2.bf16.xpose.msra.mxu0 0
        %1860 = vmatprep.subr.bf16.mxu0 0
        %1861 = vmatpush2.bf16.xpose.msra.mxu0 0
        %1862 = vmatprep.subr.bf16.mxu0 0
        %1863 = vmatpush2.bf16.xpose.msra.mxu0 0
        %1864 = vmatprep.subr.bf16.mxu0 0
        %1865 = vmatpush2.bf16.xpose.msra.mxu0 0
        %1866 = vmatprep.subr.bf16.mxu0 0
        %1867 = vmatpush2.bf16.xpose.msra.mxu0 0
        %1868 = vmatprep.subr.bf16.mxu0 0
        %1869 = vmatpush2.bf16.xpose.msra.mxu0 0
        %1870 = vmatprep.mubr.bf16.mxu0 0
        %1871 = vmatmul.mubr.bf16.gmra.mxu0 %v1833
        %v1872 = vpop.f32.mrf.mxu0
        %v1873 = vadd.f32 0.0, %v1872
        %v1874 = vpop.f32.mrf.mxu0
        %v1875 = vpop.f32.mrf.mxu0
        %v1876 = vpop.f32.mrf.mxu0
        %1877 = vdwg.mxu0
        %v1879 = vsel %vm1015, %v1801, 0
        %v1882 = vsel %vm1015, %v1815, 0
        %1884 = vmatprep.subr.bf16.mxu0 0
        %1885 = vmatpush1.bf16.xpose.msra.mxu0 0
        %1886 = vmatprep.subr.bf16.mxu0 0
        %1887 = vmatpush1.bf16.xpose.msra.mxu0 0
        %1888 = vmatprep.subr.bf16.mxu0 0
        %1889 = vmatpush1.bf16.xpose.msra.mxu0 0
        %1890 = vmatprep.subr.bf16.mxu0 0
        %1891 = vmatpush1.bf16.xpose.msra.mxu0 0
        %1892 = vmatprep.subr.bf16.mxu0 0
        %1893 = vmatpush1.bf16.xpose.msra.mxu0 0
        %1894 = vmatprep.subr.bf16.mxu0 0
        %1895 = vmatpush1.bf16.xpose.msra.mxu0 0
        %1896 = vmatprep.subr.bf16.mxu0 0
        %1897 = vmatpush1.bf16.xpose.msra.mxu0 0
        %1898 = vmatprep.subr.bf16.mxu0 0
        %1899 = vmatpush1.bf16.xpose.msra.mxu0 %v1882
        %1900 = vmatprep.subr.bf16.mxu0 0
        %1901 = vmatpush2.bf16.xpose.msra.mxu0 0
        %1902 = vmatprep.subr.bf16.mxu0 0
        %1903 = vmatpush2.bf16.xpose.msra.mxu0 0
        %1904 = vmatprep.subr.bf16.mxu0 0
        %1905 = vmatpush2.bf16.xpose.msra.mxu0 0
        %1906 = vmatprep.subr.bf16.mxu0 0
        %1907 = vmatpush2.bf16.xpose.msra.mxu0 0
        %1908 = vmatprep.subr.bf16.mxu0 0
        %1909 = vmatpush2.bf16.xpose.msra.mxu0 0
        %1910 = vmatprep.subr.bf16.mxu0 0
        %1911 = vmatpush2.bf16.xpose.msra.mxu0 0
        %1912 = vmatprep.subr.bf16.mxu0 0
        %1913 = vmatpush2.bf16.xpose.msra.mxu0 0
        %1914 = vmatprep.subr.bf16.mxu0 0
        %1915 = vmatpush2.bf16.xpose.msra.mxu0 0
        %1916 = vmatprep.mubr.bf16.mxu0 0
        %1917 = vmatmul.mubr.bf16.gmra.mxu0 %v1879
        %v1918 = vpop.f32.mrf.mxu0
        %v1919 = vadd.f32 0.0, %v1918
        %v1920 = vpop.f32.mrf.mxu0
        %v1921 = vpop.f32.mrf.mxu0
        %v1922 = vpop.f32.mrf.mxu0
        %1923 = vdwg.mxu0
        %v1925 = vsel %vm1015, %v1802, 0
        %v1928 = vsel %vm1015, %v1816, 0
        %1930 = vmatprep.subr.bf16.mxu0 0
        %1931 = vmatpush1.bf16.xpose.msra.mxu0 0
        %1932 = vmatprep.subr.bf16.mxu0 0
        %1933 = vmatpush1.bf16.xpose.msra.mxu0 0
        %1934 = vmatprep.subr.bf16.mxu0 0
        %1935 = vmatpush1.bf16.xpose.msra.mxu0 0
        %1936 = vmatprep.subr.bf16.mxu0 0
        %1937 = vmatpush1.bf16.xpose.msra.mxu0 0
        %1938 = vmatprep.subr.bf16.mxu0 0
        %1939 = vmatpush1.bf16.xpose.msra.mxu0 0
        %1940 = vmatprep.subr.bf16.mxu0 0
        %1941 = vmatpush1.bf16.xpose.msra.mxu0 0
        %1942 = vmatprep.subr.bf16.mxu0 0
        %1943 = vmatpush1.bf16.xpose.msra.mxu0 0
        %1944 = vmatprep.subr.bf16.mxu0 0
        %1945 = vmatpush1.bf16.xpose.msra.mxu0 %v1928
        %1946 = vmatprep.subr.bf16.mxu0 0
        %1947 = vmatpush2.bf16.xpose.msra.mxu0 0
        %1948 = vmatprep.subr.bf16.mxu0 0
        %1949 = vmatpush2.bf16.xpose.msra.mxu0 0
        %1950 = vmatprep.subr.bf16.mxu0 0
        %1951 = vmatpush2.bf16.xpose.msra.mxu0 0
        %1952 = vmatprep.subr.bf16.mxu0 0
        %1953 = vmatpush2.bf16.xpose.msra.mxu0 0
        %1954 = vmatprep.subr.bf16.mxu0 0
        %1955 = vmatpush2.bf16.xpose.msra.mxu0 0
        %1956 = vmatprep.subr.bf16.mxu0 0
        %1957 = vmatpush2.bf16.xpose.msra.mxu0 0
        %1958 = vmatprep.subr.bf16.mxu0 0
        %1959 = vmatpush2.bf16.xpose.msra.mxu0 0
        %1960 = vmatprep.subr.bf16.mxu0 0
        %1961 = vmatpush2.bf16.xpose.msra.mxu0 0
        %1962 = vmatprep.mubr.bf16.mxu0 0
        %1963 = vmatmul.mubr.bf16.gmra.mxu0 %v1925
        %v1964 = vpop.f32.mrf.mxu0
        %v1965 = vadd.f32 0.0, %v1964
        %v1966 = vpop.f32.mrf.mxu0
        %v1967 = vpop.f32.mrf.mxu0
        %v1968 = vpop.f32.mrf.mxu0
        %1969 = vdwg.mxu0
        %v1971 = vsel %vm1015, %v1803, 0
        %v1974 = vsel %vm1015, %v1817, 0
        %1976 = vmatprep.subr.bf16.mxu0 0
        %1977 = vmatpush1.bf16.xpose.msra.mxu0 0
        %1978 = vmatprep.subr.bf16.mxu0 0
        %1979 = vmatpush1.bf16.xpose.msra.mxu0 0
        %1980 = vmatprep.subr.bf16.mxu0 0
        %1981 = vmatpush1.bf16.xpose.msra.mxu0 0
        %1982 = vmatprep.subr.bf16.mxu0 0
        %1983 = vmatpush1.bf16.xpose.msra.mxu0 0
        %1984 = vmatprep.subr.bf16.mxu0 0
        %1985 = vmatpush1.bf16.xpose.msra.mxu0 0
        %1986 = vmatprep.subr.bf16.mxu0 0
        %1987 = vmatpush1.bf16.xpose.msra.mxu0 0
        %1988 = vmatprep.subr.bf16.mxu0 0
        %1989 = vmatpush1.bf16.xpose.msra.mxu0 0
        %1990 = vmatprep.subr.bf16.mxu0 0
        %1991 = vmatpush1.bf16.xpose.msra.mxu0 %v1974
        %1992 = vmatprep.subr.bf16.mxu0 0
        %1993 = vmatpush2.bf16.xpose.msra.mxu0 0
        %1994 = vmatprep.subr.bf16.mxu0 0
        %1995 = vmatpush2.bf16.xpose.msra.mxu0 0
        %1996 = vmatprep.subr.bf16.mxu0 0
        %1997 = vmatpush2.bf16.xpose.msra.mxu0 0
        %1998 = vmatprep.subr.bf16.mxu0 0
        %1999 = vmatpush2.bf16.xpose.msra.mxu0 0
        %2000 = vmatprep.subr.bf16.mxu0 0
        %2001 = vmatpush2.bf16.xpose.msra.mxu0 0
        %2002 = vmatprep.subr.bf16.mxu0 0
        %2003 = vmatpush2.bf16.xpose.msra.mxu0 0
        %2004 = vmatprep.subr.bf16.mxu0 0
        %2005 = vmatpush2.bf16.xpose.msra.mxu0 0
        %2006 = vmatprep.subr.bf16.mxu0 0
        %2007 = vmatpush2.bf16.xpose.msra.mxu0 0
        %2008 = vmatprep.mubr.bf16.mxu0 0
        %2009 = vmatmul.mubr.bf16.gmra.mxu0 %v1971
        %v2010 = vpop.f32.mrf.mxu0
        %v2011 = vadd.f32 0.0, %v2010
        %v2012 = vpop.f32.mrf.mxu0
        %v2013 = vpop.f32.mrf.mxu0
        %v2014 = vpop.f32.mrf.mxu0
        %2015 = vdwg.mxu0
        %vm2016 = vnez %v1661
        %v2017 = vsel %vm2016, 16843009, 0
        %v2018 = vunpack.c.0.s8 %v2017
        %vm2019 = vcmp.ne.s32.totalorder %v2018, 0
        %v2020 = vsel %vm2019, 1, 0
        %vm2021 = vcmp.eq.s32.totalorder %v2020, 1
        %v2022 = vsel %vm2021, -1e+10, %v1873
        %v2023 = vsel %vm2021, -1e+10, %v1919
        %v2024 = vsel %vm2021, -1e+10, %v1965
        %v2025 = vsel %vm2021, -1e+10, %v2011
        %v2026 = vsel %vm1015, %v2022, -inf
        %2027 = vmax.xlane.f32.xlu0 %v2026
        %v2028 = vpop.xlane.xlu0 %2027
        %v2029 = vsel %vm1015, %v2023, -inf
        %2030 = vmax.xlane.f32.xlu0 %v2029
        %v2031 = vpop.xlane.xlu0 %2030
        %v2032 = vsel %vm1015, %v2024, -inf
        %2033 = vmax.xlane.f32.xlu0 %v2032
        %v2034 = vpop.xlane.xlu0 %2033
        %v2035 = vsel %vm1015, %v2025, -inf
        %2036 = vmax.xlane.f32.xlu0 %v2035
        %v2037 = vpop.xlane.xlu0 %2036
        %v2038 = vsub.f32 %v2022, %v2028
        %v2039 = vsub.f32 %v2023, %v2031
        %v2040 = vsub.f32 %v2024, %v2034
        %v2041 = vsub.f32 %v2025, %v2037
        %v2042 = vmul.f32 %v2038, 1.442695
        %v2043 = vpow.pop %v2042
        %v2044 = vmul.f32 %v2039, 1.442695
        %v2045 = vpow.pop %v2044
        %v2046 = vmul.f32 %v2040, 1.442695
        %v2047 = vpow.pop %v2046
        %v2048 = vmul.f32 %v2041, 1.442695
        %v2049 = vpow.pop %v2048
        %v2050 = vsel %vm1015, %v2043, 0.0
        %2051 = vadd.xlane.f32.xlu0 %v2050
        %v2052 = vpop.xlane.xlu0 %2051
        %v2053 = vsel %vm1015, %v2045, 0.0
        %2054 = vadd.xlane.f32.xlu0 %v2053
        %v2055 = vpop.xlane.xlu0 %2054
        %v2056 = vsel %vm1015, %v2047, 0.0
        %2057 = vadd.xlane.f32.xlu0 %v2056
        %v2058 = vpop.xlane.xlu0 %2057
        %v2059 = vsel %vm1015, %v2049, 0.0
        %2060 = vadd.xlane.f32.xlu0 %v2059
        %v2061 = vpop.xlane.xlu0 %2060
        %v2062 = vrcp.pop %v2052
        %v2063 = vrcp.pop %v2055
        %v2064 = vrcp.pop %v2058
        %v2065 = vrcp.pop %v2061
        %v2066 = vmul.f32 %v2043, %v2062
        %v2067 = vmul.f32 %v2045, %v2063
        %v2068 = vmul.f32 %v2047, %v2064
        %v2069 = vmul.f32 %v2049, %v2065
        %v2070 = vpack.c.bf16 %v2066, %v2066
        %v2071 = vpack.c.bf16 %v2067, %v2067
        %v2072 = vpack.c.bf16 %v2068, %v2068
        %v2073 = vpack.c.bf16 %v2069, %v2069
        %v2075 = vsel %vm1015, %v2070, 0
        %v2078 = vsel %vm1261, %v1828, 0
        %2080 = vmatprep.subr.bf16.mxu0 0
        %2081 = vmatpush1.bf16.msra.mxu0 0
        %2082 = vmatprep.subr.bf16.mxu0 0
        %2083 = vmatpush1.bf16.msra.mxu0 0
        %2084 = vmatprep.subr.bf16.mxu0 0
        %2085 = vmatpush1.bf16.msra.mxu0 0
        %2086 = vmatprep.subr.bf16.mxu0 0
        %2087 = vmatpush1.bf16.msra.mxu0 0
        %2088 = vmatprep.subr.bf16.mxu0 0
        %2089 = vmatpush1.bf16.msra.mxu0 0
        %2090 = vmatprep.subr.bf16.mxu0 0
        %2091 = vmatpush1.bf16.msra.mxu0 0
        %2092 = vmatprep.subr.bf16.mxu0 0
        %2093 = vmatpush1.bf16.msra.mxu0 0
        %2094 = vmatprep.subr.bf16.mxu0 0
        %2095 = vmatpush1.bf16.msra.mxu0 %v2078
        %2096 = vmatprep.subr.bf16.mxu0 0
        %2097 = vmatpush2.bf16.msra.mxu0 0
        %2098 = vmatprep.subr.bf16.mxu0 0
        %2099 = vmatpush2.bf16.msra.mxu0 0
        %2100 = vmatprep.subr.bf16.mxu0 0
        %2101 = vmatpush2.bf16.msra.mxu0 0
        %2102 = vmatprep.subr.bf16.mxu0 0
        %2103 = vmatpush2.bf16.msra.mxu0 0
        %2104 = vmatprep.subr.bf16.mxu0 0
        %2105 = vmatpush2.bf16.msra.mxu0 0
        %2106 = vmatprep.subr.bf16.mxu0 0
        %2107 = vmatpush2.bf16.msra.mxu0 0
        %2108 = vmatprep.subr.bf16.mxu0 0
        %2109 = vmatpush2.bf16.msra.mxu0 0
        %2110 = vmatprep.subr.bf16.mxu0 0
        %2111 = vmatpush2.bf16.msra.mxu0 0
        %2112 = vmatprep.mubr.bf16.mxu0 0
        %2113 = vmatmul.mubr.bf16.gmra.mxu0 %v2075
        %v2114 = vpop.f32.mrf.mxu0
        %v2115 = vadd.f32 0.0, %v2114
        %v2116 = vpop.f32.mrf.mxu0
        %v2117 = vpop.f32.mrf.mxu0
        %v2118 = vpop.f32.mrf.mxu0
        %2119 = vdwg.mxu0
        %v2121 = vsel %vm1015, %v2071, 0
        %v2124 = vsel %vm1261, %v1829, 0
        %2126 = vmatprep.subr.bf16.mxu0 0
        %2127 = vmatpush1.bf16.msra.mxu0 0
        %2128 = vmatprep.subr.bf16.mxu0 0
        %2129 = vmatpush1.bf16.msra.mxu0 0
        %2130 = vmatprep.subr.bf16.mxu0 0
        %2131 = vmatpush1.bf16.msra.mxu0 0
        %2132 = vmatprep.subr.bf16.mxu0 0
        %2133 = vmatpush1.bf16.msra.mxu0 0
        %2134 = vmatprep.subr.bf16.mxu0 0
        %2135 = vmatpush1.bf16.msra.mxu0 0
        %2136 = vmatprep.subr.bf16.mxu0 0
        %2137 = vmatpush1.bf16.msra.mxu0 0
        %2138 = vmatprep.subr.bf16.mxu0 0
        %2139 = vmatpush1.bf16.msra.mxu0 0
        %2140 = vmatprep.subr.bf16.mxu0 0
        %2141 = vmatpush1.bf16.msra.mxu0 %v2124
        %2142 = vmatprep.subr.bf16.mxu0 0
        %2143 = vmatpush2.bf16.msra.mxu0 0
        %2144 = vmatprep.subr.bf16.mxu0 0
        %2145 = vmatpush2.bf16.msra.mxu0 0
        %2146 = vmatprep.subr.bf16.mxu0 0
        %2147 = vmatpush2.bf16.msra.mxu0 0
        %2148 = vmatprep.subr.bf16.mxu0 0
        %2149 = vmatpush2.bf16.msra.mxu0 0
        %2150 = vmatprep.subr.bf16.mxu0 0
        %2151 = vmatpush2.bf16.msra.mxu0 0
        %2152 = vmatprep.subr.bf16.mxu0 0
        %2153 = vmatpush2.bf16.msra.mxu0 0
        %2154 = vmatprep.subr.bf16.mxu0 0
        %2155 = vmatpush2.bf16.msra.mxu0 0
        %2156 = vmatprep.subr.bf16.mxu0 0
        %2157 = vmatpush2.bf16.msra.mxu0 0
        %2158 = vmatprep.mubr.bf16.mxu0 0
        %2159 = vmatmul.mubr.bf16.gmra.mxu0 %v2121
        %v2160 = vpop.f32.mrf.mxu0
        %v2161 = vadd.f32 0.0, %v2160
        %v2162 = vpop.f32.mrf.mxu0
        %v2163 = vpop.f32.mrf.mxu0
        %v2164 = vpop.f32.mrf.mxu0
        %2165 = vdwg.mxu0
        %v2167 = vsel %vm1015, %v2072, 0
        %v2170 = vsel %vm1261, %v1830, 0
        %2172 = vmatprep.subr.bf16.mxu0 0
        %2173 = vmatpush1.bf16.msra.mxu0 0
        %2174 = vmatprep.subr.bf16.mxu0 0
        %2175 = vmatpush1.bf16.msra.mxu0 0
        %2176 = vmatprep.subr.bf16.mxu0 0
        %2177 = vmatpush1.bf16.msra.mxu0 0
        %2178 = vmatprep.subr.bf16.mxu0 0
        %2179 = vmatpush1.bf16.msra.mxu0 0
        %2180 = vmatprep.subr.bf16.mxu0 0
        %2181 = vmatpush1.bf16.msra.mxu0 0
        %2182 = vmatprep.subr.bf16.mxu0 0
        %2183 = vmatpush1.bf16.msra.mxu0 0
        %2184 = vmatprep.subr.bf16.mxu0 0
        %2185 = vmatpush1.bf16.msra.mxu0 0
        %2186 = vmatprep.subr.bf16.mxu0 0
        %2187 = vmatpush1.bf16.msra.mxu0 %v2170
        %2188 = vmatprep.subr.bf16.mxu0 0
        %2189 = vmatpush2.bf16.msra.mxu0 0
        %2190 = vmatprep.subr.bf16.mxu0 0
        %2191 = vmatpush2.bf16.msra.mxu0 0
        %2192 = vmatprep.subr.bf16.mxu0 0
        %2193 = vmatpush2.bf16.msra.mxu0 0
        %2194 = vmatprep.subr.bf16.mxu0 0
        %2195 = vmatpush2.bf16.msra.mxu0 0
        %2196 = vmatprep.subr.bf16.mxu0 0
        %2197 = vmatpush2.bf16.msra.mxu0 0
        %2198 = vmatprep.subr.bf16.mxu0 0
        %2199 = vmatpush2.bf16.msra.mxu0 0
        %2200 = vmatprep.subr.bf16.mxu0 0
        %2201 = vmatpush2.bf16.msra.mxu0 0
        %2202 = vmatprep.subr.bf16.mxu0 0
        %2203 = vmatpush2.bf16.msra.mxu0 0
        %2204 = vmatprep.mubr.bf16.mxu0 0
        %2205 = vmatmul.mubr.bf16.gmra.mxu0 %v2167
        %v2206 = vpop.f32.mrf.mxu0
        %v2207 = vadd.f32 0.0, %v2206
        %v2208 = vpop.f32.mrf.mxu0
        %v2209 = vpop.f32.mrf.mxu0
        %v2210 = vpop.f32.mrf.mxu0
        %2211 = vdwg.mxu0
        %v2213 = vsel %vm1015, %v2073, 0
        %v2216 = vsel %vm1261, %v1831, 0
        %2218 = vmatprep.subr.bf16.mxu0 0
        %2219 = vmatpush1.bf16.msra.mxu0 0
        %2220 = vmatprep.subr.bf16.mxu0 0
        %2221 = vmatpush1.bf16.msra.mxu0 0
        %2222 = vmatprep.subr.bf16.mxu0 0
        %2223 = vmatpush1.bf16.msra.mxu0 0
        %2224 = vmatprep.subr.bf16.mxu0 0
        %2225 = vmatpush1.bf16.msra.mxu0 0
        %2226 = vmatprep.subr.bf16.mxu0 0
        %2227 = vmatpush1.bf16.msra.mxu0 0
        %2228 = vmatprep.subr.bf16.mxu0 0
        %2229 = vmatpush1.bf16.msra.mxu0 0
        %2230 = vmatprep.subr.bf16.mxu0 0
        %2231 = vmatpush1.bf16.msra.mxu0 0
        %2232 = vmatprep.subr.bf16.mxu0 0
        %2233 = vmatpush1.bf16.msra.mxu0 %v2216
        %2234 = vmatprep.subr.bf16.mxu0 0
        %2235 = vmatpush2.bf16.msra.mxu0 0
        %2236 = vmatprep.subr.bf16.mxu0 0
        %2237 = vmatpush2.bf16.msra.mxu0 0
        %2238 = vmatprep.subr.bf16.mxu0 0
        %2239 = vmatpush2.bf16.msra.mxu0 0
        %2240 = vmatprep.subr.bf16.mxu0 0
        %2241 = vmatpush2.bf16.msra.mxu0 0
        %2242 = vmatprep.subr.bf16.mxu0 0
        %2243 = vmatpush2.bf16.msra.mxu0 0
        %2244 = vmatprep.subr.bf16.mxu0 0
        %2245 = vmatpush2.bf16.msra.mxu0 0
        %2246 = vmatprep.subr.bf16.mxu0 0
        %2247 = vmatpush2.bf16.msra.mxu0 0
        %2248 = vmatprep.subr.bf16.mxu0 0
        %2249 = vmatpush2.bf16.msra.mxu0 0
        %2250 = vmatprep.mubr.bf16.mxu0 0
        %2251 = vmatmul.mubr.bf16.gmra.mxu0 %v2213
        %v2252 = vpop.f32.mrf.mxu0
        %v2253 = vadd.f32 0.0, %v2252
        %v2254 = vpop.f32.mrf.mxu0
        %v2255 = vpop.f32.mrf.mxu0
        %v2256 = vpop.f32.mrf.mxu0
        %2257 = vdwg.mxu0
        %v2258 = vpack.c.bf16 %v2115, %v2115
        %v2259 = vpack.c.bf16 %v2161, %v2161
        %v2260 = vpack.c.bf16 %v2207, %v2207
        %v2261 = vpack.c.bf16 %v2253, %v2253
        %v2263 = vsel %vm1015, %v2258, 0
        %2265 = vmatprep.subr.bf16.mxu0 0
        %2266 = vmatpush1.bf16.msra.mxu0 0
        %2267 = vmatprep.subr.bf16.mxu0 0
        %2268 = vmatpush1.bf16.msra.mxu0 0
        %2269 = vmatprep.subr.bf16.mxu0 0
        %2270 = vmatpush1.bf16.msra.mxu0 0
        %2271 = vmatprep.subr.bf16.mxu0 0
        %2272 = vmatpush1.bf16.msra.mxu0 0
        %2273 = vmatprep.subr.bf16.mxu0 0
        %2274 = vmatpush1.bf16.msra.mxu0 0
        %2275 = vmatprep.subr.bf16.mxu0 0
        %2276 = vmatpush1.bf16.msra.mxu0 0
        %2277 = vmatprep.subr.bf16.mxu0 0
        %2278 = vmatpush1.bf16.msra.mxu0 0
        %2279 = vmatprep.subr.bf16.mxu0 0
        %2280 = vmatpush1.bf16.msra.mxu0 %v1451
        %2281 = vmatprep.subr.bf16.mxu0 0
        %2282 = vmatpush2.bf16.msra.mxu0 0
        %2283 = vmatprep.subr.bf16.mxu0 0
        %2284 = vmatpush2.bf16.msra.mxu0 0
        %2285 = vmatprep.subr.bf16.mxu0 0
        %2286 = vmatpush2.bf16.msra.mxu0 0
        %2287 = vmatprep.subr.bf16.mxu0 0
        %2288 = vmatpush2.bf16.msra.mxu0 0
        %2289 = vmatprep.subr.bf16.mxu0 0
        %2290 = vmatpush2.bf16.msra.mxu0 0
        %2291 = vmatprep.subr.bf16.mxu0 0
        %2292 = vmatpush2.bf16.msra.mxu0 0
        %2293 = vmatprep.subr.bf16.mxu0 0
        %2294 = vmatpush2.bf16.msra.mxu0 0
        %2295 = vmatprep.subr.bf16.mxu0 0
        %2296 = vmatpush2.bf16.msra.mxu0 0
        %2297 = vmatprep.mubr.bf16.mxu0 0
        %2298 = vmatmul.mubr.bf16.gmra.mxu0 %v2263
        %v2299 = vpop.f32.mrf.mxu0
        %v2300 = vadd.f32 0.0, %v2299
        %v2301 = vpop.f32.mrf.mxu0
        %v2302 = vpop.f32.mrf.mxu0
        %v2303 = vpop.f32.mrf.mxu0
        %2304 = vdwg.mxu0
        %v2306 = vsel %vm1015, %v2259, 0
        %2308 = vmatprep.subr.bf16.mxu0 0
        %2309 = vmatpush1.bf16.msra.mxu0 0
        %2310 = vmatprep.subr.bf16.mxu0 0
        %2311 = vmatpush1.bf16.msra.mxu0 0
        %2312 = vmatprep.subr.bf16.mxu0 0
        %2313 = vmatpush1.bf16.msra.mxu0 0
        %2314 = vmatprep.subr.bf16.mxu0 0
        %2315 = vmatpush1.bf16.msra.mxu0 0
        %2316 = vmatprep.subr.bf16.mxu0 0
        %2317 = vmatpush1.bf16.msra.mxu0 0
        %2318 = vmatprep.subr.bf16.mxu0 0
        %2319 = vmatpush1.bf16.msra.mxu0 0
        %2320 = vmatprep.subr.bf16.mxu0 0
        %2321 = vmatpush1.bf16.msra.mxu0 0
        %2322 = vmatprep.subr.bf16.mxu0 0
        %2323 = vmatpush1.bf16.msra.mxu0 %v1497
        %2324 = vmatprep.subr.bf16.mxu0 0
        %2325 = vmatpush2.bf16.msra.mxu0 0
        %2326 = vmatprep.subr.bf16.mxu0 0
        %2327 = vmatpush2.bf16.msra.mxu0 0
        %2328 = vmatprep.subr.bf16.mxu0 0
        %2329 = vmatpush2.bf16.msra.mxu0 0
        %2330 = vmatprep.subr.bf16.mxu0 0
        %2331 = vmatpush2.bf16.msra.mxu0 0
        %2332 = vmatprep.subr.bf16.mxu0 0
        %2333 = vmatpush2.bf16.msra.mxu0 0
        %2334 = vmatprep.subr.bf16.mxu0 0
        %2335 = vmatpush2.bf16.msra.mxu0 0
        %2336 = vmatprep.subr.bf16.mxu0 0
        %2337 = vmatpush2.bf16.msra.mxu0 0
        %2338 = vmatprep.subr.bf16.mxu0 0
        %2339 = vmatpush2.bf16.msra.mxu0 0
        %2340 = vmatprep.mubr.bf16.mxu0 0
        %2341 = vmatmul.mubr.bf16.gmra.mxu0 %v2306
        %v2342 = vpop.f32.mrf.mxu0
        %v2343 = vadd.f32 0.0, %v2342
        %v2344 = vpop.f32.mrf.mxu0
        %v2345 = vpop.f32.mrf.mxu0
        %v2346 = vpop.f32.mrf.mxu0
        %2347 = vdwg.mxu0
        %v2349 = vsel %vm1015, %v2260, 0
        %2351 = vmatprep.subr.bf16.mxu0 0
        %2352 = vmatpush1.bf16.msra.mxu0 0
        %2353 = vmatprep.subr.bf16.mxu0 0
        %2354 = vmatpush1.bf16.msra.mxu0 0
        %2355 = vmatprep.subr.bf16.mxu0 0
        %2356 = vmatpush1.bf16.msra.mxu0 0
        %2357 = vmatprep.subr.bf16.mxu0 0
        %2358 = vmatpush1.bf16.msra.mxu0 0
        %2359 = vmatprep.subr.bf16.mxu0 0
        %2360 = vmatpush1.bf16.msra.mxu0 0
        %2361 = vmatprep.subr.bf16.mxu0 0
        %2362 = vmatpush1.bf16.msra.mxu0 0
        %2363 = vmatprep.subr.bf16.mxu0 0
        %2364 = vmatpush1.bf16.msra.mxu0 0
        %2365 = vmatprep.subr.bf16.mxu0 0
        %2366 = vmatpush1.bf16.msra.mxu0 %v1543
        %2367 = vmatprep.subr.bf16.mxu0 0
        %2368 = vmatpush2.bf16.msra.mxu0 0
        %2369 = vmatprep.subr.bf16.mxu0 0
        %2370 = vmatpush2.bf16.msra.mxu0 0
        %2371 = vmatprep.subr.bf16.mxu0 0
        %2372 = vmatpush2.bf16.msra.mxu0 0
        %2373 = vmatprep.subr.bf16.mxu0 0
        %2374 = vmatpush2.bf16.msra.mxu0 0
        %2375 = vmatprep.subr.bf16.mxu0 0
        %2376 = vmatpush2.bf16.msra.mxu0 0
        %2377 = vmatprep.subr.bf16.mxu0 0
        %2378 = vmatpush2.bf16.msra.mxu0 0
        %2379 = vmatprep.subr.bf16.mxu0 0
        %2380 = vmatpush2.bf16.msra.mxu0 0
        %2381 = vmatprep.subr.bf16.mxu0 0
        %2382 = vmatpush2.bf16.msra.mxu0 0
        %2383 = vmatprep.mubr.bf16.mxu0 0
        %2384 = vmatmul.mubr.bf16.gmra.mxu0 %v2349
        %v2385 = vpop.f32.mrf.mxu0
        %v2386 = vadd.f32 0.0, %v2385
        %v2387 = vpop.f32.mrf.mxu0
        %v2388 = vpop.f32.mrf.mxu0
        %v2389 = vpop.f32.mrf.mxu0
        %2390 = vdwg.mxu0
        %v2392 = vsel %vm1015, %v2261, 0
        %2394 = vmatprep.subr.bf16.mxu0 0
        %2395 = vmatpush1.bf16.msra.mxu0 0
        %2396 = vmatprep.subr.bf16.mxu0 0
        %2397 = vmatpush1.bf16.msra.mxu0 0
        %2398 = vmatprep.subr.bf16.mxu0 0
        %2399 = vmatpush1.bf16.msra.mxu0 0
        %2400 = vmatprep.subr.bf16.mxu0 0
        %2401 = vmatpush1.bf16.msra.mxu0 0
        %2402 = vmatprep.subr.bf16.mxu0 0
        %2403 = vmatpush1.bf16.msra.mxu0 0
        %2404 = vmatprep.subr.bf16.mxu0 0
        %2405 = vmatpush1.bf16.msra.mxu0 0
        %2406 = vmatprep.subr.bf16.mxu0 0
        %2407 = vmatpush1.bf16.msra.mxu0 0
        %2408 = vmatprep.subr.bf16.mxu0 0
        %2409 = vmatpush1.bf16.msra.mxu0 %v1589
        %2410 = vmatprep.subr.bf16.mxu0 0
        %2411 = vmatpush2.bf16.msra.mxu0 0
        %2412 = vmatprep.subr.bf16.mxu0 0
        %2413 = vmatpush2.bf16.msra.mxu0 0
        %2414 = vmatprep.subr.bf16.mxu0 0
        %2415 = vmatpush2.bf16.msra.mxu0 0
        %2416 = vmatprep.subr.bf16.mxu0 0
        %2417 = vmatpush2.bf16.msra.mxu0 0
        %2418 = vmatprep.subr.bf16.mxu0 0
        %2419 = vmatpush2.bf16.msra.mxu0 0
        %2420 = vmatprep.subr.bf16.mxu0 0
        %2421 = vmatpush2.bf16.msra.mxu0 0
        %2422 = vmatprep.subr.bf16.mxu0 0
        %2423 = vmatpush2.bf16.msra.mxu0 0
        %2424 = vmatprep.subr.bf16.mxu0 0
        %2425 = vmatpush2.bf16.msra.mxu0 0
        %2426 = vmatprep.mubr.bf16.mxu0 0
        %2427 = vmatmul.mubr.bf16.gmra.mxu0 %v2392
        %v2428 = vpop.f32.mrf.mxu0
        %v2429 = vadd.f32 0.0, %v2428
        %v2430 = vpop.f32.mrf.mxu0
        %v2431 = vpop.f32.mrf.mxu0
        %v2432 = vpop.f32.mrf.mxu0
        %2433 = vdwg.mxu0
        %v2434 = vsel %vm763, %v2300, 0.0
        %v2435 = vsel %vm763, %v2343, 0.0
        %v2436 = vadd.f32 %v2434, %v2435
        %v2437 = vsel %vm763, %v2386, 0.0
        %v2438 = vadd.f32 %v2436, %v2437
        %v2439 = vsel %vm763, %v2429, 0.0
        %v2440 = vadd.f32 %v2438, %v2439
        %v2441 = vadd.f32 %v2440, %v1642
        %v2442 = vadd.f32 %v1645, %v2441
        %v2443 = vsel %vm763, %v2442, 0.0
        %2444 = vadd.xlane.f32.xlu0 %v2443
        %v2445 = vpop.xlane.xlu0 %2444
        %v2446 = vmul.f32 %v2445, %v767
        %v2447 = vsub.f32 %v2442, %v2446
        %v2448 = vmul.f32 %v2447, %v2447
        %v2449 = vsel %vm763, %v2448, 0.0
        %2450 = vadd.xlane.f32.xlu0 %v2449
        %v2451 = vpop.xlane.xlu0 %2450
        %v2452 = vmul.f32 %v2451, %v767
        %v2453 = vadd.f32 %v2452, 1e-05
        %v2454 = vrsqrt.pop %v2453
        %v2455 = vmul.f32 %v2447, %v2454
        %v2456 = vmul.f32 %v2455, %v782
        %v2457 = vadd.f32 %v2456, %v789
        %v2458 = vpack.c.bf16 %v2457, %v2457
        %v2459 = vld [vmem:[#allocation10] sm:$0xf]
        %v2460 = vld [vmem:[#allocation10 + $0x4] sm:$0xf]
        %v2461 = vld [vmem:[#allocation10 + $0x8] sm:$0xf]
        %v2462 = vld [vmem:[#allocation10 + $0xc] sm:$0xf]
        %v2463 = vld [vmem:[%s15] sm:$0x1]
        %v2465 = vlaneseq
        %v2466 = vshrl.u32 %v2465, 7
        %v2467 = vsub.s32 0, %v2466
        %v2468 = vrot.slane %v2463, %v2467
        %v2474 = vunpack.c.l.b16 %v2459
        %v2475 = vunpack.c.l.b16 %v2460
        %v2476 = vunpack.c.l.b16 %v2461
        %v2477 = vunpack.c.l.b16 %v2462
        %v2478 = vpack.c.b16 %v2475, %v2474
        %v2479 = vpack.c.b16 %v2477, %v2476
        %v2483 = vsel %vm763, %v2458, 0
        %2485 = vmatprep.subr.bf16.mxu0 0
        %2486 = vmatpush1.bf16.msra.mxu0 0
        %2487 = vmatprep.subr.bf16.mxu0 0
        %2488 = vmatpush1.bf16.msra.mxu0 0
        %2489 = vmatprep.subr.bf16.mxu0 0
        %2490 = vmatpush1.bf16.msra.mxu0 0
        %2491 = vmatprep.subr.bf16.mxu0 0
        %2492 = vmatpush1.bf16.msra.mxu0 0
        %2493 = vmatprep.subr.bf16.mxu0 0
        %2494 = vmatpush1.bf16.msra.mxu0 0
        %2495 = vmatprep.subr.bf16.mxu0 0
        %2496 = vmatpush1.bf16.msra.mxu0 0
        %2497 = vmatprep.subr.bf16.mxu0 0
        %2498 = vmatpush1.bf16.msra.mxu0 %v2479
        %2499 = vmatprep.subr.bf16.mxu0 0
        %2500 = vmatpush1.bf16.msra.mxu0 %v2478
        %2501 = vmatprep.subr.bf16.mxu0 0
        %2502 = vmatpush2.bf16.msra.mxu0 0
        %2503 = vmatprep.subr.bf16.mxu0 0
        %2504 = vmatpush2.bf16.msra.mxu0 0
        %2505 = vmatprep.subr.bf16.mxu0 0
        %2506 = vmatpush2.bf16.msra.mxu0 0
        %2507 = vmatprep.subr.bf16.mxu0 0
        %2508 = vmatpush2.bf16.msra.mxu0 0
        %2509 = vmatprep.subr.bf16.mxu0 0
        %2510 = vmatpush2.bf16.msra.mxu0 0
        %2511 = vmatprep.subr.bf16.mxu0 0
        %2512 = vmatpush2.bf16.msra.mxu0 0
        %2513 = vmatprep.subr.bf16.mxu0 0
        %2514 = vmatpush2.bf16.msra.mxu0 0
        %2515 = vmatprep.subr.bf16.mxu0 0
        %2516 = vmatpush2.bf16.msra.mxu0 0
        %2517 = vmatprep.mubr.bf16.mxu0 0
        %2518 = vmatmul.mubr.bf16.gmra.mxu0 %v2483
        %v2519 = vpop.f32.mrf.mxu0
        %v2520 = vadd.f32 %v2468, %v2519
        %v2521 = vpop.f32.mrf.mxu0
        %v2522 = vpop.f32.mrf.mxu0
        %v2523 = vpop.f32.mrf.mxu0
        %2524 = vdwg.mxu0
        %v2525 = vmax.f32 %v2520, 0.0
        %v2526 = vpack.c.bf16 %v2525, %v2525
        %v2527 = vld [vmem:[%s16] sm:$0xf]
        %v2528 = vld [vmem:[%s16 + $0x4] sm:$0xf]
        %v2529 = vld [vmem:[%s16 + $0x8] sm:$0xf]
        %v2530 = vld [vmem:[%s16 + $0xc] sm:$0xf]
        %v2531 = vld [vmem:[%s16 + $0x10] sm:$0xf]
        %v2532 = vld [vmem:[%s16 + $0x14] sm:$0xf]
        %v2533 = vld [vmem:[%s16 + $0x18] sm:$0xf]
        %v2534 = vld [vmem:[%s16 + $0x1c] sm:$0xf]
        %v2535 = vld [vmem:[%s17] sm:$0x1]
        %v2537 = vlaneseq
        %v2538 = vshrl.u32 %v2537, 7
        %v2539 = vsub.s32 0, %v2538
        %v2540 = vrot.slane %v2535, %v2539
        %v2550 = vunpack.c.l.b16 %v2527
        %v2551 = vunpack.c.l.b16 %v2528
        %v2552 = vunpack.c.l.b16 %v2529
        %v2553 = vunpack.c.l.b16 %v2530
        %v2554 = vunpack.c.l.b16 %v2531
        %v2555 = vunpack.c.l.b16 %v2532
        %v2556 = vunpack.c.l.b16 %v2533
        %v2557 = vunpack.c.l.b16 %v2534
        %v2558 = vpack.c.b16 %v2551, %v2550
        %v2559 = vpack.c.b16 %v2553, %v2552
        %v2560 = vpack.c.b16 %v2555, %v2554
        %v2561 = vpack.c.b16 %v2557, %v2556
        %vm2566 = vcmask 523264
        %v2568 = vsel %vm2566, %v2526, 0
        %2570 = vmatprep.subr.bf16.mxu0 0
        %2571 = vmatpush1.bf16.msra.mxu0 0
        %2572 = vmatprep.subr.bf16.mxu0 0
        %2573 = vmatpush1.bf16.msra.mxu0 0
        %2574 = vmatprep.subr.bf16.mxu0 0
        %2575 = vmatpush1.bf16.msra.mxu0 0
        %2576 = vmatprep.subr.bf16.mxu0 0
        %2577 = vmatpush1.bf16.msra.mxu0 0
        %2578 = vmatprep.subr.bf16.mxu0 0
        %2579 = vmatpush1.bf16.msra.mxu0 %v2561
        %2580 = vmatprep.subr.bf16.mxu0 0
        %2581 = vmatpush1.bf16.msra.mxu0 %v2560
        %2582 = vmatprep.subr.bf16.mxu0 0
        %2583 = vmatpush1.bf16.msra.mxu0 %v2559
        %2584 = vmatprep.subr.bf16.mxu0 0
        %2585 = vmatpush1.bf16.msra.mxu0 %v2558
        %2586 = vmatprep.subr.bf16.mxu0 0
        %2587 = vmatpush2.bf16.msra.mxu0 0
        %2588 = vmatprep.subr.bf16.mxu0 0
        %2589 = vmatpush2.bf16.msra.mxu0 0
        %2590 = vmatprep.subr.bf16.mxu0 0
        %2591 = vmatpush2.bf16.msra.mxu0 0
        %2592 = vmatprep.subr.bf16.mxu0 0
        %2593 = vmatpush2.bf16.msra.mxu0 0
        %2594 = vmatprep.subr.bf16.mxu0 0
        %2595 = vmatpush2.bf16.msra.mxu0 0
        %2596 = vmatprep.subr.bf16.mxu0 0
        %2597 = vmatpush2.bf16.msra.mxu0 0
        %2598 = vmatprep.subr.bf16.mxu0 0
        %2599 = vmatpush2.bf16.msra.mxu0 0
        %2600 = vmatprep.subr.bf16.mxu0 0
        %2601 = vmatpush2.bf16.msra.mxu0 0
        %2602 = vmatprep.mubr.bf16.mxu0 0
        %2603 = vmatmul.mubr.bf16.gmra.mxu0 %v2568
        %v2604 = vpop.f32.mrf.mxu0
        %v2605 = vadd.f32 %v2540, %v2604
        %v2606 = vpop.f32.mrf.mxu0
        %v2607 = vpop.f32.mrf.mxu0
        %v2608 = vpop.f32.mrf.mxu0
        %2609 = vdwg.mxu0
        %v2610 = vadd.f32 %v2442, %v2605
        %v2611 = vpack.c.bf16 %v2610, %v2610
        %vm2612 = vcmask 257024
        %2613 = vst.msk [vmem:[%s728] sm:$0xf] %vm2612, %v2611
        %s2614 = sand.u32 %s463, 1
        %s2615 = scalar_lea.sflag [#allocation4], %s2614
        %s2616 = sand.u32 %s463, 1
        %s2617 = smul.addr %s2616, 4
        %s2618 = scalar_lea.vmem [#allocation11], %s2617
        // Predicated region
        $region113: #{tpu_custom_call.1} parent=91 // pred_check
          %p2619 = pneg %p473
        $region114: #{tpu_custom_call.1} parent=91 // pred_check_branch
          %2621 = sbr.rel (%p2619) target = $region116
        $region115: #{tpu_custom_call.1} parent=91 // pred_region
          %s2623 = ssub.s32 64, 64
          %2624 = vsyncadd %s2615, %s2623
          %s2625 = sadd.s32 %s44, %s43
          %s2626 = smul.addr %s2625, 64
          %s2627 = scalar_lea.hbm %s18, %s2626
          %s2629 = sshll.u32 %s2618, 4
          %s2630 = int_to_ptr.vmem [resolvable:$true] %s2629
          %2632 = dma.vmem_to_hbm [thread:$0]  %s2630, 64, %s2627, %s2615
        $region116: #{tpu_custom_call.1} parent=91 // pred_fallthru
          _
      $region92: #{tpu_custom_call.1} parent=5 // pred_fallthru
        _
      %p2633 = scmp.le.s32.totalorder 2, %s34
      // Predicated region
      $region117: #{tpu_custom_call.1} parent=5 // pred_check
        %p2634 = pneg %p2633
      $region118: #{tpu_custom_call.1} parent=5 // pred_check_branch
        %2636 = sbr.rel (%p2634) target = $region120
      $region119: #{tpu_custom_call.1} parent=5 // pred_region
        %s2637 = ssub.s32 %s34, 2
        // Predicated region
        $region121: #{tpu_custom_call.1} parent=119 // pred_check
          %p2638 = pneg %p479
        $region122: #{tpu_custom_call.1} parent=119 // pred_check_branch
          %2640 = sbr.rel (%p2638) target = $region124
        $region123: #{tpu_custom_call.1} parent=119 // pred_region
          %s2641 = sand.u32 %s464, 1
          %s2642 = scalar_lea.sflag [#allocation4], %s2641
          %s2643 = sand.u32 %s464, 1
          %s2644 = smul.addr %s2643, 4
          %s2645 = scalar_lea.vmem [#allocation11], %s2644
          %2646 = dma.done %s2642, 64
        $region124: #{tpu_custom_call.1} parent=119 // pred_fallthru
          _
      $region120: #{tpu_custom_call.1} parent=5 // pred_fallthru
        _
    $region6: #{tpu_custom_call.1} parent=1 // loop_footer
      %s38 = sadd.s32 1, %s34
    $region7: #{tpu_custom_call.1} parent=1 // loop_footer_branch
      %33 = sbr.rel target = $region3
    $region8: #{tpu_custom_call.1} parent=1 // loop_exit
      _
    %2647 = vsyncpa [#allocation3], 1
    %s2648 = scalar_lea.sflag [#allocation3], 1
    %2649 = vsyncpa %s2648, 1
    %2650 = vsyncpa [#allocation6], 1
    %s2651 = scalar_lea.sflag [#allocation6], 1
    %2652 = vsyncpa %s2651, 1
    %2653 = vsyncpa [#allocation9], 1
    %2654 = vsyncpa [#allocation4], 1
    %s2655 = scalar_lea.sflag [#allocation4], 1
    %2656 = vsyncpa %s2655, 1

</llo_original>
